<compile_context>
chip_gen: v7x
topology: tpu7x:2x2x1
jax: 0.10.0
libtpu: 0.0.40
codegen_flags: <defaults>
</compile_context>

<pallas_src>
import jax
import jax.numpy as jnp
import numpy as np
from jax.experimental import pallas as pl
from jax.experimental.pallas import tpu as pltpu

# ---- cfg constants (standard AdvancedEAST defaults, defined in-script) ----
EPSILON = 1e-4
LAMBDA_INSIDE_SCORE_LOSS = 4.0
LAMBDA_SIDE_VERTEX_CODE_LOSS = 1.0
LAMBDA_SIDE_VERTEX_COORD_LOSS = 1.0

# Accumulator slot layout (19 per-pixel partial-sum maps):
#   0: labels (y_true ch0)                    10..18: same 9 quantities for the
#   1: vertex label (y_true ch1)                      (mirror_y_true,
#   2: labels * log(sigmoid(logit)+eps)                mirror_y_pred) pair
#   3: (1-labels) * log(1-sigmoid(logit)+eps)
#   4: pos_w * sum_ch(v_lab * log(v_pred+eps))
#   5: pos_w * sum_ch((1-v_lab) * log(1-v_pred+eps))
#   6: pos_w
#   7: weighted smooth-L1 vs y_true geo
#   8: vertex_weights
#   9: weighted smooth-L1 of y_pred geo vs mirror geo target (pair-0 only)
_NUM_SUMS = 19


def _fused_quad_kernel(yt_ref, yp_ref, mt_ref, mp_ref, out_ref, acc_ref):
    b = pl.program_id(0)
    hb = pl.program_id(1)
    is_first = jnp.logical_and(b == 0, hb == 0)
    is_last = jnp.logical_and(b == pl.num_programs(0) - 1,
                              hb == pl.num_programs(1) - 1)

    @pl.when(is_first)
    def _init():
        acc_ref[...] = jnp.zeros_like(acc_ref)

    yt = yt_ref[0]      # (7, TH, W)  original y_true tile
    yp = yp_ref[0]      # (7, TH, W)  original y_pred tile
    mt = mt_ref[0]      # (7, TH, W)  mirror y_true tile
    mp = mp_ref[0]      # (7, TH, W)  mirror y_pred tile

    def huber(d):
        ad = jnp.abs(d)
        return jnp.where(ad < 1.0, 0.5 * ad * ad, ad - 0.5)

    def weighted_smooth_l1_map(preds, tgts, vw):
        p0, p1, p2, p3 = preds
        g0, g1, g2, g3 = tgts
        # quad_norm: per-pixel quad edge length * 4 + eps
        n_q = jnp.sqrt((g0 - g2) ** 2 + (g1 - g3) ** 2) * 4.0 + EPSILON
        s = huber(p0 - g0) + huber(p1 - g1) + huber(p2 - g2) + huber(p3 - g3)
        return s * pl.reciprocal(n_q, approx=True) * vw

    def quad_maps(t, p):
        labels = t[0]
        sig = jax.nn.sigmoid(p[0:3])          # one sigmoid over score+vertex chans
        pred = sig[0]
        m_a = labels * jnp.log(pred + EPSILON)
        m_b = (1.0 - labels) * jnp.log(1.0 - pred + EPSILON)
        pos_w = (labels == 1.0).astype(jnp.float32)
        vl1, vl2 = t[1], t[2]
        vp1, vp2 = sig[1], sig[2]
        m_c = pos_w * (vl1 * jnp.log(vp1 + EPSILON)
                       + vl2 * jnp.log(vp2 + EPSILON))
        m_d = pos_w * ((1.0 - vl1) * jnp.log(1.0 - vp1 + EPSILON)
                       + (1.0 - vl2) * jnp.log(1.0 - vp2 + EPSILON))
        vert_w = (vl1 == 1.0).astype(jnp.float32)
        m_coord = weighted_smooth_l1_map(
            (p[3], p[4], p[5], p[6]), (t[3], t[4], t[5], t[6]), vert_w)
        return [labels, vl1, m_a, m_b, m_c, m_d, pos_w, m_coord, vert_w], vert_w

    maps0, vert_w0 = quad_maps(yt, yp)
    maps1, _ = quad_maps(mt, mp)

    # --- g_mirror built in-kernel: W-flip of mirror geo channels via an
    #     anti-diagonal permutation matmul (exact permutation, runs on MXU) ---
    w = yt.shape[-1]
    row = jax.lax.broadcasted_iota(jnp.int32, (w, w), 0)
    col = jax.lax.broadcasted_iota(jnp.int32, (w, w), 1)
    flip_mat = (row + col == w - 1).astype(jnp.float32)

    def flip_w(x):
        return jnp.dot(x, flip_mat, preferred_element_type=jnp.float32)

    f3 = flip_w(mp[3])
    f4 = flip_w(mp[4])
    f5 = flip_w(mp[5])
    f6 = flip_w(mp[6])
    # process_flip channel shuffle/negation: target geo = (-f5, f6, -f3, f4)
    m_coord_mirror = weighted_smooth_l1_map(
        (yp[3], yp[4], yp[5], yp[6]), (-f5, f6, -f3, f4), vert_w0)

    all_maps = maps0 + [m_coord_mirror] + maps1        # 19 (TH, W) maps
    for i, m in enumerate(all_maps):
        acc_ref[i] += m

    @pl.when(is_last)
    def _finalize():
        for i in range(_NUM_SUMS):
            out_ref[i] = jnp.sum(acc_ref[i])


def _pick_tile_h(h, max_rows=128):
    """Largest multiple-of-8 divisor of h that is <= max_rows (or h itself)."""
    if h <= max_rows or h % 8 != 0:
        return h
    best = h
    for th in range(8, max_rows + 1, 8):
        if h % th == 0:
            best = th
    return best


def _fused_sums(y_true, y_pred, mirror_y_true, mirror_y_pred):
    n, c, h, w = y_true.shape
    th = _pick_tile_h(h)
    spec = pl.BlockSpec((1, c, th, w), lambda b, hb: (b, 0, hb, 0))
    return pl.pallas_call(
        _fused_quad_kernel,
        out_shape=jax.ShapeDtypeStruct((_NUM_SUMS,), jnp.float32),
        grid=(n, h // th),
        in_specs=[spec, spec, spec, spec],
        out_specs=pl.BlockSpec(memory_space=pltpu.MemorySpace.SMEM),
        scratch_shapes=[pltpu.VMEM((_NUM_SUMS, th, w), jnp.float32)],
        compiler_params=pltpu.CompilerParams(
            dimension_semantics=("arbitrary", "arbitrary")),
    )(y_true, y_pred, mirror_y_true, mirror_y_pred)


def _pair_loss_from_sums(s, num_pix):
    s_label, s_vlab, s_a, s_b, s_c, s_d, s_posw, s_coord, s_vw = [
        s[i] for i in range(9)]

    mean_labels = s_label / num_pix
    beta = 1.0 - mean_labels
    inside_score_loss = (-(beta * s_a + (1.0 - beta) * s_b) / num_pix
                         * LAMBDA_INSIDE_SCORE_LOSS)

    mean_vlab = s_vlab / num_pix
    vertex_beta = 1.0 - mean_vlab / (mean_labels + EPSILON)
    side_vertex_code_loss = ((-vertex_beta * s_c - (1.0 - vertex_beta) * s_d)
                             / (s_posw + EPSILON)
                             * LAMBDA_SIDE_VERTEX_CODE_LOSS)

    side_vertex_coord_loss = (s_coord / (s_vw + EPSILON)
                              * LAMBDA_SIDE_VERTEX_COORD_LOSS)
    return (inside_score_loss + side_vertex_code_loss + side_vertex_coord_loss,
            s_vw)


@jax.jit
def loss_forward(y_true, y_pred, mirror_y_true, mirror_y_pred, alpha):
    """Pallas implementation of Loss.forward (single fused kernel launch)."""
    n, c, h, w = y_true.shape
    num_pix = float(n * h * w)

    sums = _fused_sums(y_true, y_pred, mirror_y_true, mirror_y_pred)

    origin_loss, s_vw0 = _pair_loss_from_sums(sums[0:9], num_pix)
    mirror_loss, _ = _pair_loss_from_sums(sums[10:19], num_pix)
    mirror_coord_loss = (sums[9] / (s_vw0 + EPSILON)
                         * LAMBDA_SIDE_VERTEX_COORD_LOSS)
    return origin_loss + mirror_loss + alpha * mirror_coord_loss


# --------------------- pure-JAX reference (for checking) -------------------
def _reference(y_true, y_pred, mirror_y_true, mirror_y_pred, alpha):
    def quad_norm(g):
        return jnp.sqrt((g[:, 0] - g[:, 2]) ** 2
                        + (g[:, 1] - g[:, 3]) ** 2) * 4.0 + EPSILON

    def smooth_l1(pred, tgt, wts):
        n_q = quad_norm(tgt)
        ad = jnp.abs(pred - tgt)
        hub = jnp.where(ad < 1.0, 0.5 * ad ** 2, ad - 0.5)
        return jnp.sum(hub, axis=1) / n_q * wts

    def quad_loss(yt, yp):
        labels = yt[:, :1]
        logits = yp[:, :1]
        beta = 1.0 - jnp.mean(labels)
        p = jax.nn.sigmoid(logits)
        inside = jnp.mean(-(beta * labels * jnp.log(p + EPSILON)
                            + (1 - beta) * (1 - labels)
                            * jnp.log(1 - p + EPSILON)))
        inside = inside * LAMBDA_INSIDE_SCORE_LOSS
        vl = yt[:, 1:3]
        vp = jax.nn.sigmoid(yp[:, 1:3])
        vbeta = 1.0 - jnp.mean(yt[:, 1:2]) / (jnp.mean(labels) + EPSILON)
        pos = -vbeta * vl * jnp.log(vp + EPSILON)
        neg = -(1 - vbeta) * (1 - vl) * jnp.log(1 - vp + EPSILON)
        pw = (yt[:, 0] == 1).astype(jnp.float32)
        code = (jnp.sum(jnp.sum(pos + neg, axis=1) * pw)
                / (jnp.sum(pw) + EPSILON) * LAMBDA_SIDE_VERTEX_CODE_LOSS)
        vw = (yt[:, 1] == 1).astype(jnp.float32)
        coord = (jnp.sum(smooth_l1(yp[:, 3:], yt[:, 3:], vw))
                 / (jnp.sum(vw) + EPSILON) * LAMBDA_SIDE_VERTEX_COORD_LOSS)
        return inside, code, coord

    i1, c1, d1 = quad_loss(y_true, y_pred)
    i2, c2, d2 = quad_loss(mirror_y_true, mirror_y_pred)
    flipped = mirror_y_pred[:, :, :, ::-1]
    g_mirror = jnp.stack(
        [-flipped[:, 5], flipped[:, 6], -flipped[:, 3], flipped[:, 4]], axis=1)
    vw = (y_true[:, 1] == 1).astype(jnp.float32)
    coord_m = (jnp.sum(smooth_l1(y_pred[:, 3:], g_mirror, vw))
               / (jnp.sum(vw) + EPSILON) * LAMBDA_SIDE_VERTEX_COORD_LOSS)
    return i1 + c1 + d1 + i2 + c2 + d2 + alpha * coord_m


if __name__ == "__main__":
    N, C, H, W = 2, 7, 16, 16
    key = jax.random.PRNGKey(0)
    ks = jax.random.split(key, 8)

    def make_true(ka, kb, kc):
        score = (jax.random.uniform(ka, (N, 1, H, W)) < 0.3).astype(jnp.float32)
        vertex = (jax.random.uniform(kb, (N, 2, H, W)) < 0.3).astype(jnp.float32)
        geo = jax.random.normal(kc, (N, 4, H, W), jnp.float32)
        return jnp.concatenate([score, vertex, geo], axis=1)

    y_true = make_true(ks[0], ks[1], ks[2])
    mirror_y_true = make_true(ks[3], ks[4], ks[5])
    y_pred = jax.random.normal(ks[6], (N, C, H, W), jnp.float32)
    mirror_y_pred = jax.random.normal(ks[7], (N, C, H, W), jnp.float32)
    alpha = jnp.float32(0.5)

    out = loss_forward(y_true, y_pred, mirror_y_true, mirror_y_pred, alpha)
    out = jax.block_until_ready(out)

    ref = _reference(y_true, y_pred, mirror_y_true, mirror_y_pred, alpha)
    np.testing.assert_allclose(np.asarray(out), np.asarray(ref),
                               rtol=2e-2, atol=1e-3)

    print("KERNEL_OK")
</pallas_src>

<mosaic_0001>
module attributes {stable_mosaic.version = 11 : i64} {
  func.func @_fused_quad_kernel(%arg0: i32, %arg1: i32, %arg2: memref<1x7x16x16xf32, #tpu.memory_space<vmem>>, %arg3: memref<1x7x16x16xf32, #tpu.memory_space<vmem>>, %arg4: memref<1x7x16x16xf32, #tpu.memory_space<vmem>>, %arg5: memref<1x7x16x16xf32, #tpu.memory_space<vmem>>, %arg6: memref<19xf32, #tpu.memory_space<smem>>, %arg7: memref<19x16x16xf32, #tpu.memory_space<vmem>>) attributes {dimension_semantics = [#tpu.dimension_semantics<arbitrary>, #tpu.dimension_semantics<arbitrary>], iteration_bounds = array<i64: 2, 1>, scalar_prefetch = 0 : i64, scratch_operands = 1 : i64, tpu.core_type = #tpu.core_type<tc>, window_params = [{transform_indices = @transform_0, window_bounds = array<i64: 1, 7, 16, 16>}, {transform_indices = @transform_1, window_bounds = array<i64: 1, 7, 16, 16>}, {transform_indices = @transform_2, window_bounds = array<i64: 1, 7, 16, 16>}, {transform_indices = @transform_3, window_bounds = array<i64: 1, 7, 16, 16>}, {transform_indices = @transform_4, window_bounds = array<i64: 19>}]} {
    %c0_i32 = arith.constant 0 : i32
    %0 = arith.cmpi eq, %arg0, %c0_i32 : i32
    %c0_i32_0 = arith.constant 0 : i32
    %1 = arith.cmpi eq, %arg1, %c0_i32_0 : i32
    %2 = arith.andi %0, %1 : i1
    %c1_i32 = arith.constant 1 : i32
    %3 = arith.cmpi eq, %arg0, %c1_i32 : i32
    %c0_i32_1 = arith.constant 0 : i32
    %4 = arith.cmpi eq, %arg1, %c0_i32_1 : i32
    %5 = arith.andi %3, %4 : i1
    %6 = arith.extui %2 : i1 to i32
    %c0_i32_2 = arith.constant 0 : i32
    %7 = arith.cmpi ne, %6, %c0_i32_2 : i32
    scf.if %7 {
      %cst_192 = arith.constant 0.000000e+00 : f32
      %495 = vector.broadcast %cst_192 : f32 to vector<19x16x16xf32>
      %c0_193 = arith.constant 0 : index
      %c0_194 = arith.constant 0 : index
      %c0_195 = arith.constant 0 : index
      %496 = vector.load %arg7[%c0_193, %c0_194, %c0_195] : memref<19x16x16xf32, #tpu.memory_space<vmem>>, vector<19x16x16xf32>
      tpu.vector_store %arg7[%c0_193, %c0_194, %c0_195], %495 {strides = array<i32>} : memref<19x16x16xf32, #tpu.memory_space<vmem>>, vector<19x16x16xf32>,
    } else {
    }
    %c0 = arith.constant 0 : index
    %c0_3 = arith.constant 0 : index
    %c0_4 = arith.constant 0 : index
    %c0_5 = arith.constant 0 : index
    %8 = vector.load %arg2[%c0, %c0_3, %c0_4, %c0_5] : memref<1x7x16x16xf32, #tpu.memory_space<vmem>>, vector<1x7x16x16xf32>
    %9 = vector.shape_cast %8 : vector<1x7x16x16xf32> to vector<7x16x16xf32>
    %c0_6 = arith.constant 0 : index
    %c0_7 = arith.constant 0 : index
    %c0_8 = arith.constant 0 : index
    %c0_9 = arith.constant 0 : index
    %10 = vector.load %arg3[%c0_6, %c0_7, %c0_8, %c0_9] : memref<1x7x16x16xf32, #tpu.memory_space<vmem>>, vector<1x7x16x16xf32>
    %11 = vector.shape_cast %10 : vector<1x7x16x16xf32> to vector<7x16x16xf32>
    %c0_10 = arith.constant 0 : index
    %c0_11 = arith.constant 0 : index
    %c0_12 = arith.constant 0 : index
    %c0_13 = arith.constant 0 : index
    %12 = vector.load %arg4[%c0_10, %c0_11, %c0_12, %c0_13] : memref<1x7x16x16xf32, #tpu.memory_space<vmem>>, vector<1x7x16x16xf32>
    %13 = vector.shape_cast %12 : vector<1x7x16x16xf32> to vector<7x16x16xf32>
    %c0_14 = arith.constant 0 : index
    %c0_15 = arith.constant 0 : index
    %c0_16 = arith.constant 0 : index
    %c0_17 = arith.constant 0 : index
    %14 = vector.load %arg5[%c0_14, %c0_15, %c0_16, %c0_17] : memref<1x7x16x16xf32, #tpu.memory_space<vmem>>, vector<1x7x16x16xf32>
    %15 = vector.shape_cast %14 : vector<1x7x16x16xf32> to vector<7x16x16xf32>
    %16 = vector.extract_strided_slice %9 {offsets = [0, 0, 0], sizes = [1, 16, 16], strides = [1, 1, 1]} : vector<7x16x16xf32> to vector<1x16x16xf32>
    %17 = vector.shape_cast %16 : vector<1x16x16xf32> to vector<16x16xf32>
    %18 = vector.extract_strided_slice %11 {offsets = [0, 0, 0], sizes = [3, 16, 16], strides = [1, 1, 1]} : vector<7x16x16xf32> to vector<3x16x16xf32>
    %19 = arith.negf %18 : vector<3x16x16xf32>
    %20 = math.exp %19 : vector<3x16x16xf32>
    %cst = arith.constant 1.000000e+00 : f32
    %21 = vector.broadcast %cst : f32 to vector<3x16x16xf32>
    %22 = arith.addf %21, %20 : vector<3x16x16xf32>
    %23 = arith.divf %21, %22 : vector<3x16x16xf32>
    %24 = vector.extract_strided_slice %23 {offsets = [0, 0, 0], sizes = [1, 16, 16], strides = [1, 1, 1]} : vector<3x16x16xf32> to vector<1x16x16xf32>
    %25 = vector.shape_cast %24 : vector<1x16x16xf32> to vector<16x16xf32>
    %cst_18 = arith.constant 9.99999974E-5 : f32
    %26 = vector.broadcast %cst_18 : f32 to vector<16x16xf32>
    %27 = arith.addf %25, %26 : vector<16x16xf32>
    %28 = math.log %27 : vector<16x16xf32>
    %29 = arith.mulf %17, %28 : vector<16x16xf32>
    %cst_19 = arith.constant 1.000000e+00 : f32
    %30 = vector.broadcast %cst_19 : f32 to vector<16x16xf32>
    %31 = arith.subf %30, %17 : vector<16x16xf32>
    %cst_20 = arith.constant 1.000000e+00 : f32
    %32 = vector.broadcast %cst_20 : f32 to vector<16x16xf32>
    %33 = arith.subf %32, %25 : vector<16x16xf32>
    %cst_21 = arith.constant 9.99999974E-5 : f32
    %34 = vector.broadcast %cst_21 : f32 to vector<16x16xf32>
    %35 = arith.addf %33, %34 : vector<16x16xf32>
    %36 = math.log %35 : vector<16x16xf32>
    %37 = arith.mulf %31, %36 : vector<16x16xf32>
    %cst_22 = arith.constant 1.000000e+00 : f32
    %38 = vector.broadcast %cst_22 : f32 to vector<16x16xf32>
    %39 = arith.cmpf oeq, %17, %38 : vector<16x16xf32>
    %40 = arith.extui %39 : vector<16x16xi1> to vector<16x16xi32>
    %41 = arith.sitofp %40 : vector<16x16xi32> to vector<16x16xf32>
    %42 = vector.extract_strided_slice %9 {offsets = [1, 0, 0], sizes = [1, 16, 16], strides = [1, 1, 1]} : vector<7x16x16xf32> to vector<1x16x16xf32>
    %43 = vector.shape_cast %42 : vector<1x16x16xf32> to vector<16x16xf32>
    %44 = vector.extract_strided_slice %9 {offsets = [2, 0, 0], sizes = [1, 16, 16], strides = [1, 1, 1]} : vector<7x16x16xf32> to vector<1x16x16xf32>
    %45 = vector.shape_cast %44 : vector<1x16x16xf32> to vector<16x16xf32>
    %46 = vector.extract_strided_slice %23 {offsets = [1, 0, 0], sizes = [1, 16, 16], strides = [1, 1, 1]} : vector<3x16x16xf32> to vector<1x16x16xf32>
    %47 = vector.shape_cast %46 : vector<1x16x16xf32> to vector<16x16xf32>
    %48 = vector.extract_strided_slice %23 {offsets = [2, 0, 0], sizes = [1, 16, 16], strides = [1, 1, 1]} : vector<3x16x16xf32> to vector<1x16x16xf32>
    %49 = vector.shape_cast %48 : vector<1x16x16xf32> to vector<16x16xf32>
    %cst_23 = arith.constant 9.99999974E-5 : f32
    %50 = vector.broadcast %cst_23 : f32 to vector<16x16xf32>
    %51 = arith.addf %47, %50 : vector<16x16xf32>
    %52 = math.log %51 : vector<16x16xf32>
    %53 = arith.mulf %43, %52 : vector<16x16xf32>
    %cst_24 = arith.constant 9.99999974E-5 : f32
    %54 = vector.broadcast %cst_24 : f32 to vector<16x16xf32>
    %55 = arith.addf %49, %54 : vector<16x16xf32>
    %56 = math.log %55 : vector<16x16xf32>
    %57 = arith.mulf %45, %56 : vector<16x16xf32>
    %58 = arith.addf %53, %57 : vector<16x16xf32>
    %59 = arith.mulf %41, %58 : vector<16x16xf32>
    %cst_25 = arith.constant 1.000000e+00 : f32
    %60 = vector.broadcast %cst_25 : f32 to vector<16x16xf32>
    %61 = arith.subf %60, %43 : vector<16x16xf32>
    %cst_26 = arith.constant 1.000000e+00 : f32
    %62 = vector.broadcast %cst_26 : f32 to vector<16x16xf32>
    %63 = arith.subf %62, %47 : vector<16x16xf32>
    %cst_27 = arith.constant 9.99999974E-5 : f32
    %64 = vector.broadcast %cst_27 : f32 to vector<16x16xf32>
    %65 = arith.addf %63, %64 : vector<16x16xf32>
    %66 = math.log %65 : vector<16x16xf32>
    %67 = arith.mulf %61, %66 : vector<16x16xf32>
    %cst_28 = arith.constant 1.000000e+00 : f32
    %68 = vector.broadcast %cst_28 : f32 to vector<16x16xf32>
    %69 = arith.subf %68, %45 : vector<16x16xf32>
    %cst_29 = arith.constant 1.000000e+00 : f32
    %70 = vector.broadcast %cst_29 : f32 to vector<16x16xf32>
    %71 = arith.subf %70, %49 : vector<16x16xf32>
    %cst_30 = arith.constant 9.99999974E-5 : f32
    %72 = vector.broadcast %cst_30 : f32 to vector<16x16xf32>
    %73 = arith.addf %71, %72 : vector<16x16xf32>
    %74 = math.log %73 : vector<16x16xf32>
    %75 = arith.mulf %69, %74 : vector<16x16xf32>
    %76 = arith.addf %67, %75 : vector<16x16xf32>
    %77 = arith.mulf %41, %76 : vector<16x16xf32>
    %cst_31 = arith.constant 1.000000e+00 : f32
    %78 = vector.broadcast %cst_31 : f32 to vector<16x16xf32>
    %79 = arith.cmpf oeq, %43, %78 : vector<16x16xf32>
    %80 = arith.extui %79 : vector<16x16xi1> to vector<16x16xi32>
    %81 = arith.sitofp %80 : vector<16x16xi32> to vector<16x16xf32>
    %82 = vector.extract_strided_slice %11 {offsets = [3, 0, 0], sizes = [1, 16, 16], strides = [1, 1, 1]} : vector<7x16x16xf32> to vector<1x16x16xf32>
    %83 = vector.shape_cast %82 : vector<1x16x16xf32> to vector<16x16xf32>
    %84 = vector.extract_strided_slice %11 {offsets = [4, 0, 0], sizes = [1, 16, 16], strides = [1, 1, 1]} : vector<7x16x16xf32> to vector<1x16x16xf32>
    %85 = vector.shape_cast %84 : vector<1x16x16xf32> to vector<16x16xf32>
    %86 = vector.extract_strided_slice %11 {offsets = [5, 0, 0], sizes = [1, 16, 16], strides = [1, 1, 1]} : vector<7x16x16xf32> to vector<1x16x16xf32>
    %87 = vector.shape_cast %86 : vector<1x16x16xf32> to vector<16x16xf32>
    %88 = vector.extract_strided_slice %11 {offsets = [6, 0, 0], sizes = [1, 16, 16], strides = [1, 1, 1]} : vector<7x16x16xf32> to vector<1x16x16xf32>
    %89 = vector.shape_cast %88 : vector<1x16x16xf32> to vector<16x16xf32>
    %90 = vector.extract_strided_slice %9 {offsets = [3, 0, 0], sizes = [1, 16, 16], strides = [1, 1, 1]} : vector<7x16x16xf32> to vector<1x16x16xf32>
    %91 = vector.shape_cast %90 : vector<1x16x16xf32> to vector<16x16xf32>
    %92 = vector.extract_strided_slice %9 {offsets = [4, 0, 0], sizes = [1, 16, 16], strides = [1, 1, 1]} : vector<7x16x16xf32> to vector<1x16x16xf32>
    %93 = vector.shape_cast %92 : vector<1x16x16xf32> to vector<16x16xf32>
    %94 = vector.extract_strided_slice %9 {offsets = [5, 0, 0], sizes = [1, 16, 16], strides = [1, 1, 1]} : vector<7x16x16xf32> to vector<1x16x16xf32>
    %95 = vector.shape_cast %94 : vector<1x16x16xf32> to vector<16x16xf32>
    %96 = vector.extract_strided_slice %9 {offsets = [6, 0, 0], sizes = [1, 16, 16], strides = [1, 1, 1]} : vector<7x16x16xf32> to vector<1x16x16xf32>
    %97 = vector.shape_cast %96 : vector<1x16x16xf32> to vector<16x16xf32>
    %98 = arith.subf %91, %95 : vector<16x16xf32>
    %99 = arith.mulf %98, %98 : vector<16x16xf32>
    %100 = arith.subf %93, %97 : vector<16x16xf32>
    %101 = arith.mulf %100, %100 : vector<16x16xf32>
    %102 = arith.addf %99, %101 : vector<16x16xf32>
    %103 = math.sqrt %102 : vector<16x16xf32>
    %cst_32 = arith.constant 4.000000e+00 : f32
    %104 = vector.broadcast %cst_32 : f32 to vector<16x16xf32>
    %105 = arith.mulf %103, %104 : vector<16x16xf32>
    %cst_33 = arith.constant 9.99999974E-5 : f32
    %106 = vector.broadcast %cst_33 : f32 to vector<16x16xf32>
    %107 = arith.addf %105, %106 : vector<16x16xf32>
    %108 = arith.subf %83, %91 : vector<16x16xf32>
    %109 = math.absf %108 : vector<16x16xf32>
    %cst_34 = arith.constant 1.000000e+00 : f32
    %110 = vector.broadcast %cst_34 : f32 to vector<16x16xf32>
    %111 = arith.cmpf olt, %109, %110 : vector<16x16xf32>
    %cst_35 = arith.constant 5.000000e-01 : f32
    %112 = vector.broadcast %cst_35 : f32 to vector<16x16xf32>
    %113 = arith.mulf %112, %109 : vector<16x16xf32>
    %114 = arith.mulf %113, %109 : vector<16x16xf32>
    %cst_36 = arith.constant 5.000000e-01 : f32
    %115 = vector.broadcast %cst_36 : f32 to vector<16x16xf32>
    %116 = arith.subf %109, %115 : vector<16x16xf32>
    %117 = arith.select %111, %114, %116 : vector<16x16xi1>, vector<16x16xf32>
    %118 = arith.subf %85, %93 : vector<16x16xf32>
    %119 = math.absf %118 : vector<16x16xf32>
    %cst_37 = arith.constant 1.000000e+00 : f32
    %120 = vector.broadcast %cst_37 : f32 to vector<16x16xf32>
    %121 = arith.cmpf olt, %119, %120 : vector<16x16xf32>
    %cst_38 = arith.constant 5.000000e-01 : f32
    %122 = vector.broadcast %cst_38 : f32 to vector<16x16xf32>
    %123 = arith.mulf %122, %119 : vector<16x16xf32>
    %124 = arith.mulf %123, %119 : vector<16x16xf32>
    %cst_39 = arith.constant 5.000000e-01 : f32
    %125 = vector.broadcast %cst_39 : f32 to vector<16x16xf32>
    %126 = arith.subf %119, %125 : vector<16x16xf32>
    %127 = arith.select %121, %124, %126 : vector<16x16xi1>, vector<16x16xf32>
    %128 = arith.addf %117, %127 : vector<16x16xf32>
    %129 = arith.subf %87, %95 : vector<16x16xf32>
    %130 = math.absf %129 : vector<16x16xf32>
    %cst_40 = arith.constant 1.000000e+00 : f32
    %131 = vector.broadcast %cst_40 : f32 to vector<16x16xf32>
    %132 = arith.cmpf olt, %130, %131 : vector<16x16xf32>
    %cst_41 = arith.constant 5.000000e-01 : f32
    %133 = vector.broadcast %cst_41 : f32 to vector<16x16xf32>
    %134 = arith.mulf %133, %130 : vector<16x16xf32>
    %135 = arith.mulf %134, %130 : vector<16x16xf32>
    %cst_42 = arith.constant 5.000000e-01 : f32
    %136 = vector.broadcast %cst_42 : f32 to vector<16x16xf32>
    %137 = arith.subf %130, %136 : vector<16x16xf32>
    %138 = arith.select %132, %135, %137 : vector<16x16xi1>, vector<16x16xf32>
    %139 = arith.addf %128, %138 : vector<16x16xf32>
    %140 = arith.subf %89, %97 : vector<16x16xf32>
    %141 = math.absf %140 : vector<16x16xf32>
    %cst_43 = arith.constant 1.000000e+00 : f32
    %142 = vector.broadcast %cst_43 : f32 to vector<16x16xf32>
    %143 = arith.cmpf olt, %141, %142 : vector<16x16xf32>
    %cst_44 = arith.constant 5.000000e-01 : f32
    %144 = vector.broadcast %cst_44 : f32 to vector<16x16xf32>
    %145 = arith.mulf %144, %141 : vector<16x16xf32>
    %146 = arith.mulf %145, %141 : vector<16x16xf32>
    %cst_45 = arith.constant 5.000000e-01 : f32
    %147 = vector.broadcast %cst_45 : f32 to vector<16x16xf32>
    %148 = arith.subf %141, %147 : vector<16x16xf32>
    %149 = arith.select %143, %146, %148 : vector<16x16xi1>, vector<16x16xf32>
    %150 = arith.addf %139, %149 : vector<16x16xf32>
    %151 = tpu.reciprocal %107 {approx = true} : vector<16x16xf32> -> vector<16x16xf32>
    %152 = arith.mulf %150, %151 : vector<16x16xf32>
    %153 = arith.mulf %152, %81 : vector<16x16xf32>
    %154 = vector.extract_strided_slice %13 {offsets = [0, 0, 0], sizes = [1, 16, 16], strides = [1, 1, 1]} : vector<7x16x16xf32> to vector<1x16x16xf32>
    %155 = vector.shape_cast %154 : vector<1x16x16xf32> to vector<16x16xf32>
    %156 = vector.extract_strided_slice %15 {offsets = [0, 0, 0], sizes = [3, 16, 16], strides = [1, 1, 1]} : vector<7x16x16xf32> to vector<3x16x16xf32>
    %157 = arith.negf %156 : vector<3x16x16xf32>
    %158 = math.exp %157 : vector<3x16x16xf32>
    %cst_46 = arith.constant 1.000000e+00 : f32
    %159 = vector.broadcast %cst_46 : f32 to vector<3x16x16xf32>
    %160 = arith.addf %159, %158 : vector<3x16x16xf32>
    %161 = arith.divf %159, %160 : vector<3x16x16xf32>
    %162 = vector.extract_strided_slice %161 {offsets = [0, 0, 0], sizes = [1, 16, 16], strides = [1, 1, 1]} : vector<3x16x16xf32> to vector<1x16x16xf32>
    %163 = vector.shape_cast %162 : vector<1x16x16xf32> to vector<16x16xf32>
    %cst_47 = arith.constant 9.99999974E-5 : f32
    %164 = vector.broadcast %cst_47 : f32 to vector<16x16xf32>
    %165 = arith.addf %163, %164 : vector<16x16xf32>
    %166 = math.log %165 : vector<16x16xf32>
    %167 = arith.mulf %155, %166 : vector<16x16xf32>
    %cst_48 = arith.constant 1.000000e+00 : f32
    %168 = vector.broadcast %cst_48 : f32 to vector<16x16xf32>
    %169 = arith.subf %168, %155 : vector<16x16xf32>
    %cst_49 = arith.constant 1.000000e+00 : f32
    %170 = vector.broadcast %cst_49 : f32 to vector<16x16xf32>
    %171 = arith.subf %170, %163 : vector<16x16xf32>
    %cst_50 = arith.constant 9.99999974E-5 : f32
    %172 = vector.broadcast %cst_50 : f32 to vector<16x16xf32>
    %173 = arith.addf %171, %172 : vector<16x16xf32>
    %174 = math.log %173 : vector<16x16xf32>
    %175 = arith.mulf %169, %174 : vector<16x16xf32>
    %cst_51 = arith.constant 1.000000e+00 : f32
    %176 = vector.broadcast %cst_51 : f32 to vector<16x16xf32>
    %177 = arith.cmpf oeq, %155, %176 : vector<16x16xf32>
    %178 = arith.extui %177 : vector<16x16xi1> to vector<16x16xi32>
    %179 = arith.sitofp %178 : vector<16x16xi32> to vector<16x16xf32>
    %180 = vector.extract_strided_slice %13 {offsets = [1, 0, 0], sizes = [1, 16, 16], strides = [1, 1, 1]} : vector<7x16x16xf32> to vector<1x16x16xf32>
    %181 = vector.shape_cast %180 : vector<1x16x16xf32> to vector<16x16xf32>
    %182 = vector.extract_strided_slice %13 {offsets = [2, 0, 0], sizes = [1, 16, 16], strides = [1, 1, 1]} : vector<7x16x16xf32> to vector<1x16x16xf32>
    %183 = vector.shape_cast %182 : vector<1x16x16xf32> to vector<16x16xf32>
    %184 = vector.extract_strided_slice %161 {offsets = [1, 0, 0], sizes = [1, 16, 16], strides = [1, 1, 1]} : vector<3x16x16xf32> to vector<1x16x16xf32>
    %185 = vector.shape_cast %184 : vector<1x16x16xf32> to vector<16x16xf32>
    %186 = vector.extract_strided_slice %161 {offsets = [2, 0, 0], sizes = [1, 16, 16], strides = [1, 1, 1]} : vector<3x16x16xf32> to vector<1x16x16xf32>
    %187 = vector.shape_cast %186 : vector<1x16x16xf32> to vector<16x16xf32>
    %cst_52 = arith.constant 9.99999974E-5 : f32
    %188 = vector.broadcast %cst_52 : f32 to vector<16x16xf32>
    %189 = arith.addf %185, %188 : vector<16x16xf32>
    %190 = math.log %189 : vector<16x16xf32>
    %191 = arith.mulf %181, %190 : vector<16x16xf32>
    %cst_53 = arith.constant 9.99999974E-5 : f32
    %192 = vector.broadcast %cst_53 : f32 to vector<16x16xf32>
    %193 = arith.addf %187, %192 : vector<16x16xf32>
    %194 = math.log %193 : vector<16x16xf32>
    %195 = arith.mulf %183, %194 : vector<16x16xf32>
    %196 = arith.addf %191, %195 : vector<16x16xf32>
    %197 = arith.mulf %179, %196 : vector<16x16xf32>
    %cst_54 = arith.constant 1.000000e+00 : f32
    %198 = vector.broadcast %cst_54 : f32 to vector<16x16xf32>
    %199 = arith.subf %198, %181 : vector<16x16xf32>
    %cst_55 = arith.constant 1.000000e+00 : f32
    %200 = vector.broadcast %cst_55 : f32 to vector<16x16xf32>
    %201 = arith.subf %200, %185 : vector<16x16xf32>
    %cst_56 = arith.constant 9.99999974E-5 : f32
    %202 = vector.broadcast %cst_56 : f32 to vector<16x16xf32>
    %203 = arith.addf %201, %202 : vector<16x16xf32>
    %204 = math.log %203 : vector<16x16xf32>
    %205 = arith.mulf %199, %204 : vector<16x16xf32>
    %cst_57 = arith.constant 1.000000e+00 : f32
    %206 = vector.broadcast %cst_57 : f32 to vector<16x16xf32>
    %207 = arith.subf %206, %183 : vector<16x16xf32>
    %cst_58 = arith.constant 1.000000e+00 : f32
    %208 = vector.broadcast %cst_58 : f32 to vector<16x16xf32>
    %209 = arith.subf %208, %187 : vector<16x16xf32>
    %cst_59 = arith.constant 9.99999974E-5 : f32
    %210 = vector.broadcast %cst_59 : f32 to vector<16x16xf32>
    %211 = arith.addf %209, %210 : vector<16x16xf32>
    %212 = math.log %211 : vector<16x16xf32>
    %213 = arith.mulf %207, %212 : vector<16x16xf32>
    %214 = arith.addf %205, %213 : vector<16x16xf32>
    %215 = arith.mulf %179, %214 : vector<16x16xf32>
    %cst_60 = arith.constant 1.000000e+00 : f32
    %216 = vector.broadcast %cst_60 : f32 to vector<16x16xf32>
    %217 = arith.cmpf oeq, %181, %216 : vector<16x16xf32>
    %218 = arith.extui %217 : vector<16x16xi1> to vector<16x16xi32>
    %219 = arith.sitofp %218 : vector<16x16xi32> to vector<16x16xf32>
    %220 = vector.extract_strided_slice %15 {offsets = [3, 0, 0], sizes = [1, 16, 16], strides = [1, 1, 1]} : vector<7x16x16xf32> to vector<1x16x16xf32>
    %221 = vector.shape_cast %220 : vector<1x16x16xf32> to vector<16x16xf32>
    %222 = vector.extract_strided_slice %15 {offsets = [4, 0, 0], sizes = [1, 16, 16], strides = [1, 1, 1]} : vector<7x16x16xf32> to vector<1x16x16xf32>
    %223 = vector.shape_cast %222 : vector<1x16x16xf32> to vector<16x16xf32>
    %224 = vector.extract_strided_slice %15 {offsets = [5, 0, 0], sizes = [1, 16, 16], strides = [1, 1, 1]} : vector<7x16x16xf32> to vector<1x16x16xf32>
    %225 = vector.shape_cast %224 : vector<1x16x16xf32> to vector<16x16xf32>
    %226 = vector.extract_strided_slice %15 {offsets = [6, 0, 0], sizes = [1, 16, 16], strides = [1, 1, 1]} : vector<7x16x16xf32> to vector<1x16x16xf32>
    %227 = vector.shape_cast %226 : vector<1x16x16xf32> to vector<16x16xf32>
    %228 = vector.extract_strided_slice %13 {offsets = [3, 0, 0], sizes = [1, 16, 16], strides = [1, 1, 1]} : vector<7x16x16xf32> to vector<1x16x16xf32>
    %229 = vector.shape_cast %228 : vector<1x16x16xf32> to vector<16x16xf32>
    %230 = vector.extract_strided_slice %13 {offsets = [4, 0, 0], sizes = [1, 16, 16], strides = [1, 1, 1]} : vector<7x16x16xf32> to vector<1x16x16xf32>
    %231 = vector.shape_cast %230 : vector<1x16x16xf32> to vector<16x16xf32>
    %232 = vector.extract_strided_slice %13 {offsets = [5, 0, 0], sizes = [1, 16, 16], strides = [1, 1, 1]} : vector<7x16x16xf32> to vector<1x16x16xf32>
    %233 = vector.shape_cast %232 : vector<1x16x16xf32> to vector<16x16xf32>
    %234 = vector.extract_strided_slice %13 {offsets = [6, 0, 0], sizes = [1, 16, 16], strides = [1, 1, 1]} : vector<7x16x16xf32> to vector<1x16x16xf32>
    %235 = vector.shape_cast %234 : vector<1x16x16xf32> to vector<16x16xf32>
    %236 = arith.subf %229, %233 : vector<16x16xf32>
    %237 = arith.mulf %236, %236 : vector<16x16xf32>
    %238 = arith.subf %231, %235 : vector<16x16xf32>
    %239 = arith.mulf %238, %238 : vector<16x16xf32>
    %240 = arith.addf %237, %239 : vector<16x16xf32>
    %241 = math.sqrt %240 : vector<16x16xf32>
    %cst_61 = arith.constant 4.000000e+00 : f32
    %242 = vector.broadcast %cst_61 : f32 to vector<16x16xf32>
    %243 = arith.mulf %241, %242 : vector<16x16xf32>
    %cst_62 = arith.constant 9.99999974E-5 : f32
    %244 = vector.broadcast %cst_62 : f32 to vector<16x16xf32>
    %245 = arith.addf %243, %244 : vector<16x16xf32>
    %246 = arith.subf %221, %229 : vector<16x16xf32>
    %247 = math.absf %246 : vector<16x16xf32>
    %cst_63 = arith.constant 1.000000e+00 : f32
    %248 = vector.broadcast %cst_63 : f32 to vector<16x16xf32>
    %249 = arith.cmpf olt, %247, %248 : vector<16x16xf32>
    %cst_64 = arith.constant 5.000000e-01 : f32
    %250 = vector.broadcast %cst_64 : f32 to vector<16x16xf32>
    %251 = arith.mulf %250, %247 : vector<16x16xf32>
    %252 = arith.mulf %251, %247 : vector<16x16xf32>
    %cst_65 = arith.constant 5.000000e-01 : f32
    %253 = vector.broadcast %cst_65 : f32 to vector<16x16xf32>
    %254 = arith.subf %247, %253 : vector<16x16xf32>
    %255 = arith.select %249, %252, %254 : vector<16x16xi1>, vector<16x16xf32>
    %256 = arith.subf %223, %231 : vector<16x16xf32>
    %257 = math.absf %256 : vector<16x16xf32>
    %cst_66 = arith.constant 1.000000e+00 : f32
    %258 = vector.broadcast %cst_66 : f32 to vector<16x16xf32>
    %259 = arith.cmpf olt, %257, %258 : vector<16x16xf32>
    %cst_67 = arith.constant 5.000000e-01 : f32
    %260 = vector.broadcast %cst_67 : f32 to vector<16x16xf32>
    %261 = arith.mulf %260, %257 : vector<16x16xf32>
    %262 = arith.mulf %261, %257 : vector<16x16xf32>
    %cst_68 = arith.constant 5.000000e-01 : f32
    %263 = vector.broadcast %cst_68 : f32 to vector<16x16xf32>
    %264 = arith.subf %257, %263 : vector<16x16xf32>
    %265 = arith.select %259, %262, %264 : vector<16x16xi1>, vector<16x16xf32>
    %266 = arith.addf %255, %265 : vector<16x16xf32>
    %267 = arith.subf %225, %233 : vector<16x16xf32>
    %268 = math.absf %267 : vector<16x16xf32>
    %cst_69 = arith.constant 1.000000e+00 : f32
    %269 = vector.broadcast %cst_69 : f32 to vector<16x16xf32>
    %270 = arith.cmpf olt, %268, %269 : vector<16x16xf32>
    %cst_70 = arith.constant 5.000000e-01 : f32
    %271 = vector.broadcast %cst_70 : f32 to vector<16x16xf32>
    %272 = arith.mulf %271, %268 : vector<16x16xf32>
    %273 = arith.mulf %272, %268 : vector<16x16xf32>
    %cst_71 = arith.constant 5.000000e-01 : f32
    %274 = vector.broadcast %cst_71 : f32 to vector<16x16xf32>
    %275 = arith.subf %268, %274 : vector<16x16xf32>
    %276 = arith.select %270, %273, %275 : vector<16x16xi1>, vector<16x16xf32>
    %277 = arith.addf %266, %276 : vector<16x16xf32>
    %278 = arith.subf %227, %235 : vector<16x16xf32>
    %279 = math.absf %278 : vector<16x16xf32>
    %cst_72 = arith.constant 1.000000e+00 : f32
    %280 = vector.broadcast %cst_72 : f32 to vector<16x16xf32>
    %281 = arith.cmpf olt, %279, %280 : vector<16x16xf32>
    %cst_73 = arith.constant 5.000000e-01 : f32
    %282 = vector.broadcast %cst_73 : f32 to vector<16x16xf32>
    %283 = arith.mulf %282, %279 : vector<16x16xf32>
    %284 = arith.mulf %283, %279 : vector<16x16xf32>
    %cst_74 = arith.constant 5.000000e-01 : f32
    %285 = vector.broadcast %cst_74 : f32 to vector<16x16xf32>
    %286 = arith.subf %279, %285 : vector<16x16xf32>
    %287 = arith.select %281, %284, %286 : vector<16x16xi1>, vector<16x16xf32>
    %288 = arith.addf %277, %287 : vector<16x16xf32>
    %289 = tpu.reciprocal %245 {approx = true} : vector<16x16xf32> -> vector<16x16xf32>
    %290 = arith.mulf %288, %289 : vector<16x16xf32>
    %291 = arith.mulf %290, %219 : vector<16x16xf32>
    %292 = tpu.iota {dimensions = array<i32: 0>} : vector<16x16xi32>
    %293 = tpu.iota {dimensions = array<i32: 1>} : vector<16x16xi32>
    %294 = arith.addi %292, %293 : vector<16x16xi32>
    %c15_i32 = arith.constant 15 : i32
    %295 = vector.broadcast %c15_i32 : i32 to vector<16x16xi32>
    %296 = arith.cmpi eq, %294, %295 : vector<16x16xi32>
    %297 = arith.extui %296 : vector<16x16xi1> to vector<16x16xi32>
    %298 = arith.sitofp %297 : vector<16x16xi32> to vector<16x16xf32>
    %299 = vector.extract_strided_slice %15 {offsets = [3, 0, 0], sizes = [1, 16, 16], strides = [1, 1, 1]} : vector<7x16x16xf32> to vector<1x16x16xf32>
    %300 = vector.shape_cast %299 : vector<1x16x16xf32> to vector<16x16xf32>
    %cst_75 = arith.constant dense<0.000000e+00> : vector<16x16xf32>
    %301 = tpu.matmul %300, %298, %cst_75 {dimension_numbers = #tpu.dot_dimension_numbers<[1], [0], [0], [1], [0, 0, 1, 1], [], []>} : vector<16x16xf32>, vector<16x16xf32>, vector<16x16xf32> -> vector<16x16xf32>
    %302 = vector.extract_strided_slice %15 {offsets = [4, 0, 0], sizes = [1, 16, 16], strides = [1, 1, 1]} : vector<7x16x16xf32> to vector<1x16x16xf32>
    %303 = vector.shape_cast %302 : vector<1x16x16xf32> to vector<16x16xf32>
    %cst_76 = arith.constant dense<0.000000e+00> : vector<16x16xf32>
    %304 = tpu.matmul %303, %298, %cst_76 {dimension_numbers = #tpu.dot_dimension_numbers<[1], [0], [0], [1], [0, 0, 1, 1], [], []>} : vector<16x16xf32>, vector<16x16xf32>, vector<16x16xf32> -> vector<16x16xf32>
    %305 = vector.extract_strided_slice %15 {offsets = [5, 0, 0], sizes = [1, 16, 16], strides = [1, 1, 1]} : vector<7x16x16xf32> to vector<1x16x16xf32>
    %306 = vector.shape_cast %305 : vector<1x16x16xf32> to vector<16x16xf32>
    %cst_77 = arith.constant dense<0.000000e+00> : vector<16x16xf32>
    %307 = tpu.matmul %306, %298, %cst_77 {dimension_numbers = #tpu.dot_dimension_numbers<[1], [0], [0], [1], [0, 0, 1, 1], [], []>} : vector<16x16xf32>, vector<16x16xf32>, vector<16x16xf32> -> vector<16x16xf32>
    %308 = vector.extract_strided_slice %15 {offsets = [6, 0, 0], sizes = [1, 16, 16], strides = [1, 1, 1]} : vector<7x16x16xf32> to vector<1x16x16xf32>
    %309 = vector.shape_cast %308 : vector<1x16x16xf32> to vector<16x16xf32>
    %cst_78 = arith.constant dense<0.000000e+00> : vector<16x16xf32>
    %310 = tpu.matmul %309, %298, %cst_78 {dimension_numbers = #tpu.dot_dimension_numbers<[1], [0], [0], [1], [0, 0, 1, 1], [], []>} : vector<16x16xf32>, vector<16x16xf32>, vector<16x16xf32> -> vector<16x16xf32>
    %311 = vector.extract_strided_slice %11 {offsets = [3, 0, 0], sizes = [1, 16, 16], strides = [1, 1, 1]} : vector<7x16x16xf32> to vector<1x16x16xf32>
    %312 = vector.shape_cast %311 : vector<1x16x16xf32> to vector<16x16xf32>
    %313 = vector.extract_strided_slice %11 {offsets = [4, 0, 0], sizes = [1, 16, 16], strides = [1, 1, 1]} : vector<7x16x16xf32> to vector<1x16x16xf32>
    %314 = vector.shape_cast %313 : vector<1x16x16xf32> to vector<16x16xf32>
    %315 = vector.extract_strided_slice %11 {offsets = [5, 0, 0], sizes = [1, 16, 16], strides = [1, 1, 1]} : vector<7x16x16xf32> to vector<1x16x16xf32>
    %316 = vector.shape_cast %315 : vector<1x16x16xf32> to vector<16x16xf32>
    %317 = vector.extract_strided_slice %11 {offsets = [6, 0, 0], sizes = [1, 16, 16], strides = [1, 1, 1]} : vector<7x16x16xf32> to vector<1x16x16xf32>
    %318 = vector.shape_cast %317 : vector<1x16x16xf32> to vector<16x16xf32>
    %cst_79 = arith.constant 0.000000e+00 : f32
    %319 = vector.broadcast %cst_79 : f32 to vector<16x16xf32>
    %320 = arith.subf %319, %307 : vector<16x16xf32>
    %cst_80 = arith.constant 0.000000e+00 : f32
    %321 = vector.broadcast %cst_80 : f32 to vector<16x16xf32>
    %322 = arith.subf %321, %301 : vector<16x16xf32>
    %323 = arith.subf %320, %322 : vector<16x16xf32>
    %324 = arith.mulf %323, %323 : vector<16x16xf32>
    %325 = arith.subf %310, %304 : vector<16x16xf32>
    %326 = arith.mulf %325, %325 : vector<16x16xf32>
    %327 = arith.addf %324, %326 : vector<16x16xf32>
    %328 = math.sqrt %327 : vector<16x16xf32>
    %cst_81 = arith.constant 4.000000e+00 : f32
    %329 = vector.broadcast %cst_81 : f32 to vector<16x16xf32>
    %330 = arith.mulf %328, %329 : vector<16x16xf32>
    %cst_82 = arith.constant 9.99999974E-5 : f32
    %331 = vector.broadcast %cst_82 : f32 to vector<16x16xf32>
    %332 = arith.addf %330, %331 : vector<16x16xf32>
    %333 = arith.subf %312, %320 : vector<16x16xf32>
    %334 = math.absf %333 : vector<16x16xf32>
    %cst_83 = arith.constant 1.000000e+00 : f32
    %335 = vector.broadcast %cst_83 : f32 to vector<16x16xf32>
    %336 = arith.cmpf olt, %334, %335 : vector<16x16xf32>
    %cst_84 = arith.constant 5.000000e-01 : f32
    %337 = vector.broadcast %cst_84 : f32 to vector<16x16xf32>
    %338 = arith.mulf %337, %334 : vector<16x16xf32>
    %339 = arith.mulf %338, %334 : vector<16x16xf32>
    %cst_85 = arith.constant 5.000000e-01 : f32
    %340 = vector.broadcast %cst_85 : f32 to vector<16x16xf32>
    %341 = arith.subf %334, %340 : vector<16x16xf32>
    %342 = arith.select %336, %339, %341 : vector<16x16xi1>, vector<16x16xf32>
    %343 = arith.subf %314, %310 : vector<16x16xf32>
    %344 = math.absf %343 : vector<16x16xf32>
    %cst_86 = arith.constant 1.000000e+00 : f32
    %345 = vector.broadcast %cst_86 : f32 to vector<16x16xf32>
    %346 = arith.cmpf olt, %344, %345 : vector<16x16xf32>
    %cst_87 = arith.constant 5.000000e-01 : f32
    %347 = vector.broadcast %cst_87 : f32 to vector<16x16xf32>
    %348 = arith.mulf %347, %344 : vector<16x16xf32>
    %349 = arith.mulf %348, %344 : vector<16x16xf32>
    %cst_88 = arith.constant 5.000000e-01 : f32
    %350 = vector.broadcast %cst_88 : f32 to vector<16x16xf32>
    %351 = arith.subf %344, %350 : vector<16x16xf32>
    %352 = arith.select %346, %349, %351 : vector<16x16xi1>, vector<16x16xf32>
    %353 = arith.addf %342, %352 : vector<16x16xf32>
    %354 = arith.subf %316, %322 : vector<16x16xf32>
    %355 = math.absf %354 : vector<16x16xf32>
    %cst_89 = arith.constant 1.000000e+00 : f32
    %356 = vector.broadcast %cst_89 : f32 to vector<16x16xf32>
    %357 = arith.cmpf olt, %355, %356 : vector<16x16xf32>
    %cst_90 = arith.constant 5.000000e-01 : f32
    %358 = vector.broadcast %cst_90 : f32 to vector<16x16xf32>
    %359 = arith.mulf %358, %355 : vector<16x16xf32>
    %360 = arith.mulf %359, %355 : vector<16x16xf32>
    %cst_91 = arith.constant 5.000000e-01 : f32
    %361 = vector.broadcast %cst_91 : f32 to vector<16x16xf32>
    %362 = arith.subf %355, %361 : vector<16x16xf32>
    %363 = arith.select %357, %360, %362 : vector<16x16xi1>, vector<16x16xf32>
    %364 = arith.addf %353, %363 : vector<16x16xf32>
    %365 = arith.subf %318, %304 : vector<16x16xf32>
    %366 = math.absf %365 : vector<16x16xf32>
    %cst_92 = arith.constant 1.000000e+00 : f32
    %367 = vector.broadcast %cst_92 : f32 to vector<16x16xf32>
    %368 = arith.cmpf olt, %366, %367 : vector<16x16xf32>
    %cst_93 = arith.constant 5.000000e-01 : f32
    %369 = vector.broadcast %cst_93 : f32 to vector<16x16xf32>
    %370 = arith.mulf %369, %366 : vector<16x16xf32>
    %371 = arith.mulf %370, %366 : vector<16x16xf32>
    %cst_94 = arith.constant 5.000000e-01 : f32
    %372 = vector.broadcast %cst_94 : f32 to vector<16x16xf32>
    %373 = arith.subf %366, %372 : vector<16x16xf32>
    %374 = arith.select %368, %371, %373 : vector<16x16xi1>, vector<16x16xf32>
    %375 = arith.addf %364, %374 : vector<16x16xf32>
    %376 = tpu.reciprocal %332 {approx = true} : vector<16x16xf32> -> vector<16x16xf32>
    %377 = arith.mulf %375, %376 : vector<16x16xf32>
    %378 = arith.mulf %377, %81 : vector<16x16xf32>
    %c0_95 = arith.constant 0 : index
    %c0_96 = arith.constant 0 : index
    %c0_97 = arith.constant 0 : index
    %379 = vector.load %arg7[%c0_95, %c0_96, %c0_97] : memref<19x16x16xf32, #tpu.memory_space<vmem>>, vector<1x16x16xf32>
    %380 = vector.shape_cast %379 : vector<1x16x16xf32> to vector<16x16xf32>
    %381 = arith.addf %380, %17 : vector<16x16xf32>
    %c0_98 = arith.constant 0 : index
    %c0_99 = arith.constant 0 : index
    %c0_100 = arith.constant 0 : index
    %382 = vector.load %arg7[%c0_98, %c0_99, %c0_100] : memref<19x16x16xf32, #tpu.memory_space<vmem>>, vector<1x16x16xf32>
    %383 = vector.shape_cast %382 : vector<1x16x16xf32> to vector<16x16xf32>
    %384 = vector.shape_cast %381 : vector<16x16xf32> to vector<1x16x16xf32>
    tpu.vector_store %arg7[%c0_98, %c0_99, %c0_100], %384 {strides = array<i32>} : memref<19x16x16xf32, #tpu.memory_space<vmem>>, vector<1x16x16xf32>,
    %c1 = arith.constant 1 : index
    %c0_101 = arith.constant 0 : index
    %c0_102 = arith.constant 0 : index
    %385 = vector.load %arg7[%c1, %c0_101, %c0_102] : memref<19x16x16xf32, #tpu.memory_space<vmem>>, vector<1x16x16xf32>
    %386 = vector.shape_cast %385 : vector<1x16x16xf32> to vector<16x16xf32>
    %387 = arith.addf %386, %43 : vector<16x16xf32>
    %c1_103 = arith.constant 1 : index
    %c0_104 = arith.constant 0 : index
    %c0_105 = arith.constant 0 : index
    %388 = vector.load %arg7[%c1_103, %c0_104, %c0_105] : memref<19x16x16xf32, #tpu.memory_space<vmem>>, vector<1x16x16xf32>
    %389 = vector.shape_cast %388 : vector<1x16x16xf32> to vector<16x16xf32>
    %390 = vector.shape_cast %387 : vector<16x16xf32> to vector<1x16x16xf32>
    tpu.vector_store %arg7[%c1_103, %c0_104, %c0_105], %390 {strides = array<i32>} : memref<19x16x16xf32, #tpu.memory_space<vmem>>, vector<1x16x16xf32>,
    %c2 = arith.constant 2 : index
    %c0_106 = arith.constant 0 : index
    %c0_107 = arith.constant 0 : index
    %391 = vector.load %arg7[%c2, %c0_106, %c0_107] : memref<19x16x16xf32, #tpu.memory_space<vmem>>, vector<1x16x16xf32>
    %392 = vector.shape_cast %391 : vector<1x16x16xf32> to vector<16x16xf32>
    %393 = arith.addf %392, %29 : vector<16x16xf32>
    %c2_108 = arith.constant 2 : index
    %c0_109 = arith.constant 0 : index
    %c0_110 = arith.constant 0 : index
    %394 = vector.load %arg7[%c2_108, %c0_109, %c0_110] : memref<19x16x16xf32, #tpu.memory_space<vmem>>, vector<1x16x16xf32>
    %395 = vector.shape_cast %394 : vector<1x16x16xf32> to vector<16x16xf32>
    %396 = vector.shape_cast %393 : vector<16x16xf32> to vector<1x16x16xf32>
    tpu.vector_store %arg7[%c2_108, %c0_109, %c0_110], %396 {strides = array<i32>} : memref<19x16x16xf32, #tpu.memory_space<vmem>>, vector<1x16x16xf32>,
    %c3 = arith.constant 3 : index
    %c0_111 = arith.constant 0 : index
    %c0_112 = arith.constant 0 : index
    %397 = vector.load %arg7[%c3, %c0_111, %c0_112] : memref<19x16x16xf32, #tpu.memory_space<vmem>>, vector<1x16x16xf32>
    %398 = vector.shape_cast %397 : vector<1x16x16xf32> to vector<16x16xf32>
    %399 = arith.addf %398, %37 : vector<16x16xf32>
    %c3_113 = arith.constant 3 : index
    %c0_114 = arith.constant 0 : index
    %c0_115 = arith.constant 0 : index
    %400 = vector.load %arg7[%c3_113, %c0_114, %c0_115] : memref<19x16x16xf32, #tpu.memory_space<vmem>>, vector<1x16x16xf32>
    %401 = vector.shape_cast %400 : vector<1x16x16xf32> to vector<16x16xf32>
    %402 = vector.shape_cast %399 : vector<16x16xf32> to vector<1x16x16xf32>
    tpu.vector_store %arg7[%c3_113, %c0_114, %c0_115], %402 {strides = array<i32>} : memref<19x16x16xf32, #tpu.memory_space<vmem>>, vector<1x16x16xf32>,
    %c4 = arith.constant 4 : index
    %c0_116 = arith.constant 0 : index
    %c0_117 = arith.constant 0 : index
    %403 = vector.load %arg7[%c4, %c0_116, %c0_117] : memref<19x16x16xf32, #tpu.memory_space<vmem>>, vector<1x16x16xf32>
    %404 = vector.shape_cast %403 : vector<1x16x16xf32> to vector<16x16xf32>
    %405 = arith.addf %404, %59 : vector<16x16xf32>
    %c4_118 = arith.constant 4 : index
    %c0_119 = arith.constant 0 : index
    %c0_120 = arith.constant 0 : index
    %406 = vector.load %arg7[%c4_118, %c0_119, %c0_120] : memref<19x16x16xf32, #tpu.memory_space<vmem>>, vector<1x16x16xf32>
    %407 = vector.shape_cast %406 : vector<1x16x16xf32> to vector<16x16xf32>
    %408 = vector.shape_cast %405 : vector<16x16xf32> to vector<1x16x16xf32>
    tpu.vector_store %arg7[%c4_118, %c0_119, %c0_120], %408 {strides = array<i32>} : memref<19x16x16xf32, #tpu.memory_space<vmem>>, vector<1x16x16xf32>,
    %c5 = arith.constant 5 : index
    %c0_121 = arith.constant 0 : index
    %c0_122 = arith.constant 0 : index
    %409 = vector.load %arg7[%c5, %c0_121, %c0_122] : memref<19x16x16xf32, #tpu.memory_space<vmem>>, vector<1x16x16xf32>
    %410 = vector.shape_cast %409 : vector<1x16x16xf32> to vector<16x16xf32>
    %411 = arith.addf %410, %77 : vector<16x16xf32>
    %c5_123 = arith.constant 5 : index
    %c0_124 = arith.constant 0 : index
    %c0_125 = arith.constant 0 : index
    %412 = vector.load %arg7[%c5_123, %c0_124, %c0_125] : memref<19x16x16xf32, #tpu.memory_space<vmem>>, vector<1x16x16xf32>
    %413 = vector.shape_cast %412 : vector<1x16x16xf32> to vector<16x16xf32>
    %414 = vector.shape_cast %411 : vector<16x16xf32> to vector<1x16x16xf32>
    tpu.vector_store %arg7[%c5_123, %c0_124, %c0_125], %414 {strides = array<i32>} : memref<19x16x16xf32, #tpu.memory_space<vmem>>, vector<1x16x16xf32>,
    %c6 = arith.constant 6 : index
    %c0_126 = arith.constant 0 : index
    %c0_127 = arith.constant 0 : index
    %415 = vector.load %arg7[%c6, %c0_126, %c0_127] : memref<19x16x16xf32, #tpu.memory_space<vmem>>, vector<1x16x16xf32>
    %416 = vector.shape_cast %415 : vector<1x16x16xf32> to vector<16x16xf32>
    %417 = arith.addf %416, %41 : vector<16x16xf32>
    %c6_128 = arith.constant 6 : index
    %c0_129 = arith.constant 0 : index
    %c0_130 = arith.constant 0 : index
    %418 = vector.load %arg7[%c6_128, %c0_129, %c0_130] : memref<19x16x16xf32, #tpu.memory_space<vmem>>, vector<1x16x16xf32>
    %419 = vector.shape_cast %418 : vector<1x16x16xf32> to vector<16x16xf32>
    %420 = vector.shape_cast %417 : vector<16x16xf32> to vector<1x16x16xf32>
    tpu.vector_store %arg7[%c6_128, %c0_129, %c0_130], %420 {strides = array<i32>} : memref<19x16x16xf32, #tpu.memory_space<vmem>>, vector<1x16x16xf32>,
    %c7 = arith.constant 7 : index
    %c0_131 = arith.constant 0 : index
    %c0_132 = arith.constant 0 : index
    %421 = vector.load %arg7[%c7, %c0_131, %c0_132] : memref<19x16x16xf32, #tpu.memory_space<vmem>>, vector<1x16x16xf32>
    %422 = vector.shape_cast %421 : vector<1x16x16xf32> to vector<16x16xf32>
    %423 = arith.addf %422, %153 : vector<16x16xf32>
    %c7_133 = arith.constant 7 : index
    %c0_134 = arith.constant 0 : index
    %c0_135 = arith.constant 0 : index
    %424 = vector.load %arg7[%c7_133, %c0_134, %c0_135] : memref<19x16x16xf32, #tpu.memory_space<vmem>>, vector<1x16x16xf32>
    %425 = vector.shape_cast %424 : vector<1x16x16xf32> to vector<16x16xf32>
    %426 = vector.shape_cast %423 : vector<16x16xf32> to vector<1x16x16xf32>
    tpu.vector_store %arg7[%c7_133, %c0_134, %c0_135], %426 {strides = array<i32>} : memref<19x16x16xf32, #tpu.memory_space<vmem>>, vector<1x16x16xf32>,
    %c8 = arith.constant 8 : index
    %c0_136 = arith.constant 0 : index
    %c0_137 = arith.constant 0 : index
    %427 = vector.load %arg7[%c8, %c0_136, %c0_137] : memref<19x16x16xf32, #tpu.memory_space<vmem>>, vector<1x16x16xf32>
    %428 = vector.shape_cast %427 : vector<1x16x16xf32> to vector<16x16xf32>
    %429 = arith.addf %428, %81 : vector<16x16xf32>
    %c8_138 = arith.constant 8 : index
    %c0_139 = arith.constant 0 : index
    %c0_140 = arith.constant 0 : index
    %430 = vector.load %arg7[%c8_138, %c0_139, %c0_140] : memref<19x16x16xf32, #tpu.memory_space<vmem>>, vector<1x16x16xf32>
    %431 = vector.shape_cast %430 : vector<1x16x16xf32> to vector<16x16xf32>
    %432 = vector.shape_cast %429 : vector<16x16xf32> to vector<1x16x16xf32>
    tpu.vector_store %arg7[%c8_138, %c0_139, %c0_140], %432 {strides = array<i32>} : memref<19x16x16xf32, #tpu.memory_space<vmem>>, vector<1x16x16xf32>,
    %c9 = arith.constant 9 : index
    %c0_141 = arith.constant 0 : index
    %c0_142 = arith.constant 0 : index
    %433 = vector.load %arg7[%c9, %c0_141, %c0_142] : memref<19x16x16xf32, #tpu.memory_space<vmem>>, vector<1x16x16xf32>
    %434 = vector.shape_cast %433 : vector<1x16x16xf32> to vector<16x16xf32>
    %435 = arith.addf %434, %378 : vector<16x16xf32>
    %c9_143 = arith.constant 9 : index
    %c0_144 = arith.constant 0 : index
    %c0_145 = arith.constant 0 : index
    %436 = vector.load %arg7[%c9_143, %c0_144, %c0_145] : memref<19x16x16xf32, #tpu.memory_space<vmem>>, vector<1x16x16xf32>
    %437 = vector.shape_cast %436 : vector<1x16x16xf32> to vector<16x16xf32>
    %438 = vector.shape_cast %435 : vector<16x16xf32> to vector<1x16x16xf32>
    tpu.vector_store %arg7[%c9_143, %c0_144, %c0_145], %438 {strides = array<i32>} : memref<19x16x16xf32, #tpu.memory_space<vmem>>, vector<1x16x16xf32>,
    %c10 = arith.constant 10 : index
    %c0_146 = arith.constant 0 : index
    %c0_147 = arith.constant 0 : index
    %439 = vector.load %arg7[%c10, %c0_146, %c0_147] : memref<19x16x16xf32, #tpu.memory_space<vmem>>, vector<1x16x16xf32>
    %440 = vector.shape_cast %439 : vector<1x16x16xf32> to vector<16x16xf32>
    %441 = arith.addf %440, %155 : vector<16x16xf32>
    %c10_148 = arith.constant 10 : index
    %c0_149 = arith.constant 0 : index
    %c0_150 = arith.constant 0 : index
    %442 = vector.load %arg7[%c10_148, %c0_149, %c0_150] : memref<19x16x16xf32, #tpu.memory_space<vmem>>, vector<1x16x16xf32>
    %443 = vector.shape_cast %442 : vector<1x16x16xf32> to vector<16x16xf32>
    %444 = vector.shape_cast %441 : vector<16x16xf32> to vector<1x16x16xf32>
    tpu.vector_store %arg7[%c10_148, %c0_149, %c0_150], %444 {strides = array<i32>} : memref<19x16x16xf32, #tpu.memory_space<vmem>>, vector<1x16x16xf32>,
    %c11 = arith.constant 11 : index
    %c0_151 = arith.constant 0 : index
    %c0_152 = arith.constant 0 : index
    %445 = vector.load %arg7[%c11, %c0_151, %c0_152] : memref<19x16x16xf32, #tpu.memory_space<vmem>>, vector<1x16x16xf32>
    %446 = vector.shape_cast %445 : vector<1x16x16xf32> to vector<16x16xf32>
    %447 = arith.addf %446, %181 : vector<16x16xf32>
    %c11_153 = arith.constant 11 : index
    %c0_154 = arith.constant 0 : index
    %c0_155 = arith.constant 0 : index
    %448 = vector.load %arg7[%c11_153, %c0_154, %c0_155] : memref<19x16x16xf32, #tpu.memory_space<vmem>>, vector<1x16x16xf32>
    %449 = vector.shape_cast %448 : vector<1x16x16xf32> to vector<16x16xf32>
    %450 = vector.shape_cast %447 : vector<16x16xf32> to vector<1x16x16xf32>
    tpu.vector_store %arg7[%c11_153, %c0_154, %c0_155], %450 {strides = array<i32>} : memref<19x16x16xf32, #tpu.memory_space<vmem>>, vector<1x16x16xf32>,
    %c12 = arith.constant 12 : index
    %c0_156 = arith.constant 0 : index
    %c0_157 = arith.constant 0 : index
    %451 = vector.load %arg7[%c12, %c0_156, %c0_157] : memref<19x16x16xf32, #tpu.memory_space<vmem>>, vector<1x16x16xf32>
    %452 = vector.shape_cast %451 : vector<1x16x16xf32> to vector<16x16xf32>
    %453 = arith.addf %452, %167 : vector<16x16xf32>
    %c12_158 = arith.constant 12 : index
    %c0_159 = arith.constant 0 : index
    %c0_160 = arith.constant 0 : index
    %454 = vector.load %arg7[%c12_158, %c0_159, %c0_160] : memref<19x16x16xf32, #tpu.memory_space<vmem>>, vector<1x16x16xf32>
    %455 = vector.shape_cast %454 : vector<1x16x16xf32> to vector<16x16xf32>
    %456 = vector.shape_cast %453 : vector<16x16xf32> to vector<1x16x16xf32>
    tpu.vector_store %arg7[%c12_158, %c0_159, %c0_160], %456 {strides = array<i32>} : memref<19x16x16xf32, #tpu.memory_space<vmem>>, vector<1x16x16xf32>,
    %c13 = arith.constant 13 : index
    %c0_161 = arith.constant 0 : index
    %c0_162 = arith.constant 0 : index
    %457 = vector.load %arg7[%c13, %c0_161, %c0_162] : memref<19x16x16xf32, #tpu.memory_space<vmem>>, vector<1x16x16xf32>
    %458 = vector.shape_cast %457 : vector<1x16x16xf32> to vector<16x16xf32>
    %459 = arith.addf %458, %175 : vector<16x16xf32>
    %c13_163 = arith.constant 13 : index
    %c0_164 = arith.constant 0 : index
    %c0_165 = arith.constant 0 : index
    %460 = vector.load %arg7[%c13_163, %c0_164, %c0_165] : memref<19x16x16xf32, #tpu.memory_space<vmem>>, vector<1x16x16xf32>
    %461 = vector.shape_cast %460 : vector<1x16x16xf32> to vector<16x16xf32>
    %462 = vector.shape_cast %459 : vector<16x16xf32> to vector<1x16x16xf32>
    tpu.vector_store %arg7[%c13_163, %c0_164, %c0_165], %462 {strides = array<i32>} : memref<19x16x16xf32, #tpu.memory_space<vmem>>, vector<1x16x16xf32>,
    %c14 = arith.constant 14 : index
    %c0_166 = arith.constant 0 : index
    %c0_167 = arith.constant 0 : index
    %463 = vector.load %arg7[%c14, %c0_166, %c0_167] : memref<19x16x16xf32, #tpu.memory_space<vmem>>, vector<1x16x16xf32>
    %464 = vector.shape_cast %463 : vector<1x16x16xf32> to vector<16x16xf32>
    %465 = arith.addf %464, %197 : vector<16x16xf32>
    %c14_168 = arith.constant 14 : index
    %c0_169 = arith.constant 0 : index
    %c0_170 = arith.constant 0 : index
    %466 = vector.load %arg7[%c14_168, %c0_169, %c0_170] : memref<19x16x16xf32, #tpu.memory_space<vmem>>, vector<1x16x16xf32>
    %467 = vector.shape_cast %466 : vector<1x16x16xf32> to vector<16x16xf32>
    %468 = vector.shape_cast %465 : vector<16x16xf32> to vector<1x16x16xf32>
    tpu.vector_store %arg7[%c14_168, %c0_169, %c0_170], %468 {strides = array<i32>} : memref<19x16x16xf32, #tpu.memory_space<vmem>>, vector<1x16x16xf32>,
    %c15 = arith.constant 15 : index
    %c0_171 = arith.constant 0 : index
    %c0_172 = arith.constant 0 : index
    %469 = vector.load %arg7[%c15, %c0_171, %c0_172] : memref<19x16x16xf32, #tpu.memory_space<vmem>>, vector<1x16x16xf32>
    %470 = vector.shape_cast %469 : vector<1x16x16xf32> to vector<16x16xf32>
    %471 = arith.addf %470, %215 : vector<16x16xf32>
    %c15_173 = arith.constant 15 : index
    %c0_174 = arith.constant 0 : index
    %c0_175 = arith.constant 0 : index
    %472 = vector.load %arg7[%c15_173, %c0_174, %c0_175] : memref<19x16x16xf32, #tpu.memory_space<vmem>>, vector<1x16x16xf32>
    %473 = vector.shape_cast %472 : vector<1x16x16xf32> to vector<16x16xf32>
    %474 = vector.shape_cast %471 : vector<16x16xf32> to vector<1x16x16xf32>
    tpu.vector_store %arg7[%c15_173, %c0_174, %c0_175], %474 {strides = array<i32>} : memref<19x16x16xf32, #tpu.memory_space<vmem>>, vector<1x16x16xf32>,
    %c16 = arith.constant 16 : index
    %c0_176 = arith.constant 0 : index
    %c0_177 = arith.constant 0 : index
    %475 = vector.load %arg7[%c16, %c0_176, %c0_177] : memref<19x16x16xf32, #tpu.memory_space<vmem>>, vector<1x16x16xf32>
    %476 = vector.shape_cast %475 : vector<1x16x16xf32> to vector<16x16xf32>
    %477 = arith.addf %476, %179 : vector<16x16xf32>
    %c16_178 = arith.constant 16 : index
    %c0_179 = arith.constant 0 : index
    %c0_180 = arith.constant 0 : index
    %478 = vector.load %arg7[%c16_178, %c0_179, %c0_180] : memref<19x16x16xf32, #tpu.memory_space<vmem>>, vector<1x16x16xf32>
    %479 = vector.shape_cast %478 : vector<1x16x16xf32> to vector<16x16xf32>
    %480 = vector.shape_cast %477 : vector<16x16xf32> to vector<1x16x16xf32>
    tpu.vector_store %arg7[%c16_178, %c0_179, %c0_180], %480 {strides = array<i32>} : memref<19x16x16xf32, #tpu.memory_space<vmem>>, vector<1x16x16xf32>,
    %c17 = arith.constant 17 : index
    %c0_181 = arith.constant 0 : index
    %c0_182 = arith.constant 0 : index
    %481 = vector.load %arg7[%c17, %c0_181, %c0_182] : memref<19x16x16xf32, #tpu.memory_space<vmem>>, vector<1x16x16xf32>
    %482 = vector.shape_cast %481 : vector<1x16x16xf32> to vector<16x16xf32>
    %483 = arith.addf %482, %291 : vector<16x16xf32>
    %c17_183 = arith.constant 17 : index
    %c0_184 = arith.constant 0 : index
    %c0_185 = arith.constant 0 : index
    %484 = vector.load %arg7[%c17_183, %c0_184, %c0_185] : memref<19x16x16xf32, #tpu.memory_space<vmem>>, vector<1x16x16xf32>
    %485 = vector.shape_cast %484 : vector<1x16x16xf32> to vector<16x16xf32>
    %486 = vector.shape_cast %483 : vector<16x16xf32> to vector<1x16x16xf32>
    tpu.vector_store %arg7[%c17_183, %c0_184, %c0_185], %486 {strides = array<i32>} : memref<19x16x16xf32, #tpu.memory_space<vmem>>, vector<1x16x16xf32>,
    %c18 = arith.constant 18 : index
    %c0_186 = arith.constant 0 : index
    %c0_187 = arith.constant 0 : index
    %487 = vector.load %arg7[%c18, %c0_186, %c0_187] : memref<19x16x16xf32, #tpu.memory_space<vmem>>, vector<1x16x16xf32>
    %488 = vector.shape_cast %487 : vector<1x16x16xf32> to vector<16x16xf32>
    %489 = arith.addf %488, %219 : vector<16x16xf32>
    %c18_188 = arith.constant 18 : index
    %c0_189 = arith.constant 0 : index
    %c0_190 = arith.constant 0 : index
    %490 = vector.load %arg7[%c18_188, %c0_189, %c0_190] : memref<19x16x16xf32, #tpu.memory_space<vmem>>, vector<1x16x16xf32>
    %491 = vector.shape_cast %490 : vector<1x16x16xf32> to vector<16x16xf32>
    %492 = vector.shape_cast %489 : vector<16x16xf32> to vector<1x16x16xf32>
    tpu.vector_store %arg7[%c18_188, %c0_189, %c0_190], %492 {strides = array<i32>} : memref<19x16x16xf32, #tpu.memory_space<vmem>>, vector<1x16x16xf32>,
    %493 = arith.extui %5 : i1 to i32
    %c0_i32_191 = arith.constant 0 : i32
    %494 = arith.cmpi ne, %493, %c0_i32_191 : i32
    scf.if %494 {
      %c0_192 = arith.constant 0 : index
      %c0_193 = arith.constant 0 : index
      %c0_194 = arith.constant 0 : index
      %495 = vector.load %arg7[%c0_192, %c0_193, %c0_194] : memref<19x16x16xf32, #tpu.memory_space<vmem>>, vector<1x16x16xf32>
      %496 = vector.shape_cast %495 : vector<1x16x16xf32> to vector<16x16xf32>
      %497 = vector.shape_cast %496 : vector<16x16xf32> to vector<1x16x16xf32>
      %cst_195 = arith.constant dense<0.000000e+00> : vector<1xf32>
      %498 = vector.multi_reduction <add>, %497, %cst_195 [1, 2] : vector<1x16x16xf32> to vector<1xf32>
      %499 = vector.shape_cast %498 : vector<1xf32> to vector<1x1x1xf32>
      %500 = vector.extract %499[0, 0, 0] : f32 from vector<1x1x1xf32>
      %c0_196 = arith.constant 0 : index
      %501 = memref.load %arg6[%c0_196] : memref<19xf32, #tpu.memory_space<smem>>
      memref.store %500, %arg6[%c0_196] : memref<19xf32, #tpu.memory_space<smem>>
      %c1_197 = arith.constant 1 : index
      %c0_198 = arith.constant 0 : index
      %c0_199 = arith.constant 0 : index
      %502 = vector.load %arg7[%c1_197, %c0_198, %c0_199] : memref<19x16x16xf32, #tpu.memory_space<vmem>>, vector<1x16x16xf32>
      %503 = vector.shape_cast %502 : vector<1x16x16xf32> to vector<16x16xf32>
      %504 = vector.shape_cast %503 : vector<16x16xf32> to vector<1x16x16xf32>
      %cst_200 = arith.constant dense<0.000000e+00> : vector<1xf32>
      %505 = vector.multi_reduction <add>, %504, %cst_200 [1, 2] : vector<1x16x16xf32> to vector<1xf32>
      %506 = vector.shape_cast %505 : vector<1xf32> to vector<1x1x1xf32>
      %507 = vector.extract %506[0, 0, 0] : f32 from vector<1x1x1xf32>
      %c1_201 = arith.constant 1 : index
      %508 = memref.load %arg6[%c1_201] : memref<19xf32, #tpu.memory_space<smem>>
      memref.store %507, %arg6[%c1_201] : memref<19xf32, #tpu.memory_space<smem>>
      %c2_202 = arith.constant 2 : index
      %c0_203 = arith.constant 0 : index
      %c0_204 = arith.constant 0 : index
      %509 = vector.load %arg7[%c2_202, %c0_203, %c0_204] : memref<19x16x16xf32, #tpu.memory_space<vmem>>, vector<1x16x16xf32>
      %510 = vector.shape_cast %509 : vector<1x16x16xf32> to vector<16x16xf32>
      %511 = vector.shape_cast %510 : vector<16x16xf32> to vector<1x16x16xf32>
      %cst_205 = arith.constant dense<0.000000e+00> : vector<1xf32>
      %512 = vector.multi_reduction <add>, %511, %cst_205 [1, 2] : vector<1x16x16xf32> to vector<1xf32>
      %513 = vector.shape_cast %512 : vector<1xf32> to vector<1x1x1xf32>
      %514 = vector.extract %513[0, 0, 0] : f32 from vector<1x1x1xf32>
      %c2_206 = arith.constant 2 : index
      %515 = memref.load %arg6[%c2_206] : memref<19xf32, #tpu.memory_space<smem>>
      memref.store %514, %arg6[%c2_206] : memref<19xf32, #tpu.memory_space<smem>>
      %c3_207 = arith.constant 3 : index
      %c0_208 = arith.constant 0 : index
      %c0_209 = arith.constant 0 : index
      %516 = vector.load %arg7[%c3_207, %c0_208, %c0_209] : memref<19x16x16xf32, #tpu.memory_space<vmem>>, vector<1x16x16xf32>
      %517 = vector.shape_cast %516 : vector<1x16x16xf32> to vector<16x16xf32>
      %518 = vector.shape_cast %517 : vector<16x16xf32> to vector<1x16x16xf32>
      %cst_210 = arith.constant dense<0.000000e+00> : vector<1xf32>
      %519 = vector.multi_reduction <add>, %518, %cst_210 [1, 2] : vector<1x16x16xf32> to vector<1xf32>
      %520 = vector.shape_cast %519 : vector<1xf32> to vector<1x1x1xf32>
      %521 = vector.extract %520[0, 0, 0] : f32 from vector<1x1x1xf32>
      %c3_211 = arith.constant 3 : index
      %522 = memref.load %arg6[%c3_211] : memref<19xf32, #tpu.memory_space<smem>>
      memref.store %521, %arg6[%c3_211] : memref<19xf32, #tpu.memory_space<smem>>
      %c4_212 = arith.constant 4 : index
      %c0_213 = arith.constant 0 : index
      %c0_214 = arith.constant 0 : index
      %523 = vector.load %arg7[%c4_212, %c0_213, %c0_214] : memref<19x16x16xf32, #tpu.memory_space<vmem>>, vector<1x16x16xf32>
      %524 = vector.shape_cast %523 : vector<1x16x16xf32> to vector<16x16xf32>
      %525 = vector.shape_cast %524 : vector<16x16xf32> to vector<1x16x16xf32>
      %cst_215 = arith.constant dense<0.000000e+00> : vector<1xf32>
      %526 = vector.multi_reduction <add>, %525, %cst_215 [1, 2] : vector<1x16x16xf32> to vector<1xf32>
      %527 = vector.shape_cast %526 : vector<1xf32> to vector<1x1x1xf32>
      %528 = vector.extract %527[0, 0, 0] : f32 from vector<1x1x1xf32>
      %c4_216 = arith.constant 4 : index
      %529 = memref.load %arg6[%c4_216] : memref<19xf32, #tpu.memory_space<smem>>
      memref.store %528, %arg6[%c4_216] : memref<19xf32, #tpu.memory_space<smem>>
      %c5_217 = arith.constant 5 : index
      %c0_218 = arith.constant 0 : index
      %c0_219 = arith.constant 0 : index
      %530 = vector.load %arg7[%c5_217, %c0_218, %c0_219] : memref<19x16x16xf32, #tpu.memory_space<vmem>>, vector<1x16x16xf32>
      %531 = vector.shape_cast %530 : vector<1x16x16xf32> to vector<16x16xf32>
      %532 = vector.shape_cast %531 : vector<16x16xf32> to vector<1x16x16xf32>
      %cst_220 = arith.constant dense<0.000000e+00> : vector<1xf32>
      %533 = vector.multi_reduction <add>, %532, %cst_220 [1, 2] : vector<1x16x16xf32> to vector<1xf32>
      %534 = vector.shape_cast %533 : vector<1xf32> to vector<1x1x1xf32>
      %535 = vector.extract %534[0, 0, 0] : f32 from vector<1x1x1xf32>
      %c5_221 = arith.constant 5 : index
      %536 = memref.load %arg6[%c5_221] : memref<19xf32, #tpu.memory_space<smem>>
      memref.store %535, %arg6[%c5_221] : memref<19xf32, #tpu.memory_space<smem>>
      %c6_222 = arith.constant 6 : index
      %c0_223 = arith.constant 0 : index
      %c0_224 = arith.constant 0 : index
      %537 = vector.load %arg7[%c6_222, %c0_223, %c0_224] : memref<19x16x16xf32, #tpu.memory_space<vmem>>, vector<1x16x16xf32>
      %538 = vector.shape_cast %537 : vector<1x16x16xf32> to vector<16x16xf32>
      %539 = vector.shape_cast %538 : vector<16x16xf32> to vector<1x16x16xf32>
      %cst_225 = arith.constant dense<0.000000e+00> : vector<1xf32>
      %540 = vector.multi_reduction <add>, %539, %cst_225 [1, 2] : vector<1x16x16xf32> to vector<1xf32>
      %541 = vector.shape_cast %540 : vector<1xf32> to vector<1x1x1xf32>
      %542 = vector.extract %541[0, 0, 0] : f32 from vector<1x1x1xf32>
      %c6_226 = arith.constant 6 : index
      %543 = memref.load %arg6[%c6_226] : memref<19xf32, #tpu.memory_space<smem>>
      memref.store %542, %arg6[%c6_226] : memref<19xf32, #tpu.memory_space<smem>>
      %c7_227 = arith.constant 7 : index
      %c0_228 = arith.constant 0 : index
      %c0_229 = arith.constant 0 : index
      %544 = vector.load %arg7[%c7_227, %c0_228, %c0_229] : memref<19x16x16xf32, #tpu.memory_space<vmem>>, vector<1x16x16xf32>
      %545 = vector.shape_cast %544 : vector<1x16x16xf32> to vector<16x16xf32>
      %546 = vector.shape_cast %545 : vector<16x16xf32> to vector<1x16x16xf32>
      %cst_230 = arith.constant dense<0.000000e+00> : vector<1xf32>
      %547 = vector.multi_reduction <add>, %546, %cst_230 [1, 2] : vector<1x16x16xf32> to vector<1xf32>
      %548 = vector.shape_cast %547 : vector<1xf32> to vector<1x1x1xf32>
      %549 = vector.extract %548[0, 0, 0] : f32 from vector<1x1x1xf32>
      %c7_231 = arith.constant 7 : index
      %550 = memref.load %arg6[%c7_231] : memref<19xf32, #tpu.memory_space<smem>>
      memref.store %549, %arg6[%c7_231] : memref<19xf32, #tpu.memory_space<smem>>
      %c8_232 = arith.constant 8 : index
      %c0_233 = arith.constant 0 : index
      %c0_234 = arith.constant 0 : index
      %551 = vector.load %arg7[%c8_232, %c0_233, %c0_234] : memref<19x16x16xf32, #tpu.memory_space<vmem>>, vector<1x16x16xf32>
      %552 = vector.shape_cast %551 : vector<1x16x16xf32> to vector<16x16xf32>
      %553 = vector.shape_cast %552 : vector<16x16xf32> to vector<1x16x16xf32>
      %cst_235 = arith.constant dense<0.000000e+00> : vector<1xf32>
      %554 = vector.multi_reduction <add>, %553, %cst_235 [1, 2] : vector<1x16x16xf32> to vector<1xf32>
      %555 = vector.shape_cast %554 : vector<1xf32> to vector<1x1x1xf32>
      %556 = vector.extract %555[0, 0, 0] : f32 from vector<1x1x1xf32>
      %c8_236 = arith.constant 8 : index
      %557 = memref.load %arg6[%c8_236] : memref<19xf32, #tpu.memory_space<smem>>
      memref.store %556, %arg6[%c8_236] : memref<19xf32, #tpu.memory_space<smem>>
      %c9_237 = arith.constant 9 : index
      %c0_238 = arith.constant 0 : index
      %c0_239 = arith.constant 0 : index
      %558 = vector.load %arg7[%c9_237, %c0_238, %c0_239] : memref<19x16x16xf32, #tpu.memory_space<vmem>>, vector<1x16x16xf32>
      %559 = vector.shape_cast %558 : vector<1x16x16xf32> to vector<16x16xf32>
      %560 = vector.shape_cast %559 : vector<16x16xf32> to vector<1x16x16xf32>
      %cst_240 = arith.constant dense<0.000000e+00> : vector<1xf32>
      %561 = vector.multi_reduction <add>, %560, %cst_240 [1, 2] : vector<1x16x16xf32> to vector<1xf32>
      %562 = vector.shape_cast %561 : vector<1xf32> to vector<1x1x1xf32>
      %563 = vector.extract %562[0, 0, 0] : f32 from vector<1x1x1xf32>
      %c9_241 = arith.constant 9 : index
      %564 = memref.load %arg6[%c9_241] : memref<19xf32, #tpu.memory_space<smem>>
      memref.store %563, %arg6[%c9_241] : memref<19xf32, #tpu.memory_space<smem>>
      %c10_242 = arith.constant 10 : index
      %c0_243 = arith.constant 0 : index
      %c0_244 = arith.constant 0 : index
      %565 = vector.load %arg7[%c10_242, %c0_243, %c0_244] : memref<19x16x16xf32, #tpu.memory_space<vmem>>, vector<1x16x16xf32>
      %566 = vector.shape_cast %565 : vector<1x16x16xf32> to vector<16x16xf32>
      %567 = vector.shape_cast %566 : vector<16x16xf32> to vector<1x16x16xf32>
      %cst_245 = arith.constant dense<0.000000e+00> : vector<1xf32>
      %568 = vector.multi_reduction <add>, %567, %cst_245 [1, 2] : vector<1x16x16xf32> to vector<1xf32>
      %569 = vector.shape_cast %568 : vector<1xf32> to vector<1x1x1xf32>
      %570 = vector.extract %569[0, 0, 0] : f32 from vector<1x1x1xf32>
      %c10_246 = arith.constant 10 : index
      %571 = memref.load %arg6[%c10_246] : memref<19xf32, #tpu.memory_space<smem>>
      memref.store %570, %arg6[%c10_246] : memref<19xf32, #tpu.memory_space<smem>>
      %c11_247 = arith.constant 11 : index
      %c0_248 = arith.constant 0 : index
      %c0_249 = arith.constant 0 : index
      %572 = vector.load %arg7[%c11_247, %c0_248, %c0_249] : memref<19x16x16xf32, #tpu.memory_space<vmem>>, vector<1x16x16xf32>
      %573 = vector.shape_cast %572 : vector<1x16x16xf32> to vector<16x16xf32>
      %574 = vector.shape_cast %573 : vector<16x16xf32> to vector<1x16x16xf32>
      %cst_250 = arith.constant dense<0.000000e+00> : vector<1xf32>
      %575 = vector.multi_reduction <add>, %574, %cst_250 [1, 2] : vector<1x16x16xf32> to vector<1xf32>
      %576 = vector.shape_cast %575 : vector<1xf32> to vector<1x1x1xf32>
      %577 = vector.extract %576[0, 0, 0] : f32 from vector<1x1x1xf32>
      %c11_251 = arith.constant 11 : index
      %578 = memref.load %arg6[%c11_251] : memref<19xf32, #tpu.memory_space<smem>>
      memref.store %577, %arg6[%c11_251] : memref<19xf32, #tpu.memory_space<smem>>
      %c12_252 = arith.constant 12 : index
      %c0_253 = arith.constant 0 : index
      %c0_254 = arith.constant 0 : index
      %579 = vector.load %arg7[%c12_252, %c0_253, %c0_254] : memref<19x16x16xf32, #tpu.memory_space<vmem>>, vector<1x16x16xf32>
      %580 = vector.shape_cast %579 : vector<1x16x16xf32> to vector<16x16xf32>
      %581 = vector.shape_cast %580 : vector<16x16xf32> to vector<1x16x16xf32>
      %cst_255 = arith.constant dense<0.000000e+00> : vector<1xf32>
      %582 = vector.multi_reduction <add>, %581, %cst_255 [1, 2] : vector<1x16x16xf32> to vector<1xf32>
      %583 = vector.shape_cast %582 : vector<1xf32> to vector<1x1x1xf32>
      %584 = vector.extract %583[0, 0, 0] : f32 from vector<1x1x1xf32>
      %c12_256 = arith.constant 12 : index
      %585 = memref.load %arg6[%c12_256] : memref<19xf32, #tpu.memory_space<smem>>
      memref.store %584, %arg6[%c12_256] : memref<19xf32, #tpu.memory_space<smem>>
      %c13_257 = arith.constant 13 : index
      %c0_258 = arith.constant 0 : index
      %c0_259 = arith.constant 0 : index
      %586 = vector.load %arg7[%c13_257, %c0_258, %c0_259] : memref<19x16x16xf32, #tpu.memory_space<vmem>>, vector<1x16x16xf32>
      %587 = vector.shape_cast %586 : vector<1x16x16xf32> to vector<16x16xf32>
      %588 = vector.shape_cast %587 : vector<16x16xf32> to vector<1x16x16xf32>
      %cst_260 = arith.constant dense<0.000000e+00> : vector<1xf32>
      %589 = vector.multi_reduction <add>, %588, %cst_260 [1, 2] : vector<1x16x16xf32> to vector<1xf32>
      %590 = vector.shape_cast %589 : vector<1xf32> to vector<1x1x1xf32>
      %591 = vector.extract %590[0, 0, 0] : f32 from vector<1x1x1xf32>
      %c13_261 = arith.constant 13 : index
      %592 = memref.load %arg6[%c13_261] : memref<19xf32, #tpu.memory_space<smem>>
      memref.store %591, %arg6[%c13_261] : memref<19xf32, #tpu.memory_space<smem>>
      %c14_262 = arith.constant 14 : index
      %c0_263 = arith.constant 0 : index
      %c0_264 = arith.constant 0 : index
      %593 = vector.load %arg7[%c14_262, %c0_263, %c0_264] : memref<19x16x16xf32, #tpu.memory_space<vmem>>, vector<1x16x16xf32>
      %594 = vector.shape_cast %593 : vector<1x16x16xf32> to vector<16x16xf32>
      %595 = vector.shape_cast %594 : vector<16x16xf32> to vector<1x16x16xf32>
      %cst_265 = arith.constant dense<0.000000e+00> : vector<1xf32>
      %596 = vector.multi_reduction <add>, %595, %cst_265 [1, 2] : vector<1x16x16xf32> to vector<1xf32>
      %597 = vector.shape_cast %596 : vector<1xf32> to vector<1x1x1xf32>
      %598 = vector.extract %597[0, 0, 0] : f32 from vector<1x1x1xf32>
      %c14_266 = arith.constant 14 : index
      %599 = memref.load %arg6[%c14_266] : memref<19xf32, #tpu.memory_space<smem>>
      memref.store %598, %arg6[%c14_266] : memref<19xf32, #tpu.memory_space<smem>>
      %c15_267 = arith.constant 15 : index
      %c0_268 = arith.constant 0 : index
      %c0_269 = arith.constant 0 : index
      %600 = vector.load %arg7[%c15_267, %c0_268, %c0_269] : memref<19x16x16xf32, #tpu.memory_space<vmem>>, vector<1x16x16xf32>
      %601 = vector.shape_cast %600 : vector<1x16x16xf32> to vector<16x16xf32>
      %602 = vector.shape_cast %601 : vector<16x16xf32> to vector<1x16x16xf32>
      %cst_270 = arith.constant dense<0.000000e+00> : vector<1xf32>
      %603 = vector.multi_reduction <add>, %602, %cst_270 [1, 2] : vector<1x16x16xf32> to vector<1xf32>
      %604 = vector.shape_cast %603 : vector<1xf32> to vector<1x1x1xf32>
      %605 = vector.extract %604[0, 0, 0] : f32 from vector<1x1x1xf32>
      %c15_271 = arith.constant 15 : index
      %606 = memref.load %arg6[%c15_271] : memref<19xf32, #tpu.memory_space<smem>>
      memref.store %605, %arg6[%c15_271] : memref<19xf32, #tpu.memory_space<smem>>
      %c16_272 = arith.constant 16 : index
      %c0_273 = arith.constant 0 : index
      %c0_274 = arith.constant 0 : index
      %607 = vector.load %arg7[%c16_272, %c0_273, %c0_274] : memref<19x16x16xf32, #tpu.memory_space<vmem>>, vector<1x16x16xf32>
      %608 = vector.shape_cast %607 : vector<1x16x16xf32> to vector<16x16xf32>
      %609 = vector.shape_cast %608 : vector<16x16xf32> to vector<1x16x16xf32>
      %cst_275 = arith.constant dense<0.000000e+00> : vector<1xf32>
      %610 = vector.multi_reduction <add>, %609, %cst_275 [1, 2] : vector<1x16x16xf32> to vector<1xf32>
      %611 = vector.shape_cast %610 : vector<1xf32> to vector<1x1x1xf32>
      %612 = vector.extract %611[0, 0, 0] : f32 from vector<1x1x1xf32>
      %c16_276 = arith.constant 16 : index
      %613 = memref.load %arg6[%c16_276] : memref<19xf32, #tpu.memory_space<smem>>
      memref.store %612, %arg6[%c16_276] : memref<19xf32, #tpu.memory_space<smem>>
      %c17_277 = arith.constant 17 : index
      %c0_278 = arith.constant 0 : index
      %c0_279 = arith.constant 0 : index
      %614 = vector.load %arg7[%c17_277, %c0_278, %c0_279] : memref<19x16x16xf32, #tpu.memory_space<vmem>>, vector<1x16x16xf32>
      %615 = vector.shape_cast %614 : vector<1x16x16xf32> to vector<16x16xf32>
      %616 = vector.shape_cast %615 : vector<16x16xf32> to vector<1x16x16xf32>
      %cst_280 = arith.constant dense<0.000000e+00> : vector<1xf32>
      %617 = vector.multi_reduction <add>, %616, %cst_280 [1, 2] : vector<1x16x16xf32> to vector<1xf32>
      %618 = vector.shape_cast %617 : vector<1xf32> to vector<1x1x1xf32>
      %619 = vector.extract %618[0, 0, 0] : f32 from vector<1x1x1xf32>
      %c17_281 = arith.constant 17 : index
      %620 = memref.load %arg6[%c17_281] : memref<19xf32, #tpu.memory_space<smem>>
      memref.store %619, %arg6[%c17_281] : memref<19xf32, #tpu.memory_space<smem>>
      %c18_282 = arith.constant 18 : index
      %c0_283 = arith.constant 0 : index
      %c0_284 = arith.constant 0 : index
      %621 = vector.load %arg7[%c18_282, %c0_283, %c0_284] : memref<19x16x16xf32, #tpu.memory_space<vmem>>, vector<1x16x16xf32>
      %622 = vector.shape_cast %621 : vector<1x16x16xf32> to vector<16x16xf32>
      %623 = vector.shape_cast %622 : vector<16x16xf32> to vector<1x16x16xf32>
      %cst_285 = arith.constant dense<0.000000e+00> : vector<1xf32>
      %624 = vector.multi_reduction <add>, %623, %cst_285 [1, 2] : vector<1x16x16xf32> to vector<1xf32>
      %625 = vector.shape_cast %624 : vector<1xf32> to vector<1x1x1xf32>
      %626 = vector.extract %625[0, 0, 0] : f32 from vector<1x1x1xf32>
      %c18_286 = arith.constant 18 : index
      %627 = memref.load %arg6[%c18_286] : memref<19xf32, #tpu.memory_space<smem>>
      memref.store %626, %arg6[%c18_286] : memref<19xf32, #tpu.memory_space<smem>>
    } else {
    }
    return
  }
  func.func @transform_0(%arg0: i32, %arg1: i32) -> (i32, i32, i32, i32) {
    %c0_i32 = arith.constant 0 : i32
    %c0_i32_0 = arith.constant 0 : i32
    %c0_i32_1 = arith.constant 0 : i32
    return %arg0, %c0_i32, %arg1, %c0_i32_0 : i32, i32, i32, i32
  }
  func.func @transform_1(%arg0: i32, %arg1: i32) -> (i32, i32, i32, i32) {
    %c0_i32 = arith.constant 0 : i32
    %c0_i32_0 = arith.constant 0 : i32
    %c0_i32_1 = arith.constant 0 : i32
    return %arg0, %c0_i32, %arg1, %c0_i32_0 : i32, i32, i32, i32
  }
  func.func @transform_2(%arg0: i32, %arg1: i32) -> (i32, i32, i32, i32) {
    %c0_i32 = arith.constant 0 : i32
    %c0_i32_0 = arith.constant 0 : i32
    %c0_i32_1 = arith.constant 0 : i32
    return %arg0, %c0_i32, %arg1, %c0_i32_0 : i32, i32, i32, i32
  }
  func.func @transform_3(%arg0: i32, %arg1: i32) -> (i32, i32, i32, i32) {
    %c0_i32 = arith.constant 0 : i32
    %c0_i32_0 = arith.constant 0 : i32
    %c0_i32_1 = arith.constant 0 : i32
    return %arg0, %c0_i32, %arg1, %c0_i32_0 : i32, i32, i32, i32
  }
  func.func @transform_4(%arg0: i32, %arg1: i32) -> i32 {
    %c0_i32 = arith.constant 0 : i32
    %c0_i32_0 = arith.constant 0 : i32
    return %c0_i32 : i32
  }
}

</mosaic_0001>

<llo_original>
// kernel: loss_forward.1
$region0: #{loss_forward.1}
  #allocation0 [shape = 'u32[]', space=smem, size = 0x4, offset = 0x4, fixed_abs, tag = 'smem constant byte address 0x4 - core index']
  #allocation1 [shape = 'u32[144,128]{1,0:T(1,128)}', space=vmem, size = 0x12000, scoped, tag = 'internal scratch']
  #allocation2 [shape = 'f32[19,16,16]{2,1,0:T(8,128)}', space=vmem, size = 0x26000, scoped, tag = 'scratch operand']
  %s0 = inlined_call_operand.hbm [shape: f32[2,7,16,16], index: 0, kind: input, shape index: {}]
  %s1 = inlined_call_operand.hbm [shape: f32[2,7,16,16], index: 1, kind: input, shape index: {}]
  %s2 = inlined_call_operand.hbm [shape: f32[2,7,16,16], index: 2, kind: input, shape index: {}]
  %s3 = inlined_call_operand.hbm [shape: f32[2,7,16,16], index: 3, kind: input, shape index: {}]
  %s4 = inlined_call_operand.vmem [shape: f32[19], index: 4, kind: output, shape index: {}]
  %s5 = sld [smem:[#allocation0]]
  $region73: #{loss_forward.1} parent=0
    _
  %s7 = ssub.s32 1, %s5
  %s8 = scalar_select 0, %s7, %s5
  $region1: #{loss_forward.1} parent=0
    #allocation3 [shape = 'u8[114688]{0}', space=vmem, size = 0x1c000, scoped, tag = 'input window, operand 0']
    #allocation4 [shape = 's32[2]{0}', space=sflag, size = 0x8, scoped, tag = 'scoped memory for loss_forward.1']
    #allocation5 [shape = 's32[2]{0}', space=sflag, size = 0x8, scoped, tag = 'scoped memory for loss_forward.1']
    #allocation6 [shape = 'u8[114688]{0}', space=vmem, size = 0x1c000, scoped, tag = 'input window, operand 1']
    #allocation7 [shape = 's32[2]{0}', space=sflag, size = 0x8, scoped, tag = 'scoped memory for loss_forward.1']
    #allocation8 [shape = 'u8[114688]{0}', space=vmem, size = 0x1c000, scoped, tag = 'input window, operand 2']
    #allocation9 [shape = 'u8[114688]{0}', space=vmem, size = 0x1c000, scoped, tag = 'input window, operand 3']
    #allocation10 [shape = 's32[2]{0}', space=sflag, size = 0x8, scoped, tag = 'scoped memory for loss_forward.1']
    #allocation11 [shape = 'u8[512]{0}', space=smem, size = 0x200, scoped, tag = 'output window, operand 0, single buffered']
    %9 = vsyncpa [#allocation4], 0
    %s10 = scalar_lea.sflag [#allocation4], 1
    %11 = vsyncpa %s10, 0
    %12 = vsyncpa [#allocation7], 0
    %s13 = scalar_lea.sflag [#allocation7], 1
    %14 = vsyncpa %s13, 0
    %15 = vsyncpa [#allocation10], 0
    %s16 = scalar_lea.sflag [#allocation10], 1
    %17 = vsyncpa %s16, 0
    %18 = vsyncpa [#allocation5], 0
    loop: start=0, step=1, limit=4
    $region2: #{loss_forward.1} parent=1 // loop_pre_header
      _
    $region3: #{loss_forward.1} parent=1 // loop_header
      %s20 = sphi 0, %s24
      %p21 = scmp.ge.s32.totalorder %s20, 4
      %s27 = sphi 0, %s39
      %s28 = sphi 0, %s35
      %s29 = sphi 0, %s27
      %s30 = sphi 0, %s28
      %s31 = sphi 0, %s29
      %s32 = sphi 0, %s30
      %s44 = sphi 0, %s46
      %s47 = sphi 0, %s44
      %s48 = sphi 0, %s47
      %s64 = sphi 0, %s48
      %s72 = sphi 0, %s74
      %s75 = sphi 0, %s72
      %s76 = sphi 0, %s75
      %s92 = sphi 0, %s76
      %s100 = sphi 0, %s102
      %s103 = sphi 0, %s100
      %s104 = sphi 0, %s103
      %s120 = sphi 0, %s104
      %s128 = sphi 0, %s130
      %s131 = sphi 0, %s128
      %s132 = sphi 0, %s131
      %s148 = sphi 0, %s132
      %s152 = sphi 0, %s152
      %s154 = sphi 0, %s152
      %s155 = sphi 0, %s154
      %s169 = sphi 0, %s155
    $region4: #{loss_forward.1} parent=1 // loop_header_branch
      %23 = sbr.rel (%p21) target = $region8
    $region5: #{loss_forward.1} parent=1 // loop_body
      %s25 = ssub.s32 %s20, 1
      %s26 = ssub.s32 %s20, 2
      %s33 = sadd.s32 1, %s28
      %p34 = scmp.ge.s32.totalorder %s33, 1
      %s35 = scalar_select %p34, 0, %s33
      %s36 = sadd.s32 1, %s27
      %s37 = scalar_select %p34, %s36, %s27
      %p38 = scmp.ge.s32.totalorder %s37, 2
      %s39 = scalar_select %p38, 0, %s37
      %s40 = ssub.s32 %s27, %s39
      %s41 = ssub.s32 %s28, %s35
      %s42 = sor.u32 %s40, %s41
      %p43 = scmp.eq.s32.totalorder %s42, 0
      %s45 = sadd.s32 %s44, 1
      %s46 = scalar_select %p43, %s44, %s45
      %p49 = pneg %p43
      %p50 = scmp.eq.s32.totalorder %s20, 1
      %p51 = por %p49, %p50
      %p52 = scmp.ne.s32.totalorder %s44, %s47
      %p53 = scmp.eq.s32.totalorder %s20, 0
      %p54 = por %p52, %p53
      %p55 = scmp.ne.s32.totalorder %s44, %s47
      %p56 = scmp.eq.s32.totalorder %s25, 1
      %p57 = por %p55, %p56
      %p58 = scmp.ne.s32.totalorder %s47, %s48
      %p59 = scmp.eq.s32.totalorder %s25, 0
      %p60 = por %p58, %p59
      %p61 = scmp.ne.s32.totalorder %s47, %s48
      %p62 = scmp.eq.s32.totalorder %s26, 1
      %p63 = por %p61, %p62
      %p65 = scmp.ne.s32.totalorder %s48, %s64
      %p66 = scmp.eq.s32.totalorder %s26, 0
      %p67 = por %p65, %p66
      %s68 = ssub.s32 %s27, %s39
      %s69 = ssub.s32 %s28, %s35
      %s70 = sor.u32 %s68, %s69
      %p71 = scmp.eq.s32.totalorder %s70, 0
      %s73 = sadd.s32 %s72, 1
      %s74 = scalar_select %p71, %s72, %s73
      %p77 = pneg %p71
      %p78 = scmp.eq.s32.totalorder %s20, 1
      %p79 = por %p77, %p78
      %p80 = scmp.ne.s32.totalorder %s72, %s75
      %p81 = scmp.eq.s32.totalorder %s20, 0
      %p82 = por %p80, %p81
      %p83 = scmp.ne.s32.totalorder %s72, %s75
      %p84 = scmp.eq.s32.totalorder %s25, 1
      %p85 = por %p83, %p84
      %p86 = scmp.ne.s32.totalorder %s75, %s76
      %p87 = scmp.eq.s32.totalorder %s25, 0
      %p88 = por %p86, %p87
      %p89 = scmp.ne.s32.totalorder %s75, %s76
      %p90 = scmp.eq.s32.totalorder %s26, 1
      %p91 = por %p89, %p90
      %p93 = scmp.ne.s32.totalorder %s76, %s92
      %p94 = scmp.eq.s32.totalorder %s26, 0
      %p95 = por %p93, %p94
      %s96 = ssub.s32 %s27, %s39
      %s97 = ssub.s32 %s28, %s35
      %s98 = sor.u32 %s96, %s97
      %p99 = scmp.eq.s32.totalorder %s98, 0
      %s101 = sadd.s32 %s100, 1
      %s102 = scalar_select %p99, %s100, %s101
      %p105 = pneg %p99
      %p106 = scmp.eq.s32.totalorder %s20, 1
      %p107 = por %p105, %p106
      %p108 = scmp.ne.s32.totalorder %s100, %s103
      %p109 = scmp.eq.s32.totalorder %s20, 0
      %p110 = por %p108, %p109
      %p111 = scmp.ne.s32.totalorder %s100, %s103
      %p112 = scmp.eq.s32.totalorder %s25, 1
      %p113 = por %p111, %p112
      %p114 = scmp.ne.s32.totalorder %s103, %s104
      %p115 = scmp.eq.s32.totalorder %s25, 0
      %p116 = por %p114, %p115
      %p117 = scmp.ne.s32.totalorder %s103, %s104
      %p118 = scmp.eq.s32.totalorder %s26, 1
      %p119 = por %p117, %p118
      %p121 = scmp.ne.s32.totalorder %s104, %s120
      %p122 = scmp.eq.s32.totalorder %s26, 0
      %p123 = por %p121, %p122
      %s124 = ssub.s32 %s27, %s39
      %s125 = ssub.s32 %s28, %s35
      %s126 = sor.u32 %s124, %s125
      %p127 = scmp.eq.s32.totalorder %s126, 0
      %s129 = sadd.s32 %s128, 1
      %s130 = scalar_select %p127, %s128, %s129
      %p133 = pneg %p127
      %p134 = scmp.eq.s32.totalorder %s20, 1
      %p135 = por %p133, %p134
      %p136 = scmp.ne.s32.totalorder %s128, %s131
      %p137 = scmp.eq.s32.totalorder %s20, 0
      %p138 = por %p136, %p137
      %p139 = scmp.ne.s32.totalorder %s128, %s131
      %p140 = scmp.eq.s32.totalorder %s25, 1
      %p141 = por %p139, %p140
      %p142 = scmp.ne.s32.totalorder %s131, %s132
      %p143 = scmp.eq.s32.totalorder %s25, 0
      %p144 = por %p142, %p143
      %p145 = scmp.ne.s32.totalorder %s131, %s132
      %p146 = scmp.eq.s32.totalorder %s26, 1
      %p147 = por %p145, %p146
      %p149 = scmp.ne.s32.totalorder %s132, %s148
      %p150 = scmp.eq.s32.totalorder %s26, 0
      %p151 = por %p149, %p150
      %s153 = sadd.s32 %s152, 1
      %p156 = scmp.eq.s32.totalorder %s20, 1
      %p157 = scmp.ne.s32.totalorder %s152, %s154
      %p158 = scmp.eq.s32.totalorder %s20, 0
      %p159 = por %p157, %p158
      %p160 = scmp.ne.s32.totalorder %s152, %s154
      %p161 = scmp.eq.s32.totalorder %s25, 1
      %p162 = por %p160, %p161
      %p163 = scmp.ne.s32.totalorder %s154, %s155
      %p164 = scmp.eq.s32.totalorder %s25, 0
      %p165 = por %p163, %p164
      %p166 = scmp.ne.s32.totalorder %s154, %s155
      %p167 = scmp.eq.s32.totalorder %s26, 1
      %p168 = por %p166, %p167
      %p170 = scmp.ne.s32.totalorder %s155, %s169
      %p171 = scmp.eq.s32.totalorder %s26, 0
      %p172 = por %p170, %p171
      %p173 = scmp.le.s32.totalorder 1, %s20
      %p174 = scmp.lt.s32.totalorder %s20, 3
      %p175 = pnand %p173, %p174
      %p176 = pneg %p175
      // Predicated region
      $region9: #{loss_forward.1} parent=5 // pred_check
        _
      $region10: #{loss_forward.1} parent=5 // pred_check_branch
        %178 = sbr.rel (%p175) target = $region12
      $region11: #{loss_forward.1} parent=5 // pred_region
        %s179 = ssub.s32 %s20, 1
      $region12: #{loss_forward.1} parent=5 // pred_fallthru
        _
      %p180 = scmp.lt.s32.totalorder %s20, 2
      // Predicated region
      $region13: #{loss_forward.1} parent=5 // pred_check
        %p181 = pneg %p180
      $region14: #{loss_forward.1} parent=5 // pred_check_branch
        %183 = sbr.rel (%p181) target = $region16
      $region15: #{loss_forward.1} parent=5 // pred_region
        // Predicated region
        $region17: #{loss_forward.1} parent=15 // pred_check
          %p184 = pneg %p54
        $region18: #{loss_forward.1} parent=15 // pred_check_branch
          %186 = sbr.rel (%p184) target = $region20
        $region19: #{loss_forward.1} parent=15 // pred_region
          %s187 = sand.u32 %s44, 1
          %s188 = scalar_lea.sflag [#allocation4], %s187
          %s189 = sand.u32 %s44, 1
          %s190 = smul.addr %s189, 112
          %s191 = scalar_lea.vmem [#allocation3], %s190
          %s192 = smul.u32 2, %s28
          %s194 = ssub.s32 1792, 1792
          %195 = vsyncadd %s188, %s194
          %s196 = smul.addr %s27, 14
          %s197 = sadd.s32 %s192, %s196
          %s198 = smul.addr %s197, 128
          %s199 = scalar_lea.hbm %s0, %s198
          %s200 = sshll.u32 %s191, 4
          %s201 = int_to_ptr.vmem [resolvable:$true] %s200
          %206 = dma.hbm_to_vmem [thread:$0]  %s199, 1792, %s201, %s188, 128, 128, 8
        $region20: #{loss_forward.1} parent=15 // pred_fallthru
          _
        // Predicated region
        $region21: #{loss_forward.1} parent=15 // pred_check
          %p207 = pneg %p82
        $region22: #{loss_forward.1} parent=15 // pred_check_branch
          %209 = sbr.rel (%p207) target = $region24
        $region23: #{loss_forward.1} parent=15 // pred_region
          %s210 = sand.u32 %s20, 1
          %s211 = scalar_lea.sflag [#allocation7], %s210
          %s212 = sand.u32 %s72, 1
          %s213 = smul.addr %s212, 112
          %s214 = scalar_lea.vmem [#allocation6], %s213
          %s215 = smul.u32 2, %s28
          %s217 = ssub.s32 1792, 1792
          %218 = vsyncadd %s211, %s217
          %s219 = smul.addr %s27, 14
          %s220 = sadd.s32 %s215, %s219
          %s221 = smul.addr %s220, 128
          %s222 = scalar_lea.hbm %s1, %s221
          %s223 = sshll.u32 %s214, 4
          %s224 = int_to_ptr.vmem [resolvable:$true] %s223
          %229 = dma.hbm_to_vmem [thread:$0]  %s222, 1792, %s224, %s211, 128, 128, 8
        $region24: #{loss_forward.1} parent=15 // pred_fallthru
          _
        // Predicated region
        $region25: #{loss_forward.1} parent=15 // pred_check
          %p230 = pneg %p110
        $region26: #{loss_forward.1} parent=15 // pred_check_branch
          %232 = sbr.rel (%p230) target = $region28
        $region27: #{loss_forward.1} parent=15 // pred_region
          %s233 = sand.u32 %s20, 1
          %s234 = scalar_lea.sflag [#allocation7], %s233
          %s235 = sand.u32 %s100, 1
          %s236 = smul.addr %s235, 112
          %s237 = scalar_lea.vmem [#allocation8], %s236
          %s238 = smul.u32 2, %s28
          %s240 = ssub.s32 1792, 1792
          %241 = vsyncadd %s234, %s240
          %s242 = smul.addr %s27, 14
          %s243 = sadd.s32 %s238, %s242
          %s244 = smul.addr %s243, 128
          %s245 = scalar_lea.hbm %s2, %s244
          %s246 = sshll.u32 %s237, 4
          %s247 = int_to_ptr.vmem [resolvable:$true] %s246
          %252 = dma.hbm_to_vmem [thread:$0]  %s245, 1792, %s247, %s234, 128, 128, 8
        $region28: #{loss_forward.1} parent=15 // pred_fallthru
          _
        // Predicated region
        $region29: #{loss_forward.1} parent=15 // pred_check
          %p253 = pneg %p138
        $region30: #{loss_forward.1} parent=15 // pred_check_branch
          %255 = sbr.rel (%p253) target = $region32
        $region31: #{loss_forward.1} parent=15 // pred_region
          %s256 = sand.u32 %s128, 1
          %s257 = scalar_lea.sflag [#allocation10], %s256
          %s258 = sand.u32 %s128, 1
          %s259 = smul.addr %s258, 112
          %s260 = scalar_lea.vmem [#allocation9], %s259
          %s261 = smul.u32 2, %s28
          %s263 = ssub.s32 1792, 1792
          %264 = vsyncadd %s257, %s263
          %s265 = smul.addr %s27, 14
          %s266 = sadd.s32 %s261, %s265
          %s267 = smul.addr %s266, 128
          %s268 = scalar_lea.hbm %s3, %s267
          %s269 = sshll.u32 %s260, 4
          %s270 = int_to_ptr.vmem [resolvable:$true] %s269
          %275 = dma.hbm_to_vmem [thread:$0]  %s268, 1792, %s270, %s257, 128, 128, 8
        $region32: #{loss_forward.1} parent=15 // pred_fallthru
          _
      $region16: #{loss_forward.1} parent=5 // pred_fallthru
        _
      %p276 = scmp.le.s32.totalorder 1, %s20
      %p277 = scmp.lt.s32.totalorder %s20, 3
      %p278 = pnand %p276, %p277
      %p279 = pneg %p278
      // Predicated region
      $region33: #{loss_forward.1} parent=5 // pred_check
        _
      $region34: #{loss_forward.1} parent=5 // pred_check_branch
        %281 = sbr.rel (%p278) target = $region36
      $region35: #{loss_forward.1} parent=5 // pred_region
        %s282 = ssub.s32 %s20, 1
        %s283 = sand.u32 %s47, 1
        %s284 = scalar_lea.sflag [#allocation4], %s283
        %s285 = sand.u32 %s47, 1
        %s286 = smul.addr %s285, 112
        %s287 = scalar_lea.vmem [#allocation3], %s286
        // Predicated region
        $region37: #{loss_forward.1} parent=35 // pred_check
          %p288 = pneg %p60
        $region38: #{loss_forward.1} parent=35 // pred_check_branch
          %290 = sbr.rel (%p288) target = $region40
        $region39: #{loss_forward.1} parent=35 // pred_region
          %291 = dma.done %s284, 1792
        $region40: #{loss_forward.1} parent=35 // pred_fallthru
          _
        %s292 = sand.u32 %s25, 1
        %s293 = scalar_lea.sflag [#allocation7], %s292
        %s294 = sand.u32 %s75, 1
        %s295 = smul.addr %s294, 112
        %s296 = scalar_lea.vmem [#allocation6], %s295
        // Predicated region
        $region41: #{loss_forward.1} parent=35 // pred_check
          %p297 = pneg %p88
        $region42: #{loss_forward.1} parent=35 // pred_check_branch
          %299 = sbr.rel (%p297) target = $region44
        $region43: #{loss_forward.1} parent=35 // pred_region
          %300 = dma.done %s293, 1792
        $region44: #{loss_forward.1} parent=35 // pred_fallthru
          _
        %s301 = sand.u32 %s25, 1
        %s302 = scalar_lea.sflag [#allocation7], %s301
        %s303 = sand.u32 %s103, 1
        %s304 = smul.addr %s303, 112
        %s305 = scalar_lea.vmem [#allocation8], %s304
        // Predicated region
        $region45: #{loss_forward.1} parent=35 // pred_check
          %p306 = pneg %p116
        $region46: #{loss_forward.1} parent=35 // pred_check_branch
          %308 = sbr.rel (%p306) target = $region48
        $region47: #{loss_forward.1} parent=35 // pred_region
          %309 = dma.done %s302, 1792
        $region48: #{loss_forward.1} parent=35 // pred_fallthru
          _
        %s310 = sand.u32 %s131, 1
        %s311 = scalar_lea.sflag [#allocation10], %s310
        %s312 = sand.u32 %s131, 1
        %s313 = smul.addr %s312, 112
        %s314 = scalar_lea.vmem [#allocation9], %s313
        // Predicated region
        $region49: #{loss_forward.1} parent=35 // pred_check
          %p315 = pneg %p144
        $region50: #{loss_forward.1} parent=35 // pred_check_branch
          %317 = sbr.rel (%p315) target = $region52
        $region51: #{loss_forward.1} parent=35 // pred_region
          %318 = dma.done %s311, 1792
        $region52: #{loss_forward.1} parent=35 // pred_fallthru
          _
        %s319 = sand.u32 %s47, 1
        %s320 = scalar_lea.sflag [#allocation4], %s319
        %s321 = sand.u32 %s47, 1
        %s322 = smul.addr %s321, 112
        %s323 = scalar_lea.vmem [#allocation3], %s322
        %p324 = pneg %p60
        %p325 = pneg %p57
        %s326 = sand.u32 %s25, 1
        %s327 = scalar_lea.sflag [#allocation7], %s326
        %s328 = sand.u32 %s75, 1
        %s329 = smul.addr %s328, 112
        %s330 = scalar_lea.vmem [#allocation6], %s329
        %p331 = pneg %p88
        %p332 = pneg %p85
        %s333 = sand.u32 %s25, 1
        %s334 = scalar_lea.sflag [#allocation7], %s333
        %s335 = sand.u32 %s103, 1
        %s336 = smul.addr %s335, 112
        %s337 = scalar_lea.vmem [#allocation8], %s336
        %p338 = pneg %p116
        %p339 = pneg %p113
        %s340 = sand.u32 %s131, 1
        %s341 = scalar_lea.sflag [#allocation10], %s340
        %s342 = sand.u32 %s131, 1
        %s343 = smul.addr %s342, 112
        %s344 = scalar_lea.vmem [#allocation9], %s343
        %p345 = pneg %p144
        %p346 = pneg %p141
        %p347 = pneg %p165
        %p348 = pneg %p162
        %s349 = smul.u32 2, %s30
        %s350 = smul.u32 2, %s30
        %s351 = smul.u32 2, %s30
        %s352 = smul.u32 2, %s30
        %p353 = scmp.eq.s32.totalorder %s29, 0
        %p354 = scmp.eq.s32.totalorder %s30, 0
        %p355 = pnand %p353, %p354
        %p356 = pneg %p355
        %p357 = scmp.eq.s32.totalorder %s29, 1
        %p358 = pnand %p357, %p354
        %p359 = pneg %p358
        // Predicated region
        $region53: #{loss_forward.1} parent=35 // pred_check
          _
        $region54: #{loss_forward.1} parent=35 // pred_check_branch
          %361 = sbr.rel (%p355) target = $region56
        $region55: #{loss_forward.1} parent=35 // pred_region
          %vm362 = vcmask 130048
          %363 = vst.msk [vmem:[#allocation2] sm:$0xff] %vm362, 0.0
          %364 = vst.msk [vmem:[#allocation2 + $0x8] sm:$0xff] %vm362, 0.0
          %365 = vst.msk [vmem:[#allocation2 + $0x10] sm:$0xff] %vm362, 0.0
          %366 = vst.msk [vmem:[#allocation2 + $0x18] sm:$0xff] %vm362, 0.0
          %367 = vst.msk [vmem:[#allocation2 + $0x20] sm:$0xff] %vm362, 0.0
          %368 = vst.msk [vmem:[#allocation2 + $0x28] sm:$0xff] %vm362, 0.0
          %369 = vst.msk [vmem:[#allocation2 + $0x30] sm:$0xff] %vm362, 0.0
          %370 = vst.msk [vmem:[#allocation2 + $0x38] sm:$0xff] %vm362, 0.0
          %371 = vst.msk [vmem:[#allocation2 + $0x40] sm:$0xff] %vm362, 0.0
          %372 = vst.msk [vmem:[#allocation2 + $0x48] sm:$0xff] %vm362, 0.0
          %373 = vst.msk [vmem:[#allocation2 + $0x50] sm:$0xff] %vm362, 0.0
          %374 = vst.msk [vmem:[#allocation2 + $0x58] sm:$0xff] %vm362, 0.0
          %375 = vst.msk [vmem:[#allocation2 + $0x60] sm:$0xff] %vm362, 0.0
          %376 = vst.msk [vmem:[#allocation2 + $0x68] sm:$0xff] %vm362, 0.0
          %377 = vst.msk [vmem:[#allocation2 + $0x70] sm:$0xff] %vm362, 0.0
          %378 = vst.msk [vmem:[#allocation2 + $0x78] sm:$0xff] %vm362, 0.0
          %379 = vst.msk [vmem:[#allocation2 + $0x80] sm:$0xff] %vm362, 0.0
          %380 = vst.msk [vmem:[#allocation2 + $0x88] sm:$0xff] %vm362, 0.0
          %381 = vst.msk [vmem:[#allocation2 + $0x90] sm:$0xff] %vm362, 0.0
          %382 = vst.msk [vmem:[#allocation2 + $0x98] sm:$0xff] %vm362, 0.0
          %383 = vst.msk [vmem:[#allocation2 + $0xa0] sm:$0xff] %vm362, 0.0
          %384 = vst.msk [vmem:[#allocation2 + $0xa8] sm:$0xff] %vm362, 0.0
          %385 = vst.msk [vmem:[#allocation2 + $0xb0] sm:$0xff] %vm362, 0.0
          %386 = vst.msk [vmem:[#allocation2 + $0xb8] sm:$0xff] %vm362, 0.0
          %387 = vst.msk [vmem:[#allocation2 + $0xc0] sm:$0xff] %vm362, 0.0
          %388 = vst.msk [vmem:[#allocation2 + $0xc8] sm:$0xff] %vm362, 0.0
          %389 = vst.msk [vmem:[#allocation2 + $0xd0] sm:$0xff] %vm362, 0.0
          %390 = vst.msk [vmem:[#allocation2 + $0xd8] sm:$0xff] %vm362, 0.0
          %391 = vst.msk [vmem:[#allocation2 + $0xe0] sm:$0xff] %vm362, 0.0
          %392 = vst.msk [vmem:[#allocation2 + $0xe8] sm:$0xff] %vm362, 0.0
          %393 = vst.msk [vmem:[#allocation2 + $0xf0] sm:$0xff] %vm362, 0.0
          %394 = vst.msk [vmem:[#allocation2 + $0xf8] sm:$0xff] %vm362, 0.0
          %395 = vst.msk [vmem:[#allocation2 + $0x100] sm:$0xff] %vm362, 0.0
          %396 = vst.msk [vmem:[#allocation2 + $0x108] sm:$0xff] %vm362, 0.0
          %397 = vst.msk [vmem:[#allocation2 + $0x110] sm:$0xff] %vm362, 0.0
          %398 = vst.msk [vmem:[#allocation2 + $0x118] sm:$0xff] %vm362, 0.0
          %399 = vst.msk [vmem:[#allocation2 + $0x120] sm:$0xff] %vm362, 0.0
          %400 = vst.msk [vmem:[#allocation2 + $0x128] sm:$0xff] %vm362, 0.0
        $region56: #{loss_forward.1} parent=35 // pred_fallthru
          _
        %v401 = vld [vmem:[%s287] sm:$0xff]
        %v402 = vld [vmem:[%s287 + $0x8] sm:$0xff]
        %v403 = vld [vmem:[%s287 + $0x10] sm:$0xff]
        %v404 = vld [vmem:[%s287 + $0x18] sm:$0xff]
        %v405 = vld [vmem:[%s287 + $0x20] sm:$0xff]
        %v406 = vld [vmem:[%s287 + $0x28] sm:$0xff]
        %v407 = vld [vmem:[%s287 + $0x30] sm:$0xff]
        %v408 = vld [vmem:[%s287 + $0x38] sm:$0xff]
        %v409 = vld [vmem:[%s287 + $0x40] sm:$0xff]
        %v410 = vld [vmem:[%s287 + $0x48] sm:$0xff]
        %v411 = vld [vmem:[%s287 + $0x50] sm:$0xff]
        %v412 = vld [vmem:[%s287 + $0x58] sm:$0xff]
        %v413 = vld [vmem:[%s287 + $0x60] sm:$0xff]
        %v414 = vld [vmem:[%s287 + $0x68] sm:$0xff]
        %v415 = vld [vmem:[%s296] sm:$0xff]
        %v416 = vld [vmem:[%s296 + $0x8] sm:$0xff]
        %v417 = vld [vmem:[%s296 + $0x10] sm:$0xff]
        %v418 = vld [vmem:[%s296 + $0x18] sm:$0xff]
        %v419 = vld [vmem:[%s296 + $0x20] sm:$0xff]
        %v420 = vld [vmem:[%s296 + $0x28] sm:$0xff]
        %v421 = vld [vmem:[%s296 + $0x30] sm:$0xff]
        %v422 = vld [vmem:[%s296 + $0x38] sm:$0xff]
        %v423 = vld [vmem:[%s296 + $0x40] sm:$0xff]
        %v424 = vld [vmem:[%s296 + $0x48] sm:$0xff]
        %v425 = vld [vmem:[%s296 + $0x50] sm:$0xff]
        %v426 = vld [vmem:[%s296 + $0x58] sm:$0xff]
        %v427 = vld [vmem:[%s296 + $0x60] sm:$0xff]
        %v428 = vld [vmem:[%s296 + $0x68] sm:$0xff]
        %v429 = vld [vmem:[%s305] sm:$0xff]
        %v430 = vld [vmem:[%s305 + $0x8] sm:$0xff]
        %v431 = vld [vmem:[%s305 + $0x10] sm:$0xff]
        %v432 = vld [vmem:[%s305 + $0x18] sm:$0xff]
        %v433 = vld [vmem:[%s305 + $0x20] sm:$0xff]
        %v434 = vld [vmem:[%s305 + $0x28] sm:$0xff]
        %v435 = vld [vmem:[%s305 + $0x30] sm:$0xff]
        %v436 = vld [vmem:[%s305 + $0x38] sm:$0xff]
        %v437 = vld [vmem:[%s305 + $0x40] sm:$0xff]
        %v438 = vld [vmem:[%s305 + $0x48] sm:$0xff]
        %v439 = vld [vmem:[%s305 + $0x50] sm:$0xff]
        %v440 = vld [vmem:[%s305 + $0x58] sm:$0xff]
        %v441 = vld [vmem:[%s305 + $0x60] sm:$0xff]
        %v442 = vld [vmem:[%s305 + $0x68] sm:$0xff]
        %v443 = vld [vmem:[%s314] sm:$0xff]
        %v444 = vld [vmem:[%s314 + $0x8] sm:$0xff]
        %v445 = vld [vmem:[%s314 + $0x10] sm:$0xff]
        %v446 = vld [vmem:[%s314 + $0x18] sm:$0xff]
        %v447 = vld [vmem:[%s314 + $0x20] sm:$0xff]
        %v448 = vld [vmem:[%s314 + $0x28] sm:$0xff]
        %v449 = vld [vmem:[%s314 + $0x30] sm:$0xff]
        %v450 = vld [vmem:[%s314 + $0x38] sm:$0xff]
        %v451 = vld [vmem:[%s314 + $0x40] sm:$0xff]
        %v452 = vld [vmem:[%s314 + $0x48] sm:$0xff]
        %v453 = vld [vmem:[%s314 + $0x50] sm:$0xff]
        %v454 = vld [vmem:[%s314 + $0x58] sm:$0xff]
        %v455 = vld [vmem:[%s314 + $0x60] sm:$0xff]
        %v456 = vld [vmem:[%s314 + $0x68] sm:$0xff]
        %v457 = vxor.u32 %v415, 2147483648
        %v458 = vxor.u32 %v416, 2147483648
        %v459 = vxor.u32 %v417, 2147483648
        %v460 = vxor.u32 %v418, 2147483648
        %v461 = vxor.u32 %v419, 2147483648
        %v462 = vxor.u32 %v420, 2147483648
        %v463 = vmul.f32 %v457, 1.442695
        %v464 = vpow.pop %v463
        %v465 = vmul.f32 %v458, 1.442695
        %v466 = vpow.pop %v465
        %v467 = vmul.f32 %v459, 1.442695
        %v468 = vpow.pop %v467
        %v469 = vmul.f32 %v460, 1.442695
        %v470 = vpow.pop %v469
        %v471 = vmul.f32 %v461, 1.442695
        %v472 = vpow.pop %v471
        %v473 = vmul.f32 %v462, 1.442695
        %v474 = vpow.pop %v473
        %v475 = vadd.f32 %v464, 1.0
        %v476 = vadd.f32 %v466, 1.0
        %v477 = vadd.f32 %v468, 1.0
        %v478 = vadd.f32 %v470, 1.0
        %v479 = vadd.f32 %v472, 1.0
        %v480 = vadd.f32 %v474, 1.0
        %v481 = vrcp.pop %v475
        %v482 = vmul.f32 1.0, %v481
        %v483 = vrcp.pop %v476
        %v484 = vmul.f32 1.0, %v483
        %v485 = vrcp.pop %v477
        %v486 = vmul.f32 1.0, %v485
        %v487 = vrcp.pop %v478
        %v488 = vmul.f32 1.0, %v487
        %v489 = vrcp.pop %v479
        %v490 = vmul.f32 1.0, %v489
        %v491 = vrcp.pop %v480
        %v492 = vmul.f32 1.0, %v491
        %v493 = vadd.f32 %v482, 0.0001
        %v494 = vadd.f32 %v484, 0.0001
        %v495 = vlog2.pop %v493
        %v496 = vmul.f32 %v495, 0.6931472
        %v497 = vlog2.pop %v494
        %v498 = vmul.f32 %v497, 0.6931472
        %v499 = vmul.f32 %v401, %v496
        %v500 = vmul.f32 %v402, %v498
        %v501 = vsub.f32 1.0, %v401
        %v502 = vsub.f32 1.0, %v402
        %v503 = vsub.f32 1.0, %v482
        %v504 = vsub.f32 1.0, %v484
        %v505 = vadd.f32 %v503, 0.0001
        %v506 = vadd.f32 %v504, 0.0001
        %v507 = vlog2.pop %v505
        %v508 = vmul.f32 %v507, 0.6931472
        %v509 = vlog2.pop %v506
        %v510 = vmul.f32 %v509, 0.6931472
        %v511 = vmul.f32 %v501, %v508
        %v512 = vmul.f32 %v502, %v510
        %vm513 = vcmp.eq.f32.partialorder %v401, 1.0
        %vm514 = vcmp.eq.f32.partialorder %v402, 1.0
        %v515 = vsel %vm513, 1, 0
        %v516 = vsel %vm514, 1, 0
        %v517 = vcvt.s32.f32 %v515
        %v518 = vcvt.s32.f32 %v516
        %v519 = vadd.f32 %v486, 0.0001
        %v520 = vadd.f32 %v488, 0.0001
        %v521 = vlog2.pop %v519
        %v522 = vmul.f32 %v521, 0.6931472
        %v523 = vlog2.pop %v520
        %v524 = vmul.f32 %v523, 0.6931472
        %v525 = vmul.f32 %v403, %v522
        %v526 = vmul.f32 %v404, %v524
        %v527 = vadd.f32 %v490, 0.0001
        %v528 = vadd.f32 %v492, 0.0001
        %v529 = vlog2.pop %v527
        %v530 = vmul.f32 %v529, 0.6931472
        %v531 = vlog2.pop %v528
        %v532 = vmul.f32 %v531, 0.6931472
        %v533 = vmul.f32 %v405, %v530
        %v534 = vmul.f32 %v406, %v532
        %v535 = vadd.f32 %v525, %v533
        %v536 = vadd.f32 %v526, %v534
        %v537 = vmul.f32 %v517, %v535
        %v538 = vmul.f32 %v518, %v536
        %v539 = vsub.f32 1.0, %v403
        %v540 = vsub.f32 1.0, %v404
        %v541 = vsub.f32 1.0, %v486
        %v542 = vsub.f32 1.0, %v488
        %v543 = vadd.f32 %v541, 0.0001
        %v544 = vadd.f32 %v542, 0.0001
        %v545 = vlog2.pop %v543
        %v546 = vmul.f32 %v545, 0.6931472
        %v547 = vlog2.pop %v544
        %v548 = vmul.f32 %v547, 0.6931472
        %v549 = vmul.f32 %v539, %v546
        %v550 = vmul.f32 %v540, %v548
        %v551 = vsub.f32 1.0, %v405
        %v552 = vsub.f32 1.0, %v406
        %v553 = vsub.f32 1.0, %v490
        %v554 = vsub.f32 1.0, %v492
        %v555 = vadd.f32 %v553, 0.0001
        %v556 = vadd.f32 %v554, 0.0001
        %v557 = vlog2.pop %v555
        %v558 = vmul.f32 %v557, 0.6931472
        %v559 = vlog2.pop %v556
        %v560 = vmul.f32 %v559, 0.6931472
        %v561 = vmul.f32 %v551, %v558
        %v562 = vmul.f32 %v552, %v560
        %v563 = vadd.f32 %v549, %v561
        %v564 = vadd.f32 %v550, %v562
        %v565 = vmul.f32 %v517, %v563
        %v566 = vmul.f32 %v518, %v564
        %vm567 = vcmp.eq.f32.partialorder %v403, 1.0
        %vm568 = vcmp.eq.f32.partialorder %v404, 1.0
        %v569 = vsel %vm567, 1, 0
        %v570 = vsel %vm568, 1, 0
        %v571 = vcvt.s32.f32 %v569
        %v572 = vcvt.s32.f32 %v570
        %v573 = vsub.f32 %v407, %v411
        %v574 = vsub.f32 %v408, %v412
        %v575 = vmul.f32 %v573, %v573
        %v576 = vmul.f32 %v574, %v574
        %v577 = vsub.f32 %v409, %v413
        %v578 = vsub.f32 %v410, %v414
        %v579 = vmul.f32 %v577, %v577
        %v580 = vmul.f32 %v578, %v578
        %v581 = vadd.f32 %v575, %v579
        %v582 = vadd.f32 %v576, %v580
        %v583 = vrsqrt.pop %v581
        %v584 = vmul.f32 %v581, %v583
        %vm585 = vcmp.eq.f32.partialorder %v581, inf
        %v586 = vsel %vm585, %v581, %v584
        %vm587 = vcmp.eq.f32.partialorder %v581, 0.0
        %v588 = vand.u32 %v581, 2147483648
        %v589 = vsel %vm587, %v588, %v586
        %v590 = vrsqrt.pop %v582
        %v591 = vmul.f32 %v582, %v590
        %vm592 = vcmp.eq.f32.partialorder %v582, inf
        %v593 = vsel %vm592, %v582, %v591
        %vm594 = vcmp.eq.f32.partialorder %v582, 0.0
        %v595 = vand.u32 %v582, 2147483648
        %v596 = vsel %vm594, %v595, %v593
        %v597 = vmul.f32 %v589, 4.0
        %v598 = vmul.f32 %v596, 4.0
        %v599 = vadd.f32 %v597, 0.0001
        %v600 = vadd.f32 %v598, 0.0001
        %v601 = vsub.f32 %v421, %v407
        %v602 = vsub.f32 %v422, %v408
        %v603 = vand.u32 2147483647, %v601
        %v604 = vand.u32 2147483647, %v602
        %vm605 = vcmp.lt.f32.partialorder %v603, 1.0
        %vm606 = vcmp.lt.f32.partialorder %v604, 1.0
        %v607 = vmul.f32 %v603, 0.5
        %v608 = vmul.f32 %v604, 0.5
        %v609 = vmul.f32 %v607, %v603
        %v610 = vmul.f32 %v608, %v604
        %v611 = vsub.f32 %v603, 0.5
        %v612 = vsub.f32 %v604, 0.5
        %v613 = vsel %vm605, %v609, %v611
        %v614 = vsel %vm606, %v610, %v612
        %v615 = vsub.f32 %v423, %v409
        %v616 = vsub.f32 %v424, %v410
        %v617 = vand.u32 2147483647, %v615
        %v618 = vand.u32 2147483647, %v616
        %vm619 = vcmp.lt.f32.partialorder %v617, 1.0
        %vm620 = vcmp.lt.f32.partialorder %v618, 1.0
        %v621 = vmul.f32 %v617, 0.5
        %v622 = vmul.f32 %v618, 0.5
        %v623 = vmul.f32 %v621, %v617
        %v624 = vmul.f32 %v622, %v618
        %v625 = vsub.f32 %v617, 0.5
        %v626 = vsub.f32 %v618, 0.5
        %v627 = vsel %vm619, %v623, %v625
        %v628 = vsel %vm620, %v624, %v626
        %v629 = vadd.f32 %v613, %v627
        %v630 = vadd.f32 %v614, %v628
        %v631 = vsub.f32 %v425, %v411
        %v632 = vsub.f32 %v426, %v412
        %v633 = vand.u32 2147483647, %v631
        %v634 = vand.u32 2147483647, %v632
        %vm635 = vcmp.lt.f32.partialorder %v633, 1.0
        %vm636 = vcmp.lt.f32.partialorder %v634, 1.0
        %v637 = vmul.f32 %v633, 0.5
        %v638 = vmul.f32 %v634, 0.5
        %v639 = vmul.f32 %v637, %v633
        %v640 = vmul.f32 %v638, %v634
        %v641 = vsub.f32 %v633, 0.5
        %v642 = vsub.f32 %v634, 0.5
        %v643 = vsel %vm635, %v639, %v641
        %v644 = vsel %vm636, %v640, %v642
        %v645 = vadd.f32 %v629, %v643
        %v646 = vadd.f32 %v630, %v644
        %v647 = vsub.f32 %v427, %v413
        %v648 = vsub.f32 %v428, %v414
        %v649 = vand.u32 2147483647, %v647
        %v650 = vand.u32 2147483647, %v648
        %vm651 = vcmp.lt.f32.partialorder %v649, 1.0
        %vm652 = vcmp.lt.f32.partialorder %v650, 1.0
        %v653 = vmul.f32 %v649, 0.5
        %v654 = vmul.f32 %v650, 0.5
        %v655 = vmul.f32 %v653, %v649
        %v656 = vmul.f32 %v654, %v650
        %v657 = vsub.f32 %v649, 0.5
        %v658 = vsub.f32 %v650, 0.5
        %v659 = vsel %vm651, %v655, %v657
        %v660 = vsel %vm652, %v656, %v658
        %v661 = vadd.f32 %v645, %v659
        %v662 = vadd.f32 %v646, %v660
        %v663 = vrcp.pop %v599
        %v664 = vrcp.pop %v600
        %v665 = vmul.f32 %v661, %v663
        %v666 = vmul.f32 %v662, %v664
        %v667 = vmul.f32 %v665, %v571
        %v668 = vmul.f32 %v666, %v572
        %v669 = vxor.u32 %v443, 2147483648
        %v670 = vxor.u32 %v444, 2147483648
        %v671 = vxor.u32 %v445, 2147483648
        %v672 = vxor.u32 %v446, 2147483648
        %v673 = vxor.u32 %v447, 2147483648
        %v674 = vxor.u32 %v448, 2147483648
        %v675 = vmul.f32 %v669, 1.442695
        %v676 = vpow.pop %v675
        %v677 = vmul.f32 %v670, 1.442695
        %v678 = vpow.pop %v677
        %v679 = vmul.f32 %v671, 1.442695
        %v680 = vpow.pop %v679
        %v681 = vmul.f32 %v672, 1.442695
        %v682 = vpow.pop %v681
        %v683 = vmul.f32 %v673, 1.442695
        %v684 = vpow.pop %v683
        %v685 = vmul.f32 %v674, 1.442695
        %v686 = vpow.pop %v685
        %v687 = vadd.f32 %v676, 1.0
        %v688 = vadd.f32 %v678, 1.0
        %v689 = vadd.f32 %v680, 1.0
        %v690 = vadd.f32 %v682, 1.0
        %v691 = vadd.f32 %v684, 1.0
        %v692 = vadd.f32 %v686, 1.0
        %v693 = vrcp.pop %v687
        %v694 = vmul.f32 1.0, %v693
        %v695 = vrcp.pop %v688
        %v696 = vmul.f32 1.0, %v695
        %v697 = vrcp.pop %v689
        %v698 = vmul.f32 1.0, %v697
        %v699 = vrcp.pop %v690
        %v700 = vmul.f32 1.0, %v699
        %v701 = vrcp.pop %v691
        %v702 = vmul.f32 1.0, %v701
        %v703 = vrcp.pop %v692
        %v704 = vmul.f32 1.0, %v703
        %v705 = vadd.f32 %v694, 0.0001
        %v706 = vadd.f32 %v696, 0.0001
        %v707 = vlog2.pop %v705
        %v708 = vmul.f32 %v707, 0.6931472
        %v709 = vlog2.pop %v706
        %v710 = vmul.f32 %v709, 0.6931472
        %v711 = vmul.f32 %v429, %v708
        %v712 = vmul.f32 %v430, %v710
        %v713 = vsub.f32 1.0, %v429
        %v714 = vsub.f32 1.0, %v430
        %v715 = vsub.f32 1.0, %v694
        %v716 = vsub.f32 1.0, %v696
        %v717 = vadd.f32 %v715, 0.0001
        %v718 = vadd.f32 %v716, 0.0001
        %v719 = vlog2.pop %v717
        %v720 = vmul.f32 %v719, 0.6931472
        %v721 = vlog2.pop %v718
        %v722 = vmul.f32 %v721, 0.6931472
        %v723 = vmul.f32 %v713, %v720
        %v724 = vmul.f32 %v714, %v722
        %vm725 = vcmp.eq.f32.partialorder %v429, 1.0
        %vm726 = vcmp.eq.f32.partialorder %v430, 1.0
        %v727 = vsel %vm725, 1, 0
        %v728 = vsel %vm726, 1, 0
        %v729 = vcvt.s32.f32 %v727
        %v730 = vcvt.s32.f32 %v728
        %v731 = vadd.f32 %v698, 0.0001
        %v732 = vadd.f32 %v700, 0.0001
        %v733 = vlog2.pop %v731
        %v734 = vmul.f32 %v733, 0.6931472
        %v735 = vlog2.pop %v732
        %v736 = vmul.f32 %v735, 0.6931472
        %v737 = vmul.f32 %v431, %v734
        %v738 = vmul.f32 %v432, %v736
        %v739 = vadd.f32 %v702, 0.0001
        %v740 = vadd.f32 %v704, 0.0001
        %v741 = vlog2.pop %v739
        %v742 = vmul.f32 %v741, 0.6931472
        %v743 = vlog2.pop %v740
        %v744 = vmul.f32 %v743, 0.6931472
        %v745 = vmul.f32 %v433, %v742
        %v746 = vmul.f32 %v434, %v744
        %v747 = vadd.f32 %v737, %v745
        %v748 = vadd.f32 %v738, %v746
        %v749 = vmul.f32 %v729, %v747
        %v750 = vmul.f32 %v730, %v748
        %v751 = vsub.f32 1.0, %v431
        %v752 = vsub.f32 1.0, %v432
        %v753 = vsub.f32 1.0, %v698
        %v754 = vsub.f32 1.0, %v700
        %v755 = vadd.f32 %v753, 0.0001
        %v756 = vadd.f32 %v754, 0.0001
        %v757 = vlog2.pop %v755
        %v758 = vmul.f32 %v757, 0.6931472
        %v759 = vlog2.pop %v756
        %v760 = vmul.f32 %v759, 0.6931472
        %v761 = vmul.f32 %v751, %v758
        %v762 = vmul.f32 %v752, %v760
        %v763 = vsub.f32 1.0, %v433
        %v764 = vsub.f32 1.0, %v434
        %v765 = vsub.f32 1.0, %v702
        %v766 = vsub.f32 1.0, %v704
        %v767 = vadd.f32 %v765, 0.0001
        %v768 = vadd.f32 %v766, 0.0001
        %v769 = vlog2.pop %v767
        %v770 = vmul.f32 %v769, 0.6931472
        %v771 = vlog2.pop %v768
        %v772 = vmul.f32 %v771, 0.6931472
        %v773 = vmul.f32 %v763, %v770
        %v774 = vmul.f32 %v764, %v772
        %v775 = vadd.f32 %v761, %v773
        %v776 = vadd.f32 %v762, %v774
        %v777 = vmul.f32 %v729, %v775
        %v778 = vmul.f32 %v730, %v776
        %vm779 = vcmp.eq.f32.partialorder %v431, 1.0
        %vm780 = vcmp.eq.f32.partialorder %v432, 1.0
        %v781 = vsel %vm779, 1, 0
        %v782 = vsel %vm780, 1, 0
        %v783 = vcvt.s32.f32 %v781
        %v784 = vcvt.s32.f32 %v782
        %v785 = vsub.f32 %v435, %v439
        %v786 = vsub.f32 %v436, %v440
        %v787 = vmul.f32 %v785, %v785
        %v788 = vmul.f32 %v786, %v786
        %v789 = vsub.f32 %v437, %v441
        %v790 = vsub.f32 %v438, %v442
        %v791 = vmul.f32 %v789, %v789
        %v792 = vmul.f32 %v790, %v790
        %v793 = vadd.f32 %v787, %v791
        %v794 = vadd.f32 %v788, %v792
        %v795 = vrsqrt.pop %v793
        %v796 = vmul.f32 %v793, %v795
        %vm797 = vcmp.eq.f32.partialorder %v793, inf
        %v798 = vsel %vm797, %v793, %v796
        %vm799 = vcmp.eq.f32.partialorder %v793, 0.0
        %v800 = vand.u32 %v793, 2147483648
        %v801 = vsel %vm799, %v800, %v798
        %v802 = vrsqrt.pop %v794
        %v803 = vmul.f32 %v794, %v802
        %vm804 = vcmp.eq.f32.partialorder %v794, inf
        %v805 = vsel %vm804, %v794, %v803
        %vm806 = vcmp.eq.f32.partialorder %v794, 0.0
        %v807 = vand.u32 %v794, 2147483648
        %v808 = vsel %vm806, %v807, %v805
        %v809 = vmul.f32 %v801, 4.0
        %v810 = vmul.f32 %v808, 4.0
        %v811 = vadd.f32 %v809, 0.0001
        %v812 = vadd.f32 %v810, 0.0001
        %v813 = vsub.f32 %v449, %v435
        %v814 = vsub.f32 %v450, %v436
        %v815 = vand.u32 2147483647, %v813
        %v816 = vand.u32 2147483647, %v814
        %vm817 = vcmp.lt.f32.partialorder %v815, 1.0
        %vm818 = vcmp.lt.f32.partialorder %v816, 1.0
        %v819 = vmul.f32 %v815, 0.5
        %v820 = vmul.f32 %v816, 0.5
        %v821 = vmul.f32 %v819, %v815
        %v822 = vmul.f32 %v820, %v816
        %v823 = vsub.f32 %v815, 0.5
        %v824 = vsub.f32 %v816, 0.5
        %v825 = vsel %vm817, %v821, %v823
        %v826 = vsel %vm818, %v822, %v824
        %v827 = vsub.f32 %v451, %v437
        %v828 = vsub.f32 %v452, %v438
        %v829 = vand.u32 2147483647, %v827
        %v830 = vand.u32 2147483647, %v828
        %vm831 = vcmp.lt.f32.partialorder %v829, 1.0
        %vm832 = vcmp.lt.f32.partialorder %v830, 1.0
        %v833 = vmul.f32 %v829, 0.5
        %v834 = vmul.f32 %v830, 0.5
        %v835 = vmul.f32 %v833, %v829
        %v836 = vmul.f32 %v834, %v830
        %v837 = vsub.f32 %v829, 0.5
        %v838 = vsub.f32 %v830, 0.5
        %v839 = vsel %vm831, %v835, %v837
        %v840 = vsel %vm832, %v836, %v838
        %v841 = vadd.f32 %v825, %v839
        %v842 = vadd.f32 %v826, %v840
        %v843 = vsub.f32 %v453, %v439
        %v844 = vsub.f32 %v454, %v440
        %v845 = vand.u32 2147483647, %v843
        %v846 = vand.u32 2147483647, %v844
        %vm847 = vcmp.lt.f32.partialorder %v845, 1.0
        %vm848 = vcmp.lt.f32.partialorder %v846, 1.0
        %v849 = vmul.f32 %v845, 0.5
        %v850 = vmul.f32 %v846, 0.5
        %v851 = vmul.f32 %v849, %v845
        %v852 = vmul.f32 %v850, %v846
        %v853 = vsub.f32 %v845, 0.5
        %v854 = vsub.f32 %v846, 0.5
        %v855 = vsel %vm847, %v851, %v853
        %v856 = vsel %vm848, %v852, %v854
        %v857 = vadd.f32 %v841, %v855
        %v858 = vadd.f32 %v842, %v856
        %v859 = vsub.f32 %v455, %v441
        %v860 = vsub.f32 %v456, %v442
        %v861 = vand.u32 2147483647, %v859
        %v862 = vand.u32 2147483647, %v860
        %vm863 = vcmp.lt.f32.partialorder %v861, 1.0
        %vm864 = vcmp.lt.f32.partialorder %v862, 1.0
        %v865 = vmul.f32 %v861, 0.5
        %v866 = vmul.f32 %v862, 0.5
        %v867 = vmul.f32 %v865, %v861
        %v868 = vmul.f32 %v866, %v862
        %v869 = vsub.f32 %v861, 0.5
        %v870 = vsub.f32 %v862, 0.5
        %v871 = vsel %vm863, %v867, %v869
        %v872 = vsel %vm864, %v868, %v870
        %v873 = vadd.f32 %v857, %v871
        %v874 = vadd.f32 %v858, %v872
        %v875 = vrcp.pop %v811
        %v876 = vrcp.pop %v812
        %v877 = vmul.f32 %v873, %v875
        %v878 = vmul.f32 %v874, %v876
        %v879 = vmul.f32 %v877, %v783
        %v880 = vmul.f32 %v878, %v784
        %v881 = vlaneseq
        %v882 = vshrl.u32 %v881, 7
        %v883 = vadd.s32 %v882, 8
        %v884 = vlaneseq
        %v885 = vand.u32 %v884, 127
        %v886 = vadd.s32 %v882, %v885
        %v887 = vadd.s32 %v883, %v885
        %vm888 = vcmp.eq.s32.totalorder %v886, 15
        %vm889 = vcmp.eq.s32.totalorder %v887, 15
        %v890 = vsel %vm888, 1, 0
        %v891 = vsel %vm889, 1, 0
        %v892 = vcvt.s32.f32 %v890
        %v893 = vcvt.s32.f32 %v891
        %vm894 = vcmask 130048
        %v896 = vsel %vm894, %v449, 0
        %v899 = vsel %vm894, %v450, 0
        %901 = vmatprep.subr.mxu0 0.0
        %902 = vmatpush1.msra.mxu0 %v892
        %903 = vmatprep.subr.mxu0 0.0
        %904 = vmatpush1.msra.mxu0 %v893
        %905 = vmatprep.subr.mxu0 0.0
        %906 = vmatpush1.msra.mxu0 0.0
        %907 = vmatprep.subr.mxu0 0.0
        %908 = vmatpush1.msra.mxu0 0.0
        %909 = vmatprep.subr.mxu0 0.0
        %910 = vmatpush1.msra.mxu0 0.0
        %911 = vmatprep.subr.mxu0 0.0
        %912 = vmatpush1.msra.mxu0 0.0
        %913 = vmatprep.subr.mxu0 0.0
        %914 = vmatpush1.msra.mxu0 0.0
        %915 = vmatprep.subr.mxu0 0.0
        %916 = vmatpush1.msra.mxu0 0.0
        %917 = vmatprep.subr.mxu0 0.0
        %918 = vmatpush1.msra.mxu0 0.0
        %919 = vmatprep.subr.mxu0 0.0
        %920 = vmatpush1.msra.mxu0 0.0
        %921 = vmatprep.subr.mxu0 0.0
        %922 = vmatpush1.msra.mxu0 0.0
        %923 = vmatprep.subr.mxu0 0.0
        %924 = vmatpush1.msra.mxu0 0.0
        %925 = vmatprep.subr.mxu0 0.0
        %926 = vmatpush1.msra.mxu0 0.0
        %927 = vmatprep.subr.mxu0 0.0
        %928 = vmatpush1.msra.mxu0 0.0
        %929 = vmatprep.subr.mxu0 0.0
        %930 = vmatpush1.msra.mxu0 0.0
        %931 = vmatprep.subr.mxu0 0.0
        %932 = vmatpush1.msra.mxu0 0.0
        %933 = vmatprep.subr.mxu0 0.0
        %934 = vmatpush1.msra.mxu0 0.0
        %935 = vmatprep.subr.mxu0 0.0
        %936 = vmatpush1.msra.mxu0 0.0
        %937 = vmatprep.subr.mxu0 0.0
        %938 = vmatpush1.msra.mxu0 0.0
        %939 = vmatprep.subr.mxu0 0.0
        %940 = vmatpush1.msra.mxu0 0.0
        %941 = vmatprep.subr.mxu0 0.0
        %942 = vmatpush1.msra.mxu0 0.0
        %943 = vmatprep.subr.mxu0 0.0
        %944 = vmatpush1.msra.mxu0 0.0
        %945 = vmatprep.subr.mxu0 0.0
        %946 = vmatpush1.msra.mxu0 0.0
        %947 = vmatprep.subr.mxu0 0.0
        %948 = vmatpush1.msra.mxu0 0.0
        %949 = vmatprep.subr.mxu0 0.0
        %950 = vmatpush1.msra.mxu0 0.0
        %951 = vmatprep.subr.mxu0 0.0
        %952 = vmatpush1.msra.mxu0 0.0
        %953 = vmatprep.subr.mxu0 0.0
        %954 = vmatpush1.msra.mxu0 0.0
        %955 = vmatprep.subr.mxu0 0.0
        %956 = vmatpush1.msra.mxu0 0.0
        %957 = vmatprep.subr.mxu0 0.0
        %958 = vmatpush1.msra.mxu0 0.0
        %959 = vmatprep.subr.mxu0 0.0
        %960 = vmatpush1.msra.mxu0 0.0
        %961 = vmatprep.subr.mxu0 0.0
        %962 = vmatpush1.msra.mxu0 0.0
        %963 = vmatprep.subr.mxu0 0.0
        %964 = vmatpush1.msra.mxu0 0.0
        %965 = vmatprep.mubr.f32.mxu0 0.0
        %966 = vmatmul.mubr.f32.gmra.mrb[0].mxu0 %v896
        %v967 = vpop.f32.mrb[0].mxu0
        %v968 = vadd.f32 0.0, %v967
        %v969 = vpop.f32.mrb[0].mxu0
        %970 = vmatprep.mubr.f32.mxu0 0.0
        %971 = vmatmul.mubr.f32.gmra.mrb[0].mxu0 %v899
        %v972 = vpop.f32.mrb[0].mxu0
        %v973 = vadd.f32 0.0, %v972
        %v974 = vpop.f32.mrb[0].mxu0
        %975 = vdwg.mxu0
        %v977 = vsel %vm894, %v451, 0
        %v980 = vsel %vm894, %v452, 0
        %982 = vmatprep.subr.mxu0 0.0
        %983 = vmatpush1.msra.mxu0 %v892
        %984 = vmatprep.subr.mxu0 0.0
        %985 = vmatpush1.msra.mxu0 %v893
        %986 = vmatprep.subr.mxu0 0.0
        %987 = vmatpush1.msra.mxu0 0.0
        %988 = vmatprep.subr.mxu0 0.0
        %989 = vmatpush1.msra.mxu0 0.0
        %990 = vmatprep.subr.mxu0 0.0
        %991 = vmatpush1.msra.mxu0 0.0
        %992 = vmatprep.subr.mxu0 0.0
        %993 = vmatpush1.msra.mxu0 0.0
        %994 = vmatprep.subr.mxu0 0.0
        %995 = vmatpush1.msra.mxu0 0.0
        %996 = vmatprep.subr.mxu0 0.0
        %997 = vmatpush1.msra.mxu0 0.0
        %998 = vmatprep.subr.mxu0 0.0
        %999 = vmatpush1.msra.mxu0 0.0
        %1000 = vmatprep.subr.mxu0 0.0
        %1001 = vmatpush1.msra.mxu0 0.0
        %1002 = vmatprep.subr.mxu0 0.0
        %1003 = vmatpush1.msra.mxu0 0.0
        %1004 = vmatprep.subr.mxu0 0.0
        %1005 = vmatpush1.msra.mxu0 0.0
        %1006 = vmatprep.subr.mxu0 0.0
        %1007 = vmatpush1.msra.mxu0 0.0
        %1008 = vmatprep.subr.mxu0 0.0
        %1009 = vmatpush1.msra.mxu0 0.0
        %1010 = vmatprep.subr.mxu0 0.0
        %1011 = vmatpush1.msra.mxu0 0.0
        %1012 = vmatprep.subr.mxu0 0.0
        %1013 = vmatpush1.msra.mxu0 0.0
        %1014 = vmatprep.subr.mxu0 0.0
        %1015 = vmatpush1.msra.mxu0 0.0
        %1016 = vmatprep.subr.mxu0 0.0
        %1017 = vmatpush1.msra.mxu0 0.0
        %1018 = vmatprep.subr.mxu0 0.0
        %1019 = vmatpush1.msra.mxu0 0.0
        %1020 = vmatprep.subr.mxu0 0.0
        %1021 = vmatpush1.msra.mxu0 0.0
        %1022 = vmatprep.subr.mxu0 0.0
        %1023 = vmatpush1.msra.mxu0 0.0
        %1024 = vmatprep.subr.mxu0 0.0
        %1025 = vmatpush1.msra.mxu0 0.0
        %1026 = vmatprep.subr.mxu0 0.0
        %1027 = vmatpush1.msra.mxu0 0.0
        %1028 = vmatprep.subr.mxu0 0.0
        %1029 = vmatpush1.msra.mxu0 0.0
        %1030 = vmatprep.subr.mxu0 0.0
        %1031 = vmatpush1.msra.mxu0 0.0
        %1032 = vmatprep.subr.mxu0 0.0
        %1033 = vmatpush1.msra.mxu0 0.0
        %1034 = vmatprep.subr.mxu0 0.0
        %1035 = vmatpush1.msra.mxu0 0.0
        %1036 = vmatprep.subr.mxu0 0.0
        %1037 = vmatpush1.msra.mxu0 0.0
        %1038 = vmatprep.subr.mxu0 0.0
        %1039 = vmatpush1.msra.mxu0 0.0
        %1040 = vmatprep.subr.mxu0 0.0
        %1041 = vmatpush1.msra.mxu0 0.0
        %1042 = vmatprep.subr.mxu0 0.0
        %1043 = vmatpush1.msra.mxu0 0.0
        %1044 = vmatprep.subr.mxu0 0.0
        %1045 = vmatpush1.msra.mxu0 0.0
        %1046 = vmatprep.mubr.f32.mxu0 0.0
        %1047 = vmatmul.mubr.f32.gmra.mrb[0].mxu0 %v977
        %v1048 = vpop.f32.mrb[0].mxu0
        %v1049 = vadd.f32 0.0, %v1048
        %v1050 = vpop.f32.mrb[0].mxu0
        %1051 = vmatprep.mubr.f32.mxu0 0.0
        %1052 = vmatmul.mubr.f32.gmra.mrb[0].mxu0 %v980
        %v1053 = vpop.f32.mrb[0].mxu0
        %v1054 = vadd.f32 0.0, %v1053
        %v1055 = vpop.f32.mrb[0].mxu0
        %1056 = vdwg.mxu0
        %v1058 = vsel %vm894, %v453, 0
        %v1061 = vsel %vm894, %v454, 0
        %1063 = vmatprep.subr.mxu0 0.0
        %1064 = vmatpush1.msra.mxu0 %v892
        %1065 = vmatprep.subr.mxu0 0.0
        %1066 = vmatpush1.msra.mxu0 %v893
        %1067 = vmatprep.subr.mxu0 0.0
        %1068 = vmatpush1.msra.mxu0 0.0
        %1069 = vmatprep.subr.mxu0 0.0
        %1070 = vmatpush1.msra.mxu0 0.0
        %1071 = vmatprep.subr.mxu0 0.0
        %1072 = vmatpush1.msra.mxu0 0.0
        %1073 = vmatprep.subr.mxu0 0.0
        %1074 = vmatpush1.msra.mxu0 0.0
        %1075 = vmatprep.subr.mxu0 0.0
        %1076 = vmatpush1.msra.mxu0 0.0
        %1077 = vmatprep.subr.mxu0 0.0
        %1078 = vmatpush1.msra.mxu0 0.0
        %1079 = vmatprep.subr.mxu0 0.0
        %1080 = vmatpush1.msra.mxu0 0.0
        %1081 = vmatprep.subr.mxu0 0.0
        %1082 = vmatpush1.msra.mxu0 0.0
        %1083 = vmatprep.subr.mxu0 0.0
        %1084 = vmatpush1.msra.mxu0 0.0
        %1085 = vmatprep.subr.mxu0 0.0
        %1086 = vmatpush1.msra.mxu0 0.0
        %1087 = vmatprep.subr.mxu0 0.0
        %1088 = vmatpush1.msra.mxu0 0.0
        %1089 = vmatprep.subr.mxu0 0.0
        %1090 = vmatpush1.msra.mxu0 0.0
        %1091 = vmatprep.subr.mxu0 0.0
        %1092 = vmatpush1.msra.mxu0 0.0
        %1093 = vmatprep.subr.mxu0 0.0
        %1094 = vmatpush1.msra.mxu0 0.0
        %1095 = vmatprep.subr.mxu0 0.0
        %1096 = vmatpush1.msra.mxu0 0.0
        %1097 = vmatprep.subr.mxu0 0.0
        %1098 = vmatpush1.msra.mxu0 0.0
        %1099 = vmatprep.subr.mxu0 0.0
        %1100 = vmatpush1.msra.mxu0 0.0
        %1101 = vmatprep.subr.mxu0 0.0
        %1102 = vmatpush1.msra.mxu0 0.0
        %1103 = vmatprep.subr.mxu0 0.0
        %1104 = vmatpush1.msra.mxu0 0.0
        %1105 = vmatprep.subr.mxu0 0.0
        %1106 = vmatpush1.msra.mxu0 0.0
        %1107 = vmatprep.subr.mxu0 0.0
        %1108 = vmatpush1.msra.mxu0 0.0
        %1109 = vmatprep.subr.mxu0 0.0
        %1110 = vmatpush1.msra.mxu0 0.0
        %1111 = vmatprep.subr.mxu0 0.0
        %1112 = vmatpush1.msra.mxu0 0.0
        %1113 = vmatprep.subr.mxu0 0.0
        %1114 = vmatpush1.msra.mxu0 0.0
        %1115 = vmatprep.subr.mxu0 0.0
        %1116 = vmatpush1.msra.mxu0 0.0
        %1117 = vmatprep.subr.mxu0 0.0
        %1118 = vmatpush1.msra.mxu0 0.0
        %1119 = vmatprep.subr.mxu0 0.0
        %1120 = vmatpush1.msra.mxu0 0.0
        %1121 = vmatprep.subr.mxu0 0.0
        %1122 = vmatpush1.msra.mxu0 0.0
        %1123 = vmatprep.subr.mxu0 0.0
        %1124 = vmatpush1.msra.mxu0 0.0
        %1125 = vmatprep.subr.mxu0 0.0
        %1126 = vmatpush1.msra.mxu0 0.0
        %1127 = vmatprep.mubr.f32.mxu0 0.0
        %1128 = vmatmul.mubr.f32.gmra.mrb[0].mxu0 %v1058
        %v1129 = vpop.f32.mrb[0].mxu0
        %v1130 = vadd.f32 0.0, %v1129
        %v1131 = vpop.f32.mrb[0].mxu0
        %1132 = vmatprep.mubr.f32.mxu0 0.0
        %1133 = vmatmul.mubr.f32.gmra.mrb[0].mxu0 %v1061
        %v1134 = vpop.f32.mrb[0].mxu0
        %v1135 = vadd.f32 0.0, %v1134
        %v1136 = vpop.f32.mrb[0].mxu0
        %1137 = vdwg.mxu0
        %v1139 = vsel %vm894, %v455, 0
        %v1142 = vsel %vm894, %v456, 0
        %1144 = vmatprep.subr.mxu0 0.0
        %1145 = vmatpush1.msra.mxu0 %v892
        %1146 = vmatprep.subr.mxu0 0.0
        %1147 = vmatpush1.msra.mxu0 %v893
        %1148 = vmatprep.subr.mxu0 0.0
        %1149 = vmatpush1.msra.mxu0 0.0
        %1150 = vmatprep.subr.mxu0 0.0
        %1151 = vmatpush1.msra.mxu0 0.0
        %1152 = vmatprep.subr.mxu0 0.0
        %1153 = vmatpush1.msra.mxu0 0.0
        %1154 = vmatprep.subr.mxu0 0.0
        %1155 = vmatpush1.msra.mxu0 0.0
        %1156 = vmatprep.subr.mxu0 0.0
        %1157 = vmatpush1.msra.mxu0 0.0
        %1158 = vmatprep.subr.mxu0 0.0
        %1159 = vmatpush1.msra.mxu0 0.0
        %1160 = vmatprep.subr.mxu0 0.0
        %1161 = vmatpush1.msra.mxu0 0.0
        %1162 = vmatprep.subr.mxu0 0.0
        %1163 = vmatpush1.msra.mxu0 0.0
        %1164 = vmatprep.subr.mxu0 0.0
        %1165 = vmatpush1.msra.mxu0 0.0
        %1166 = vmatprep.subr.mxu0 0.0
        %1167 = vmatpush1.msra.mxu0 0.0
        %1168 = vmatprep.subr.mxu0 0.0
        %1169 = vmatpush1.msra.mxu0 0.0
        %1170 = vmatprep.subr.mxu0 0.0
        %1171 = vmatpush1.msra.mxu0 0.0
        %1172 = vmatprep.subr.mxu0 0.0
        %1173 = vmatpush1.msra.mxu0 0.0
        %1174 = vmatprep.subr.mxu0 0.0
        %1175 = vmatpush1.msra.mxu0 0.0
        %1176 = vmatprep.subr.mxu0 0.0
        %1177 = vmatpush1.msra.mxu0 0.0
        %1178 = vmatprep.subr.mxu0 0.0
        %1179 = vmatpush1.msra.mxu0 0.0
        %1180 = vmatprep.subr.mxu0 0.0
        %1181 = vmatpush1.msra.mxu0 0.0
        %1182 = vmatprep.subr.mxu0 0.0
        %1183 = vmatpush1.msra.mxu0 0.0
        %1184 = vmatprep.subr.mxu0 0.0
        %1185 = vmatpush1.msra.mxu0 0.0
        %1186 = vmatprep.subr.mxu0 0.0
        %1187 = vmatpush1.msra.mxu0 0.0
        %1188 = vmatprep.subr.mxu0 0.0
        %1189 = vmatpush1.msra.mxu0 0.0
        %1190 = vmatprep.subr.mxu0 0.0
        %1191 = vmatpush1.msra.mxu0 0.0
        %1192 = vmatprep.subr.mxu0 0.0
        %1193 = vmatpush1.msra.mxu0 0.0
        %1194 = vmatprep.subr.mxu0 0.0
        %1195 = vmatpush1.msra.mxu0 0.0
        %1196 = vmatprep.subr.mxu0 0.0
        %1197 = vmatpush1.msra.mxu0 0.0
        %1198 = vmatprep.subr.mxu0 0.0
        %1199 = vmatpush1.msra.mxu0 0.0
        %1200 = vmatprep.subr.mxu0 0.0
        %1201 = vmatpush1.msra.mxu0 0.0
        %1202 = vmatprep.subr.mxu0 0.0
        %1203 = vmatpush1.msra.mxu0 0.0
        %1204 = vmatprep.subr.mxu0 0.0
        %1205 = vmatpush1.msra.mxu0 0.0
        %1206 = vmatprep.subr.mxu0 0.0
        %1207 = vmatpush1.msra.mxu0 0.0
        %1208 = vmatprep.mubr.f32.mxu0 0.0
        %1209 = vmatmul.mubr.f32.gmra.mrb[0].mxu0 %v1139
        %v1210 = vpop.f32.mrb[0].mxu0
        %v1211 = vadd.f32 0.0, %v1210
        %v1212 = vpop.f32.mrb[0].mxu0
        %1213 = vmatprep.mubr.f32.mxu0 0.0
        %1214 = vmatmul.mubr.f32.gmra.mrb[0].mxu0 %v1142
        %v1215 = vpop.f32.mrb[0].mxu0
        %v1216 = vadd.f32 0.0, %v1215
        %v1217 = vpop.f32.mrb[0].mxu0
        %1218 = vdwg.mxu0
        %v1219 = vsub.f32 0.0, %v1130
        %v1220 = vsub.f32 0.0, %v1135
        %v1221 = vsub.f32 0.0, %v968
        %v1222 = vsub.f32 0.0, %v973
        %v1223 = vsub.f32 %v1219, %v1221
        %v1224 = vsub.f32 %v1220, %v1222
        %v1225 = vmul.f32 %v1223, %v1223
        %v1226 = vmul.f32 %v1224, %v1224
        %v1227 = vsub.f32 %v1211, %v1049
        %v1228 = vsub.f32 %v1216, %v1054
        %v1229 = vmul.f32 %v1227, %v1227
        %v1230 = vmul.f32 %v1228, %v1228
        %v1231 = vadd.f32 %v1225, %v1229
        %v1232 = vadd.f32 %v1226, %v1230
        %v1233 = vrsqrt.pop %v1231
        %v1234 = vmul.f32 %v1231, %v1233
        %vm1235 = vcmp.eq.f32.partialorder %v1231, inf
        %v1236 = vsel %vm1235, %v1231, %v1234
        %vm1237 = vcmp.eq.f32.partialorder %v1231, 0.0
        %v1238 = vand.u32 %v1231, 2147483648
        %v1239 = vsel %vm1237, %v1238, %v1236
        %v1240 = vrsqrt.pop %v1232
        %v1241 = vmul.f32 %v1232, %v1240
        %vm1242 = vcmp.eq.f32.partialorder %v1232, inf
        %v1243 = vsel %vm1242, %v1232, %v1241
        %vm1244 = vcmp.eq.f32.partialorder %v1232, 0.0
        %v1245 = vand.u32 %v1232, 2147483648
        %v1246 = vsel %vm1244, %v1245, %v1243
        %v1247 = vmul.f32 %v1239, 4.0
        %v1248 = vmul.f32 %v1246, 4.0
        %v1249 = vadd.f32 %v1247, 0.0001
        %v1250 = vadd.f32 %v1248, 0.0001
        %v1251 = vsub.f32 %v421, %v1219
        %v1252 = vsub.f32 %v422, %v1220
        %v1253 = vand.u32 2147483647, %v1251
        %v1254 = vand.u32 2147483647, %v1252
        %vm1255 = vcmp.lt.f32.partialorder %v1253, 1.0
        %vm1256 = vcmp.lt.f32.partialorder %v1254, 1.0
        %v1257 = vmul.f32 %v1253, 0.5
        %v1258 = vmul.f32 %v1254, 0.5
        %v1259 = vmul.f32 %v1257, %v1253
        %v1260 = vmul.f32 %v1258, %v1254
        %v1261 = vsub.f32 %v1253, 0.5
        %v1262 = vsub.f32 %v1254, 0.5
        %v1263 = vsel %vm1255, %v1259, %v1261
        %v1264 = vsel %vm1256, %v1260, %v1262
        %v1265 = vsub.f32 %v423, %v1211
        %v1266 = vsub.f32 %v424, %v1216
        %v1267 = vand.u32 2147483647, %v1265
        %v1268 = vand.u32 2147483647, %v1266
        %vm1269 = vcmp.lt.f32.partialorder %v1267, 1.0
        %vm1270 = vcmp.lt.f32.partialorder %v1268, 1.0
        %v1271 = vmul.f32 %v1267, 0.5
        %v1272 = vmul.f32 %v1268, 0.5
        %v1273 = vmul.f32 %v1271, %v1267
        %v1274 = vmul.f32 %v1272, %v1268
        %v1275 = vsub.f32 %v1267, 0.5
        %v1276 = vsub.f32 %v1268, 0.5
        %v1277 = vsel %vm1269, %v1273, %v1275
        %v1278 = vsel %vm1270, %v1274, %v1276
        %v1279 = vadd.f32 %v1263, %v1277
        %v1280 = vadd.f32 %v1264, %v1278
        %v1281 = vsub.f32 %v425, %v1221
        %v1282 = vsub.f32 %v426, %v1222
        %v1283 = vand.u32 2147483647, %v1281
        %v1284 = vand.u32 2147483647, %v1282
        %vm1285 = vcmp.lt.f32.partialorder %v1283, 1.0
        %vm1286 = vcmp.lt.f32.partialorder %v1284, 1.0
        %v1287 = vmul.f32 %v1283, 0.5
        %v1288 = vmul.f32 %v1284, 0.5
        %v1289 = vmul.f32 %v1287, %v1283
        %v1290 = vmul.f32 %v1288, %v1284
        %v1291 = vsub.f32 %v1283, 0.5
        %v1292 = vsub.f32 %v1284, 0.5
        %v1293 = vsel %vm1285, %v1289, %v1291
        %v1294 = vsel %vm1286, %v1290, %v1292
        %v1295 = vadd.f32 %v1279, %v1293
        %v1296 = vadd.f32 %v1280, %v1294
        %v1297 = vsub.f32 %v427, %v1049
        %v1298 = vsub.f32 %v428, %v1054
        %v1299 = vand.u32 2147483647, %v1297
        %v1300 = vand.u32 2147483647, %v1298
        %vm1301 = vcmp.lt.f32.partialorder %v1299, 1.0
        %vm1302 = vcmp.lt.f32.partialorder %v1300, 1.0
        %v1303 = vmul.f32 %v1299, 0.5
        %v1304 = vmul.f32 %v1300, 0.5
        %v1305 = vmul.f32 %v1303, %v1299
        %v1306 = vmul.f32 %v1304, %v1300
        %v1307 = vsub.f32 %v1299, 0.5
        %v1308 = vsub.f32 %v1300, 0.5
        %v1309 = vsel %vm1301, %v1305, %v1307
        %v1310 = vsel %vm1302, %v1306, %v1308
        %v1311 = vadd.f32 %v1295, %v1309
        %v1312 = vadd.f32 %v1296, %v1310
        %v1313 = vrcp.pop %v1249
        %v1314 = vrcp.pop %v1250
        %v1315 = vmul.f32 %v1311, %v1313
        %v1316 = vmul.f32 %v1312, %v1314
        %v1317 = vmul.f32 %v1315, %v571
        %v1318 = vmul.f32 %v1316, %v572
        %v1319 = vld [vmem:[#allocation2] sm:$0xff]
        %v1320 = vld [vmem:[#allocation2 + $0x8] sm:$0xff]
        %v1321 = vadd.f32 %v1319, %v401
        %v1322 = vadd.f32 %v1320, %v402
        %1323 = vst.msk [vmem:[#allocation2] sm:$0xff] %vm894, %v1321
        %1324 = vst.msk [vmem:[#allocation2 + $0x8] sm:$0xff] %vm894, %v1322
        %s1325 = scalar_lea.vmem [#allocation2], 16
        %v1326 = vld [vmem:[%s1325] sm:$0xff]
        %v1327 = vld [vmem:[%s1325 + $0x8] sm:$0xff]
        %v1328 = vadd.f32 %v1326, %v403
        %v1329 = vadd.f32 %v1327, %v404
        %1330 = vst.msk [vmem:[%s1325] sm:$0xff] %vm894, %v1328
        %1331 = vst.msk [vmem:[%s1325 + $0x8] sm:$0xff] %vm894, %v1329
        %s1332 = scalar_lea.vmem [#allocation2], 32
        %v1333 = vld [vmem:[%s1332] sm:$0xff]
        %v1334 = vld [vmem:[%s1332 + $0x8] sm:$0xff]
        %v1335 = vadd.f32 %v1333, %v499
        %v1336 = vadd.f32 %v1334, %v500
        %1337 = vst.msk [vmem:[%s1332] sm:$0xff] %vm894, %v1335
        %1338 = vst.msk [vmem:[%s1332 + $0x8] sm:$0xff] %vm894, %v1336
        %s1339 = scalar_lea.vmem [#allocation2], 48
        %v1340 = vld [vmem:[%s1339] sm:$0xff]
        %v1341 = vld [vmem:[%s1339 + $0x8] sm:$0xff]
        %v1342 = vadd.f32 %v1340, %v511
        %v1343 = vadd.f32 %v1341, %v512
        %1344 = vst.msk [vmem:[%s1339] sm:$0xff] %vm894, %v1342
        %1345 = vst.msk [vmem:[%s1339 + $0x8] sm:$0xff] %vm894, %v1343
        %s1346 = scalar_lea.vmem [#allocation2], 64
        %v1347 = vld [vmem:[%s1346] sm:$0xff]
        %v1348 = vld [vmem:[%s1346 + $0x8] sm:$0xff]
        %v1349 = vadd.f32 %v1347, %v537
        %v1350 = vadd.f32 %v1348, %v538
        %1351 = vst.msk [vmem:[%s1346] sm:$0xff] %vm894, %v1349
        %1352 = vst.msk [vmem:[%s1346 + $0x8] sm:$0xff] %vm894, %v1350
        %s1353 = scalar_lea.vmem [#allocation2], 80
        %v1354 = vld [vmem:[%s1353] sm:$0xff]
        %v1355 = vld [vmem:[%s1353 + $0x8] sm:$0xff]
        %v1356 = vadd.f32 %v1354, %v565
        %v1357 = vadd.f32 %v1355, %v566
        %1358 = vst.msk [vmem:[%s1353] sm:$0xff] %vm894, %v1356
        %1359 = vst.msk [vmem:[%s1353 + $0x8] sm:$0xff] %vm894, %v1357
        %s1360 = scalar_lea.vmem [#allocation2], 96
        %v1361 = vld [vmem:[%s1360] sm:$0xff]
        %v1362 = vld [vmem:[%s1360 + $0x8] sm:$0xff]
        %v1363 = vadd.f32 %v1361, %v517
        %v1364 = vadd.f32 %v1362, %v518
        %1365 = vst.msk [vmem:[%s1360] sm:$0xff] %vm894, %v1363
        %1366 = vst.msk [vmem:[%s1360 + $0x8] sm:$0xff] %vm894, %v1364
        %s1367 = scalar_lea.vmem [#allocation2], 112
        %v1368 = vld [vmem:[%s1367] sm:$0xff]
        %v1369 = vld [vmem:[%s1367 + $0x8] sm:$0xff]
        %v1370 = vadd.f32 %v1368, %v667
        %v1371 = vadd.f32 %v1369, %v668
        %1372 = vst.msk [vmem:[%s1367] sm:$0xff] %vm894, %v1370
        %1373 = vst.msk [vmem:[%s1367 + $0x8] sm:$0xff] %vm894, %v1371
        %s1374 = scalar_lea.vmem [#allocation2], 128
        %v1375 = vld [vmem:[%s1374] sm:$0xff]
        %v1376 = vld [vmem:[%s1374 + $0x8] sm:$0xff]
        %v1377 = vadd.f32 %v1375, %v571
        %v1378 = vadd.f32 %v1376, %v572
        %1379 = vst.msk [vmem:[%s1374] sm:$0xff] %vm894, %v1377
        %1380 = vst.msk [vmem:[%s1374 + $0x8] sm:$0xff] %vm894, %v1378
        %s1381 = scalar_lea.vmem [#allocation2], 144
        %v1382 = vld [vmem:[%s1381] sm:$0xff]
        %v1383 = vld [vmem:[%s1381 + $0x8] sm:$0xff]
        %v1384 = vadd.f32 %v1382, %v1317
        %v1385 = vadd.f32 %v1383, %v1318
        %1386 = vst.msk [vmem:[%s1381] sm:$0xff] %vm894, %v1384
        %1387 = vst.msk [vmem:[%s1381 + $0x8] sm:$0xff] %vm894, %v1385
        %s1388 = scalar_lea.vmem [#allocation2], 160
        %v1389 = vld [vmem:[%s1388] sm:$0xff]
        %v1390 = vld [vmem:[%s1388 + $0x8] sm:$0xff]
        %v1391 = vadd.f32 %v1389, %v429
        %v1392 = vadd.f32 %v1390, %v430
        %1393 = vst.msk [vmem:[%s1388] sm:$0xff] %vm894, %v1391
        %1394 = vst.msk [vmem:[%s1388 + $0x8] sm:$0xff] %vm894, %v1392
        %s1395 = scalar_lea.vmem [#allocation2], 176
        %v1396 = vld [vmem:[%s1395] sm:$0xff]
        %v1397 = vld [vmem:[%s1395 + $0x8] sm:$0xff]
        %v1398 = vadd.f32 %v1396, %v431
        %v1399 = vadd.f32 %v1397, %v432
        %1400 = vst.msk [vmem:[%s1395] sm:$0xff] %vm894, %v1398
        %1401 = vst.msk [vmem:[%s1395 + $0x8] sm:$0xff] %vm894, %v1399
        %s1402 = scalar_lea.vmem [#allocation2], 192
        %v1403 = vld [vmem:[%s1402] sm:$0xff]
        %v1404 = vld [vmem:[%s1402 + $0x8] sm:$0xff]
        %v1405 = vadd.f32 %v1403, %v711
        %v1406 = vadd.f32 %v1404, %v712
        %1407 = vst.msk [vmem:[%s1402] sm:$0xff] %vm894, %v1405
        %1408 = vst.msk [vmem:[%s1402 + $0x8] sm:$0xff] %vm894, %v1406
        %s1409 = scalar_lea.vmem [#allocation2], 208
        %v1410 = vld [vmem:[%s1409] sm:$0xff]
        %v1411 = vld [vmem:[%s1409 + $0x8] sm:$0xff]
        %v1412 = vadd.f32 %v1410, %v723
        %v1413 = vadd.f32 %v1411, %v724
        %1414 = vst.msk [vmem:[%s1409] sm:$0xff] %vm894, %v1412
        %1415 = vst.msk [vmem:[%s1409 + $0x8] sm:$0xff] %vm894, %v1413
        %s1416 = scalar_lea.vmem [#allocation2], 224
        %v1417 = vld [vmem:[%s1416] sm:$0xff]
        %v1418 = vld [vmem:[%s1416 + $0x8] sm:$0xff]
        %v1419 = vadd.f32 %v1417, %v749
        %v1420 = vadd.f32 %v1418, %v750
        %1421 = vst.msk [vmem:[%s1416] sm:$0xff] %vm894, %v1419
        %1422 = vst.msk [vmem:[%s1416 + $0x8] sm:$0xff] %vm894, %v1420
        %s1423 = scalar_lea.vmem [#allocation2], 240
        %v1424 = vld [vmem:[%s1423] sm:$0xff]
        %v1425 = vld [vmem:[%s1423 + $0x8] sm:$0xff]
        %v1426 = vadd.f32 %v1424, %v777
        %v1427 = vadd.f32 %v1425, %v778
        %1428 = vst.msk [vmem:[%s1423] sm:$0xff] %vm894, %v1426
        %1429 = vst.msk [vmem:[%s1423 + $0x8] sm:$0xff] %vm894, %v1427
        %s1430 = scalar_lea.vmem [#allocation2], 256
        %v1431 = vld [vmem:[%s1430] sm:$0xff]
        %v1432 = vld [vmem:[%s1430 + $0x8] sm:$0xff]
        %v1433 = vadd.f32 %v1431, %v729
        %v1434 = vadd.f32 %v1432, %v730
        %1435 = vst.msk [vmem:[%s1430] sm:$0xff] %vm894, %v1433
        %1436 = vst.msk [vmem:[%s1430 + $0x8] sm:$0xff] %vm894, %v1434
        %s1437 = scalar_lea.vmem [#allocation2], 272
        %v1438 = vld [vmem:[%s1437] sm:$0xff]
        %v1439 = vld [vmem:[%s1437 + $0x8] sm:$0xff]
        %v1440 = vadd.f32 %v1438, %v879
        %v1441 = vadd.f32 %v1439, %v880
        %1442 = vst.msk [vmem:[%s1437] sm:$0xff] %vm894, %v1440
        %1443 = vst.msk [vmem:[%s1437 + $0x8] sm:$0xff] %vm894, %v1441
        %s1444 = scalar_lea.vmem [#allocation2], 288
        %v1445 = vld [vmem:[%s1444] sm:$0xff]
        %v1446 = vld [vmem:[%s1444 + $0x8] sm:$0xff]
        %v1447 = vadd.f32 %v1445, %v783
        %v1448 = vadd.f32 %v1446, %v784
        %1449 = vst.msk [vmem:[%s1444] sm:$0xff] %vm894, %v1447
        %1450 = vst.msk [vmem:[%s1444 + $0x8] sm:$0xff] %vm894, %v1448
        // Predicated region
        $region57: #{loss_forward.1} parent=35 // pred_check
          _
        $region58: #{loss_forward.1} parent=35 // pred_check_branch
          %1452 = sbr.rel (%p358) target = $region60
        $region59: #{loss_forward.1} parent=35 // pred_region
          %v1453 = vld [vmem:[#allocation2] sm:$0xff]
          %v1454 = vld [vmem:[#allocation2 + $0x8] sm:$0xff]
          %v1455 = vsel %vm894, %v1453, 0.0
          %v1456 = vsel %vm894, %v1454, 0.0
          %v1457 = vadd.f32 %v1455, %v1456
          %1458 = vadd.xlane.f32.xlu0 %v1457
          %v1459 = vpop.xlane.xlu0 %1458
          %v1460 = vrot.slane %v1459, 4
          %v1461 = vadd.f32 %v1459, %v1460
          %v1462 = vrot.slane %v1461, 2
          %v1463 = vadd.f32 %v1461, %v1462
          %v1464 = vrot.slane %v1463, 1
          %v1465 = vadd.f32 %v1463, %v1464
          %s1466 = vtos %v1465
          %s1467 = scalar_lea.smem [#allocation11], 0
          %1468 = sst [smem:[%s1467]] %s1466
          %v1469 = vld [vmem:[%s1325] sm:$0xff]
          %v1470 = vld [vmem:[%s1325 + $0x8] sm:$0xff]
          %v1471 = vsel %vm894, %v1469, 0.0
          %v1472 = vsel %vm894, %v1470, 0.0
          %v1473 = vadd.f32 %v1471, %v1472
          %1474 = vadd.xlane.f32.xlu0 %v1473
          %v1475 = vpop.xlane.xlu0 %1474
          %v1476 = vrot.slane %v1475, 4
          %v1477 = vadd.f32 %v1475, %v1476
          %v1478 = vrot.slane %v1477, 2
          %v1479 = vadd.f32 %v1477, %v1478
          %v1480 = vrot.slane %v1479, 1
          %v1481 = vadd.f32 %v1479, %v1480
          %s1482 = vtos %v1481
          %s1483 = scalar_lea.smem [#allocation11], 1
          %1484 = sst [smem:[%s1483]] %s1482
          %v1485 = vld [vmem:[%s1332] sm:$0xff]
          %v1486 = vld [vmem:[%s1332 + $0x8] sm:$0xff]
          %v1487 = vsel %vm894, %v1485, 0.0
          %v1488 = vsel %vm894, %v1486, 0.0
          %v1489 = vadd.f32 %v1487, %v1488
          %1490 = vadd.xlane.f32.xlu0 %v1489
          %v1491 = vpop.xlane.xlu0 %1490
          %v1492 = vrot.slane %v1491, 4
          %v1493 = vadd.f32 %v1491, %v1492
          %v1494 = vrot.slane %v1493, 2
          %v1495 = vadd.f32 %v1493, %v1494
          %v1496 = vrot.slane %v1495, 1
          %v1497 = vadd.f32 %v1495, %v1496
          %s1498 = vtos %v1497
          %s1499 = scalar_lea.smem [#allocation11], 2
          %1500 = sst [smem:[%s1499]] %s1498
          %v1501 = vld [vmem:[%s1339] sm:$0xff]
          %v1502 = vld [vmem:[%s1339 + $0x8] sm:$0xff]
          %v1503 = vsel %vm894, %v1501, 0.0
          %v1504 = vsel %vm894, %v1502, 0.0
          %v1505 = vadd.f32 %v1503, %v1504
          %1506 = vadd.xlane.f32.xlu0 %v1505
          %v1507 = vpop.xlane.xlu0 %1506
          %v1508 = vrot.slane %v1507, 4
          %v1509 = vadd.f32 %v1507, %v1508
          %v1510 = vrot.slane %v1509, 2
          %v1511 = vadd.f32 %v1509, %v1510
          %v1512 = vrot.slane %v1511, 1
          %v1513 = vadd.f32 %v1511, %v1512
          %s1514 = vtos %v1513
          %s1515 = scalar_lea.smem [#allocation11], 3
          %1516 = sst [smem:[%s1515]] %s1514
          %v1517 = vld [vmem:[%s1346] sm:$0xff]
          %v1518 = vld [vmem:[%s1346 + $0x8] sm:$0xff]
          %v1519 = vsel %vm894, %v1517, 0.0
          %v1520 = vsel %vm894, %v1518, 0.0
          %v1521 = vadd.f32 %v1519, %v1520
          %1522 = vadd.xlane.f32.xlu0 %v1521
          %v1523 = vpop.xlane.xlu0 %1522
          %v1524 = vrot.slane %v1523, 4
          %v1525 = vadd.f32 %v1523, %v1524
          %v1526 = vrot.slane %v1525, 2
          %v1527 = vadd.f32 %v1525, %v1526
          %v1528 = vrot.slane %v1527, 1
          %v1529 = vadd.f32 %v1527, %v1528
          %s1530 = vtos %v1529
          %s1531 = scalar_lea.smem [#allocation11], 4
          %1532 = sst [smem:[%s1531]] %s1530
          %v1533 = vld [vmem:[%s1353] sm:$0xff]
          %v1534 = vld [vmem:[%s1353 + $0x8] sm:$0xff]
          %v1535 = vsel %vm894, %v1533, 0.0
          %v1536 = vsel %vm894, %v1534, 0.0
          %v1537 = vadd.f32 %v1535, %v1536
          %1538 = vadd.xlane.f32.xlu0 %v1537
          %v1539 = vpop.xlane.xlu0 %1538
          %v1540 = vrot.slane %v1539, 4
          %v1541 = vadd.f32 %v1539, %v1540
          %v1542 = vrot.slane %v1541, 2
          %v1543 = vadd.f32 %v1541, %v1542
          %v1544 = vrot.slane %v1543, 1
          %v1545 = vadd.f32 %v1543, %v1544
          %s1546 = vtos %v1545
          %s1547 = scalar_lea.smem [#allocation11], 5
          %1548 = sst [smem:[%s1547]] %s1546
          %v1549 = vld [vmem:[%s1360] sm:$0xff]
          %v1550 = vld [vmem:[%s1360 + $0x8] sm:$0xff]
          %v1551 = vsel %vm894, %v1549, 0.0
          %v1552 = vsel %vm894, %v1550, 0.0
          %v1553 = vadd.f32 %v1551, %v1552
          %1554 = vadd.xlane.f32.xlu0 %v1553
          %v1555 = vpop.xlane.xlu0 %1554
          %v1556 = vrot.slane %v1555, 4
          %v1557 = vadd.f32 %v1555, %v1556
          %v1558 = vrot.slane %v1557, 2
          %v1559 = vadd.f32 %v1557, %v1558
          %v1560 = vrot.slane %v1559, 1
          %v1561 = vadd.f32 %v1559, %v1560
          %s1562 = vtos %v1561
          %s1563 = scalar_lea.smem [#allocation11], 6
          %1564 = sst [smem:[%s1563]] %s1562
          %v1565 = vld [vmem:[%s1367] sm:$0xff]
          %v1566 = vld [vmem:[%s1367 + $0x8] sm:$0xff]
          %v1567 = vsel %vm894, %v1565, 0.0
          %v1568 = vsel %vm894, %v1566, 0.0
          %v1569 = vadd.f32 %v1567, %v1568
          %1570 = vadd.xlane.f32.xlu0 %v1569
          %v1571 = vpop.xlane.xlu0 %1570
          %v1572 = vrot.slane %v1571, 4
          %v1573 = vadd.f32 %v1571, %v1572
          %v1574 = vrot.slane %v1573, 2
          %v1575 = vadd.f32 %v1573, %v1574
          %v1576 = vrot.slane %v1575, 1
          %v1577 = vadd.f32 %v1575, %v1576
          %s1578 = vtos %v1577
          %s1579 = scalar_lea.smem [#allocation11], 7
          %1580 = sst [smem:[%s1579]] %s1578
          %v1581 = vld [vmem:[%s1374] sm:$0xff]
          %v1582 = vld [vmem:[%s1374 + $0x8] sm:$0xff]
          %v1583 = vsel %vm894, %v1581, 0.0
          %v1584 = vsel %vm894, %v1582, 0.0
          %v1585 = vadd.f32 %v1583, %v1584
          %1586 = vadd.xlane.f32.xlu0 %v1585
          %v1587 = vpop.xlane.xlu0 %1586
          %v1588 = vrot.slane %v1587, 4
          %v1589 = vadd.f32 %v1587, %v1588
          %v1590 = vrot.slane %v1589, 2
          %v1591 = vadd.f32 %v1589, %v1590
          %v1592 = vrot.slane %v1591, 1
          %v1593 = vadd.f32 %v1591, %v1592
          %s1594 = vtos %v1593
          %s1595 = scalar_lea.smem [#allocation11], 8
          %1596 = sst [smem:[%s1595]] %s1594
          %v1597 = vld [vmem:[%s1381] sm:$0xff]
          %v1598 = vld [vmem:[%s1381 + $0x8] sm:$0xff]
          %v1599 = vsel %vm894, %v1597, 0.0
          %v1600 = vsel %vm894, %v1598, 0.0
          %v1601 = vadd.f32 %v1599, %v1600
          %1602 = vadd.xlane.f32.xlu0 %v1601
          %v1603 = vpop.xlane.xlu0 %1602
          %v1604 = vrot.slane %v1603, 4
          %v1605 = vadd.f32 %v1603, %v1604
          %v1606 = vrot.slane %v1605, 2
          %v1607 = vadd.f32 %v1605, %v1606
          %v1608 = vrot.slane %v1607, 1
          %v1609 = vadd.f32 %v1607, %v1608
          %s1610 = vtos %v1609
          %s1611 = scalar_lea.smem [#allocation11], 9
          %1612 = sst [smem:[%s1611]] %s1610
          %v1613 = vld [vmem:[%s1388] sm:$0xff]
          %v1614 = vld [vmem:[%s1388 + $0x8] sm:$0xff]
          %v1615 = vsel %vm894, %v1613, 0.0
          %v1616 = vsel %vm894, %v1614, 0.0
          %v1617 = vadd.f32 %v1615, %v1616
          %1618 = vadd.xlane.f32.xlu0 %v1617
          %v1619 = vpop.xlane.xlu0 %1618
          %v1620 = vrot.slane %v1619, 4
          %v1621 = vadd.f32 %v1619, %v1620
          %v1622 = vrot.slane %v1621, 2
          %v1623 = vadd.f32 %v1621, %v1622
          %v1624 = vrot.slane %v1623, 1
          %v1625 = vadd.f32 %v1623, %v1624
          %s1626 = vtos %v1625
          %s1627 = scalar_lea.smem [#allocation11], 10
          %1628 = sst [smem:[%s1627]] %s1626
          %v1629 = vld [vmem:[%s1395] sm:$0xff]
          %v1630 = vld [vmem:[%s1395 + $0x8] sm:$0xff]
          %v1631 = vsel %vm894, %v1629, 0.0
          %v1632 = vsel %vm894, %v1630, 0.0
          %v1633 = vadd.f32 %v1631, %v1632
          %1634 = vadd.xlane.f32.xlu0 %v1633
          %v1635 = vpop.xlane.xlu0 %1634
          %v1636 = vrot.slane %v1635, 4
          %v1637 = vadd.f32 %v1635, %v1636
          %v1638 = vrot.slane %v1637, 2
          %v1639 = vadd.f32 %v1637, %v1638
          %v1640 = vrot.slane %v1639, 1
          %v1641 = vadd.f32 %v1639, %v1640
          %s1642 = vtos %v1641
          %s1643 = scalar_lea.smem [#allocation11], 11
          %1644 = sst [smem:[%s1643]] %s1642
          %v1645 = vld [vmem:[%s1402] sm:$0xff]
          %v1646 = vld [vmem:[%s1402 + $0x8] sm:$0xff]
          %v1647 = vsel %vm894, %v1645, 0.0
          %v1648 = vsel %vm894, %v1646, 0.0
          %v1649 = vadd.f32 %v1647, %v1648
          %1650 = vadd.xlane.f32.xlu0 %v1649
          %v1651 = vpop.xlane.xlu0 %1650
          %v1652 = vrot.slane %v1651, 4
          %v1653 = vadd.f32 %v1651, %v1652
          %v1654 = vrot.slane %v1653, 2
          %v1655 = vadd.f32 %v1653, %v1654
          %v1656 = vrot.slane %v1655, 1
          %v1657 = vadd.f32 %v1655, %v1656
          %s1658 = vtos %v1657
          %s1659 = scalar_lea.smem [#allocation11], 12
          %1660 = sst [smem:[%s1659]] %s1658
          %v1661 = vld [vmem:[%s1409] sm:$0xff]
          %v1662 = vld [vmem:[%s1409 + $0x8] sm:$0xff]
          %v1663 = vsel %vm894, %v1661, 0.0
          %v1664 = vsel %vm894, %v1662, 0.0
          %v1665 = vadd.f32 %v1663, %v1664
          %1666 = vadd.xlane.f32.xlu0 %v1665
          %v1667 = vpop.xlane.xlu0 %1666
          %v1668 = vrot.slane %v1667, 4
          %v1669 = vadd.f32 %v1667, %v1668
          %v1670 = vrot.slane %v1669, 2
          %v1671 = vadd.f32 %v1669, %v1670
          %v1672 = vrot.slane %v1671, 1
          %v1673 = vadd.f32 %v1671, %v1672
          %s1674 = vtos %v1673
          %s1675 = scalar_lea.smem [#allocation11], 13
          %1676 = sst [smem:[%s1675]] %s1674
          %v1677 = vld [vmem:[%s1416] sm:$0xff]
          %v1678 = vld [vmem:[%s1416 + $0x8] sm:$0xff]
          %v1679 = vsel %vm894, %v1677, 0.0
          %v1680 = vsel %vm894, %v1678, 0.0
          %v1681 = vadd.f32 %v1679, %v1680
          %1682 = vadd.xlane.f32.xlu0 %v1681
          %v1683 = vpop.xlane.xlu0 %1682
          %v1684 = vrot.slane %v1683, 4
          %v1685 = vadd.f32 %v1683, %v1684
          %v1686 = vrot.slane %v1685, 2
          %v1687 = vadd.f32 %v1685, %v1686
          %v1688 = vrot.slane %v1687, 1
          %v1689 = vadd.f32 %v1687, %v1688
          %s1690 = vtos %v1689
          %s1691 = scalar_lea.smem [#allocation11], 14
          %1692 = sst [smem:[%s1691]] %s1690
          %v1693 = vld [vmem:[%s1423] sm:$0xff]
          %v1694 = vld [vmem:[%s1423 + $0x8] sm:$0xff]
          %v1695 = vsel %vm894, %v1693, 0.0
          %v1696 = vsel %vm894, %v1694, 0.0
          %v1697 = vadd.f32 %v1695, %v1696
          %1698 = vadd.xlane.f32.xlu0 %v1697
          %v1699 = vpop.xlane.xlu0 %1698
          %v1700 = vrot.slane %v1699, 4
          %v1701 = vadd.f32 %v1699, %v1700
          %v1702 = vrot.slane %v1701, 2
          %v1703 = vadd.f32 %v1701, %v1702
          %v1704 = vrot.slane %v1703, 1
          %v1705 = vadd.f32 %v1703, %v1704
          %s1706 = vtos %v1705
          %s1707 = scalar_lea.smem [#allocation11], 15
          %1708 = sst [smem:[%s1707]] %s1706
          %v1709 = vld [vmem:[%s1430] sm:$0xff]
          %v1710 = vld [vmem:[%s1430 + $0x8] sm:$0xff]
          %v1711 = vsel %vm894, %v1709, 0.0
          %v1712 = vsel %vm894, %v1710, 0.0
          %v1713 = vadd.f32 %v1711, %v1712
          %1714 = vadd.xlane.f32.xlu0 %v1713
          %v1715 = vpop.xlane.xlu0 %1714
          %v1716 = vrot.slane %v1715, 4
          %v1717 = vadd.f32 %v1715, %v1716
          %v1718 = vrot.slane %v1717, 2
          %v1719 = vadd.f32 %v1717, %v1718
          %v1720 = vrot.slane %v1719, 1
          %v1721 = vadd.f32 %v1719, %v1720
          %s1722 = vtos %v1721
          %s1723 = scalar_lea.smem [#allocation11], 16
          %1724 = sst [smem:[%s1723]] %s1722
          %v1725 = vld [vmem:[%s1437] sm:$0xff]
          %v1726 = vld [vmem:[%s1437 + $0x8] sm:$0xff]
          %v1727 = vsel %vm894, %v1725, 0.0
          %v1728 = vsel %vm894, %v1726, 0.0
          %v1729 = vadd.f32 %v1727, %v1728
          %1730 = vadd.xlane.f32.xlu0 %v1729
          %v1731 = vpop.xlane.xlu0 %1730
          %v1732 = vrot.slane %v1731, 4
          %v1733 = vadd.f32 %v1731, %v1732
          %v1734 = vrot.slane %v1733, 2
          %v1735 = vadd.f32 %v1733, %v1734
          %v1736 = vrot.slane %v1735, 1
          %v1737 = vadd.f32 %v1735, %v1736
          %s1738 = vtos %v1737
          %s1739 = scalar_lea.smem [#allocation11], 17
          %1740 = sst [smem:[%s1739]] %s1738
          %v1741 = vld [vmem:[%s1444] sm:$0xff]
          %v1742 = vld [vmem:[%s1444 + $0x8] sm:$0xff]
          %v1743 = vsel %vm894, %v1741, 0.0
          %v1744 = vsel %vm894, %v1742, 0.0
          %v1745 = vadd.f32 %v1743, %v1744
          %1746 = vadd.xlane.f32.xlu0 %v1745
          %v1747 = vpop.xlane.xlu0 %1746
          %v1748 = vrot.slane %v1747, 4
          %v1749 = vadd.f32 %v1747, %v1748
          %v1750 = vrot.slane %v1749, 2
          %v1751 = vadd.f32 %v1749, %v1750
          %v1752 = vrot.slane %v1751, 1
          %v1753 = vadd.f32 %v1751, %v1752
          %s1754 = vtos %v1753
          %s1755 = scalar_lea.smem [#allocation11], 18
          %1756 = sst [smem:[%s1755]] %s1754
        $region60: #{loss_forward.1} parent=35 // pred_fallthru
          _
        // Predicated region
        $region61: #{loss_forward.1} parent=35 // pred_check
          %p1757 = pneg %p162
        $region62: #{loss_forward.1} parent=35 // pred_check_branch
          %1759 = sbr.rel (%p1757) target = $region64
        $region63: #{loss_forward.1} parent=35 // pred_region
          %s1761 = ssub.s32 16, 16
          %1762 = vsyncadd [#allocation5], %s1761
          %s1764 = sshll.u32 %s4, 4
          %s1765 = int_to_ptr.vmem [resolvable:$true] %s1764
          %1767 = dma.smem_to_vmem [#allocation11], 16, %s1765, [#allocation5]
        $region64: #{loss_forward.1} parent=35 // pred_fallthru
          _
        // Predicated region
        $region65: #{loss_forward.1} parent=35 // pred_check
          %p1768 = pneg %p162
        $region66: #{loss_forward.1} parent=35 // pred_check_branch
          %1770 = sbr.rel (%p1768) target = $region68
        $region67: #{loss_forward.1} parent=35 // pred_region
          %1771 = dma.done [#allocation5], 16
        $region68: #{loss_forward.1} parent=35 // pred_fallthru
          _
        %1772 = sfence
      $region36: #{loss_forward.1} parent=5 // pred_fallthru
        _
      %p1773 = scmp.le.s32.totalorder 2, %s20
      // Predicated region
      $region69: #{loss_forward.1} parent=5 // pred_check
        %p1774 = pneg %p1773
      $region70: #{loss_forward.1} parent=5 // pred_check_branch
        %1776 = sbr.rel (%p1774) target = $region72
      $region71: #{loss_forward.1} parent=5 // pred_region
        %s1777 = ssub.s32 %s20, 2
      $region72: #{loss_forward.1} parent=5 // pred_fallthru
        _
    $region6: #{loss_forward.1} parent=1 // loop_footer
      %s24 = sadd.s32 1, %s20
    $region7: #{loss_forward.1} parent=1 // loop_footer_branch
      %19 = sbr.rel target = $region3
    $region8: #{loss_forward.1} parent=1 // loop_exit
      _
    %1778 = vsyncpa [#allocation4], 1
    %s1779 = scalar_lea.sflag [#allocation4], 1
    %1780 = vsyncpa %s1779, 1
    %1781 = vsyncpa [#allocation7], 1
    %s1782 = scalar_lea.sflag [#allocation7], 1
    %1783 = vsyncpa %s1782, 1
    %1784 = vsyncpa [#allocation10], 1
    %s1785 = scalar_lea.sflag [#allocation10], 1
    %1786 = vsyncpa %s1785, 1
    %1787 = vsyncpa [#allocation5], 1
    %s1788 = scalar_lea.sflag [#allocation5], 1
    %1789 = vsyncpa %s1788, 1

</llo_original>
